<compile_context>
chip_gen: v7x
topology: tpu7x:2x2x1
jax: 0.10.0
libtpu: 0.0.40
codegen_flags: <defaults>
</compile_context>

<pallas_src>
import math

import jax
import jax.numpy as jnp
from jax.experimental import pallas as pl
from jax.experimental.pallas import tpu as pltpu


_VMEM_SPEC = pl.BlockSpec(memory_space=pltpu.MemorySpace.VMEM)


# -----------------------------------------------------------------------------
# Fused four-directional LSTM kernel (both BiLSTMs, both directions, 1 launch)
# -----------------------------------------------------------------------------
def four_dir_lstm_kernel(
    x_rl_ref,    # (S*B, 2F)  row t*B+b = [x[b,t,:], x[b,S-1-t,:]]
    wih_rl_ref,  # (2F, 8H)   gate-interleaved, direction-block weights
    whh_rl_ref,  # (2H, 8H)   block-diagonal [whh_fw ; whh_bw]
    b_rl_ref,    # (1, 8H)    combined b_ih + b_hh, gate-interleaved
    h0_rl_ref,   # (B, 2H)    [h_fw | h_bw]
    c0_rl_ref,   # (B, 2H)
    x_du_ref,    # (F*B, 2S)
    wih_du_ref,  # (2S, 8H)
    whh_du_ref,  # (2H, 8H)
    b_du_ref,    # (1, 8H)
    h0_du_ref,   # (B, 2H)
    c0_du_ref,   # (B, 2H)
    out_ref,     # (B, (S+F)*2H)  lane-dense, already in torch.flatten order
):
    H2 = whh_rl_ref.shape[0]          # 2H
    H = H2 // 2
    B = h0_rl_ref.shape[0]
    T_rl = x_rl_ref.shape[0] // B
    T_du = x_du_ref.shape[0] // B

    # Hoisted input projections for BOTH directions (+ bias): one MXU op each,
    # nothing input-dependent remains inside the recurrence.
    gx_rl = (jnp.dot(x_rl_ref[...], wih_rl_ref[...],
                     preferred_element_type=jnp.float32) + b_rl_ref[...])
    gx_du = (jnp.dot(x_du_ref[...], wih_du_ref[...],
                     preferred_element_type=jnp.float32) + b_du_ref[...])

    whh_rl = whh_rl_ref[...]
    whh_du = whh_du_ref[...]

    def cell(gx, t, h, c, whh):
        # ONE fused-gate recurrent matmul covering forward AND backward:
        # (B, 2H) @ (2H, 8H).  Gate columns: [i_fw i_bw f_fw f_bw g_fw g_bw
        # o_fw o_bw], so every slice below is already [fw | bw] lane-aligned
        # with the (B, 2H) cell state.
        gates = gx[t * B:(t + 1) * B] + jnp.dot(
            h, whh, preferred_element_type=jnp.float32)
        sig = jax.nn.sigmoid(gates)                 # one EUP pass over 8H lanes
        i = sig[:, 0 * H2:1 * H2]
        f = sig[:, 1 * H2:2 * H2]
        o = sig[:, 3 * H2:4 * H2]
        g = jnp.tanh(gates[:, 2 * H2:3 * H2])
        c_new = f * c + i * g
        h_new = o * jnp.tanh(c_new)
        return h_new, c_new

    def store(h, pos_fw, pos_bw):
        # Lane-dense flatten: position p owns lanes [2H*p, 2H*(p+1)) = [fw|bw].
        out_ref[:, H2 * pos_fw:H2 * pos_fw + H] = h[:, :H]
        out_ref[:, H2 * pos_bw + H:H2 * pos_bw + H2] = h[:, H:]

    h_rl, c_rl = h0_rl_ref[...], c0_rl_ref[...]
    h_du, c_du = h0_du_ref[...], c0_du_ref[...]

    # Interleave the two independent recurrences (static trip counts, fully
    # unrolled) so the scheduler hides one chain's MXU/EUP latency under the
    # other's gate math.
    for t in range(max(T_rl, T_du)):
        if t < T_rl:
            h_rl, c_rl = cell(gx_rl, t, h_rl, c_rl, whh_rl)
            store(h_rl, t, T_rl - 1 - t)
        if t < T_du:
            h_du, c_du = cell(gx_du, t, h_du, c_du, whh_du)
            store(h_du, T_rl + t, T_rl + T_du - 1 - t)


def run_four_dir_lstm(x_rl, x_du, p_rl, p_du, S, F, B, H):
    return pl.pallas_call(
        four_dir_lstm_kernel,
        out_shape=jax.ShapeDtypeStruct((B, (S + F) * 2 * H), jnp.float32),
        in_specs=[_VMEM_SPEC] * 12,
        out_specs=_VMEM_SPEC,
    )(x_rl, *p_rl, x_du, *p_du)


# -----------------------------------------------------------------------------
# Grid-tiled linear (fc123): K-reduction grid axis + f32 accumulator scratch,
# bf16 weight streamed from HBM (half the bytes of the dominant stream).
# -----------------------------------------------------------------------------
def linear_tiled_kernel(x_ref, w_ref, b_ref, o_ref, acc_ref):
    k = pl.program_id(1)

    @pl.when(k == 0)
    def _():
        acc_ref[...] = jnp.zeros_like(acc_ref)

    # Weight arrives as bf16 (HBM traffic halved); upcast the VMEM tile and
    # accumulate in f32.  At B=2 this op is HBM-bound, so MXU rate is moot.
    acc_ref[...] += jnp.dot(x_ref[...], w_ref[...].astype(jnp.float32),
                            preferred_element_type=jnp.float32)

    @pl.when(k == pl.num_programs(1) - 1)
    def _():
        o_ref[...] = (acc_ref[...] + b_ref[...]).astype(o_ref.dtype)


def _pick_tile(dim, target, align=128):
    """Largest multiple of `align` that divides `dim` and is <= target."""
    best = None
    t = align
    while t <= min(dim, target):
        if dim % t == 0:
            best = t
        t += align
    return best if best is not None else dim


def run_linear_tiled(x, w, b, *, tk_target=2048, tn_target=1024):
    B, K = x.shape
    Kw, N = w.shape
    assert Kw == K
    tk = _pick_tile(K, tk_target)
    tn = _pick_tile(N, tn_target)
    grid = (N // tn, K // tk)   # reduction axis last
    return pl.pallas_call(
        linear_tiled_kernel,
        out_shape=jax.ShapeDtypeStruct((B, N), jnp.float32),
        grid_spec=pltpu.PrefetchScalarGridSpec(
            num_scalar_prefetch=0,
            grid=grid,
            in_specs=[
                pl.BlockSpec((B, tk), lambda n, k: (0, k)),
                pl.BlockSpec((tk, tn), lambda n, k: (k, n)),
                pl.BlockSpec((1, tn), lambda n, k: (0, n)),
            ],
            out_specs=pl.BlockSpec((B, tn), lambda n, k: (0, n)),
            scratch_shapes=[pltpu.VMEM((B, tn), jnp.float32)],
        ),
        compiler_params=pltpu.CompilerParams(
            dimension_semantics=("parallel", "arbitrary"),
            # 2048x1024 bf16 weight tile (4 MiB) x2 buffers + f32 upcast temp
            # (~8 MiB) + small x/acc tiles: well under 48 MiB, which itself is
            # safely under v7x's 64 MiB physical VMEM (and v5e/v6e's 128 MiB).
            vmem_limit_bytes=48 * 1024 * 1024,
        ),
    )(x, w, b)


# -----------------------------------------------------------------------------
# Pure-JAX reference (same math, no Pallas) for validation
# -----------------------------------------------------------------------------
def bilstm_ref(x_btf, p, h0, c0):
    """Bidirectional LSTM, batch_first.  Returns (B, T, 2H)."""
    H = p["whh"].shape[1]
    wih, whh, b = p["wih"], p["whh"], p["b"]

    def run_dir(xs_tbf, w_ih, w_hh, bias, h, c):
        outs = []
        for t in range(xs_tbf.shape[0]):
            gates = xs_tbf[t] @ w_ih + h @ w_hh + bias
            i = jax.nn.sigmoid(gates[:, :H])
            f = jax.nn.sigmoid(gates[:, H:2 * H])
            g = jnp.tanh(gates[:, 2 * H:3 * H])
            o = jax.nn.sigmoid(gates[:, 3 * H:])
            c = f * c + i * g
            h = o * jnp.tanh(c)
            outs.append(h)
        return jnp.stack(outs, axis=0)                      # (T, B, H)

    x_tbf = jnp.transpose(x_btf, (1, 0, 2))
    out_fw = run_dir(x_tbf, wih[:, :4 * H], whh[0], b[:, :4 * H], h0[0], c0[0])
    out_bw = run_dir(x_tbf[::-1], wih[:, 4 * H:], whh[1], b[:, 4 * H:],
                     h0[1], c0[1])[::-1]
    return jnp.transpose(jnp.concatenate([out_fw, out_bw], axis=-1), (1, 0, 2))


# -----------------------------------------------------------------------------
# Layout plumbing: canonical params -> fused-kernel packed layout
# -----------------------------------------------------------------------------
def _interleave_gate_cols(fw, bw, H):
    """[i f g o]_fw (..,4H), [i f g o]_bw (..,4H) -> (..,8H) [i_fw i_bw f_fw f_bw ...]."""
    lead = fw.shape[:-1]
    fw4 = fw.reshape(lead + (4, H))
    bw4 = bw.reshape(lead + (4, H))
    return jnp.concatenate([fw4, bw4], axis=-1).reshape(lead + (8 * H,))


def pack_bilstm(p, h0, c0, H):
    """Pack canonical BiLSTM params into the fused block-diagonal layout."""
    wih, whh, b = p["wih"], p["whh"], p["b"]
    In = wih.shape[0]
    zi = jnp.zeros((In, 4 * H), jnp.float32)
    zh = jnp.zeros((H, 4 * H), jnp.float32)
    # Rows 0:In couple x_t to fw gate columns only; rows In:2In couple the
    # time-reversed x_{T-1-t} to bw gate columns only.
    wih_comb = jnp.concatenate(
        [_interleave_gate_cols(wih[:, :4 * H], zi, H),
         _interleave_gate_cols(zi, wih[:, 4 * H:], H)], axis=0)          # (2In, 8H)
    whh_bd = jnp.concatenate(
        [_interleave_gate_cols(whh[0], zh, H),
         _interleave_gate_cols(zh, whh[1], H)], axis=0)                  # (2H, 8H)
    bias = _interleave_gate_cols(b[:, :4 * H], b[:, 4 * H:], H)          # (1, 8H)
    h0_cat = jnp.concatenate([h0[0], h0[1]], axis=1)                     # (B, 2H)
    c0_cat = jnp.concatenate([c0[0], c0[1]], axis=1)
    return (wih_comb, whh_bd, bias, h0_cat, c0_cat)


def _prep_bidir_input(x_btf):
    """(B, T, In) -> (T*B, 2In), row t*B+b = [x[b,t,:], x[b,T-1-t,:]]."""
    x_tbf = jnp.transpose(x_btf, (1, 0, 2))
    x_comb = jnp.concatenate([x_tbf, x_tbf[::-1]], axis=-1)
    T, B, In2 = x_comb.shape
    return x_comb.reshape(T * B, In2)


# -----------------------------------------------------------------------------
# Model glue
# -----------------------------------------------------------------------------
def deepvo_forward(x, params, hidden_rl, hidden_du, use_pallas=True):
    """x: (B, origin_feat_size) -> (B, fc_out)."""
    B = x.shape[0]
    S = params["seq_size"]
    F = params["feat_size"]
    H = params["hidden_size"]
    x_rl = x.reshape(B, S, F)

    if not use_pallas:
        out1 = bilstm_ref(x_rl, params["lstm_rightleft"], *hidden_rl)      # (B, S, 2H)
        out2 = bilstm_ref(jnp.transpose(x_rl, (0, 2, 1)),
                          params["lstm_downup"], *hidden_du)               # (B, F, 2H)
        feat = jnp.concatenate([out1, out2], axis=1).reshape(B, -1)
        return feat @ params["fc_w"].astype(jnp.float32) + params["fc_b"]

    # Tiny one-op layout preps so the kernel's hoisted input projection is a
    # single 2D matmul per LSTM and every per-step slice is static.
    x_rl_in = _prep_bidir_input(x_rl)                                      # (S*B, 2F)
    x_du_in = _prep_bidir_input(jnp.transpose(x_rl, (0, 2, 1)))            # (F*B, 2S)
    p_rl = pack_bilstm(params["lstm_rightleft"], *hidden_rl, H)
    p_du = pack_bilstm(params["lstm_downup"], *hidden_du, H)

    feat = run_four_dir_lstm(x_rl_in, x_du_in, p_rl, p_du, S, F, B, H)     # (B, (S+F)*2H)
    # feat is already in torch.flatten order and lane-dense: feed fc directly.
    # TODO(synk): overlap the first fc weight-tile DMA with the LSTM call via
    # a cross-call semaphore/VMEM future (P10); kept as two plain calls here.
    return run_linear_tiled(feat, params["fc_w"], params["fc_b"])


# -----------------------------------------------------------------------------
# Deterministic parameter init (PyTorch-style U(-1/sqrt(H), 1/sqrt(H)))
# -----------------------------------------------------------------------------
def init_bilstm_params(key, input_size, hidden_size):
    H = hidden_size
    bound = 1.0 / math.sqrt(H)
    ks = jax.random.split(key, 8)
    u = lambda k, s: jax.random.uniform(k, s, minval=-bound, maxval=bound,
                                        dtype=jnp.float32)
    wih, whh, b = [], [], []
    for d in range(2):          # 0 = forward, 1 = backward
        o = d * 4
        wih.append(u(ks[o + 0], (input_size, 4 * H)))       # fused gates (i|f|g|o)
        whh.append(u(ks[o + 1], (H, 4 * H)))
        b.append(u(ks[o + 2], (1, 4 * H)) + u(ks[o + 3], (1, 4 * H)))  # b_ih + b_hh
    return {
        "wih": jnp.concatenate(wih, axis=-1),               # (In, 8H)  [fw | bw]
        "whh": jnp.stack(whh, axis=0),                      # (2, H, 4H)
        "b": jnp.concatenate(b, axis=-1),                   # (1, 8H)
    }


def init_deepvo_params(key, seq_size, origin_feat_size, hidden_size, fc_out):
    feat_size = origin_feat_size // seq_size
    k1, k2, k3, k4 = jax.random.split(key, 4)
    fc_in = (seq_size + feat_size) * 2 * hidden_size
    bound = 1.0 / math.sqrt(fc_in)
    fc_w = jax.random.uniform(k3, (fc_in, fc_out), minval=-bound,
                              maxval=bound, dtype=jnp.float32)
    return {
        "seq_size": seq_size,
        "feat_size": feat_size,
        "hidden_size": hidden_size,
        "lstm_rightleft": init_bilstm_params(k1, feat_size, hidden_size),
        "lstm_downup": init_bilstm_params(k2, seq_size, hidden_size),
        # fc weight stored bf16: halves the HBM stream that dominates the real
        # Linear(49152, 2048).  Both the kernel and the reference consume the
        # same bf16-rounded values, so validation stays tight.
        "fc_w": fc_w.astype(jnp.bfloat16),
        "fc_b": jax.random.uniform(k4, (1, fc_out), minval=-bound,
                                   maxval=bound, dtype=jnp.float32),
    }


# -----------------------------------------------------------------------------
if __name__ == "__main__":
    # Small shapes consistent with the module's forward.
    B = 2
    seq_size = 8
    origin_feat_size = 128          # -> feat_size = 16
    hidden_size = 32                # 8H = 256 fused-gate lanes
    fc_out = 128                    # scaled-down stand-in for Linear(49152, 2048)

    key = jax.random.PRNGKey(0)
    k_x, k_p, k_h1, k_c1, k_h2, k_c2 = jax.random.split(key, 6)

    x = jax.random.normal(k_x, (B, origin_feat_size), dtype=jnp.float32)
    params = init_deepvo_params(k_p, seq_size, origin_feat_size, hidden_size,
                                fc_out)

    # Deterministic stand-ins for the torch.randn initial hidden states.
    hidden_rl = (
        jax.random.normal(k_h1, (2, B, hidden_size), dtype=jnp.float32),
        jax.random.normal(k_c1, (2, B, hidden_size), dtype=jnp.float32),
    )
    hidden_du = (
        jax.random.normal(k_h2, (2, B, hidden_size), dtype=jnp.float32),
        jax.random.normal(k_c2, (2, B, hidden_size), dtype=jnp.float32),
    )

    out = deepvo_forward(x, params, hidden_rl, hidden_du, use_pallas=True)
    out = jax.block_until_ready(out)

    # Validate against the pure-JAX reference (same math, no Pallas).
    ref = deepvo_forward(x, params, hidden_rl, hidden_du, use_pallas=False)
    ref = jax.block_until_ready(ref)

    assert out.shape == (B, fc_out), out.shape
    err = float(jnp.max(jnp.abs(out - ref)))
    assert jnp.allclose(out, ref, atol=2e-3, rtol=2e-3), err

    print("KERNEL_OK")
</pallas_src>

<mosaic_0001>
module attributes {stable_mosaic.version = 11 : i64} {
  func.func @four_dir_lstm_kernel(%arg0: memref<16x32xf32, #tpu.memory_space<vmem>>, %arg1: memref<32x256xf32, #tpu.memory_space<vmem>>, %arg2: memref<64x256xf32, #tpu.memory_space<vmem>>, %arg3: memref<1x256xf32, #tpu.memory_space<vmem>>, %arg4: memref<2x64xf32, #tpu.memory_space<vmem>>, %arg5: memref<2x64xf32, #tpu.memory_space<vmem>>, %arg6: memref<32x16xf32, #tpu.memory_space<vmem>>, %arg7: memref<16x256xf32, #tpu.memory_space<vmem>>, %arg8: memref<64x256xf32, #tpu.memory_space<vmem>>, %arg9: memref<1x256xf32, #tpu.memory_space<vmem>>, %arg10: memref<2x64xf32, #tpu.memory_space<vmem>>, %arg11: memref<2x64xf32, #tpu.memory_space<vmem>>, %arg12: memref<2x1536xf32, #tpu.memory_space<vmem>>) attributes {dimension_semantics = [], scalar_prefetch = 0 : i64, scratch_operands = 0 : i64, tpu.core_type = #tpu.core_type<tc>} {
    %c0 = arith.constant 0 : index
    %c0_0 = arith.constant 0 : index
    %0 = vector.load %arg0[%c0, %c0_0] : memref<16x32xf32, #tpu.memory_space<vmem>>, vector<16x32xf32>
    %c0_1 = arith.constant 0 : index
    %c0_2 = arith.constant 0 : index
    %1 = vector.load %arg1[%c0_1, %c0_2] : memref<32x256xf32, #tpu.memory_space<vmem>>, vector<32x256xf32>
    %cst = arith.constant dense<0.000000e+00> : vector<16x256xf32>
    %2 = tpu.matmul %0, %1, %cst {dimension_numbers = #tpu.dot_dimension_numbers<[1], [0], [0], [1], [0, 0, 1, 1], [], []>} : vector<16x32xf32>, vector<32x256xf32>, vector<16x256xf32> -> vector<16x256xf32>
    %c0_3 = arith.constant 0 : index
    %c0_4 = arith.constant 0 : index
    %3 = vector.load %arg3[%c0_3, %c0_4] : memref<1x256xf32, #tpu.memory_space<vmem>>, vector<1x256xf32>
    %4 = vector.broadcast %3 : vector<1x256xf32> to vector<16x256xf32>
    %5 = arith.addf %2, %4 : vector<16x256xf32>
    %c0_5 = arith.constant 0 : index
    %c0_6 = arith.constant 0 : index
    %6 = vector.load %arg6[%c0_5, %c0_6] : memref<32x16xf32, #tpu.memory_space<vmem>>, vector<32x16xf32>
    %c0_7 = arith.constant 0 : index
    %c0_8 = arith.constant 0 : index
    %7 = vector.load %arg7[%c0_7, %c0_8] : memref<16x256xf32, #tpu.memory_space<vmem>>, vector<16x256xf32>
    %cst_9 = arith.constant dense<0.000000e+00> : vector<32x256xf32>
    %8 = tpu.matmul %6, %7, %cst_9 {dimension_numbers = #tpu.dot_dimension_numbers<[1], [0], [0], [1], [0, 0, 1, 1], [], []>} : vector<32x16xf32>, vector<16x256xf32>, vector<32x256xf32> -> vector<32x256xf32>
    %c0_10 = arith.constant 0 : index
    %c0_11 = arith.constant 0 : index
    %9 = vector.load %arg9[%c0_10, %c0_11] : memref<1x256xf32, #tpu.memory_space<vmem>>, vector<1x256xf32>
    %10 = vector.broadcast %9 : vector<1x256xf32> to vector<32x256xf32>
    %11 = arith.addf %8, %10 : vector<32x256xf32>
    %c0_12 = arith.constant 0 : index
    %c0_13 = arith.constant 0 : index
    %12 = vector.load %arg2[%c0_12, %c0_13] : memref<64x256xf32, #tpu.memory_space<vmem>>, vector<64x256xf32>
    %c0_14 = arith.constant 0 : index
    %c0_15 = arith.constant 0 : index
    %13 = vector.load %arg8[%c0_14, %c0_15] : memref<64x256xf32, #tpu.memory_space<vmem>>, vector<64x256xf32>
    %c0_16 = arith.constant 0 : index
    %c0_17 = arith.constant 0 : index
    %14 = vector.load %arg4[%c0_16, %c0_17] : memref<2x64xf32, #tpu.memory_space<vmem>>, vector<2x64xf32>
    %c0_18 = arith.constant 0 : index
    %c0_19 = arith.constant 0 : index
    %15 = vector.load %arg5[%c0_18, %c0_19] : memref<2x64xf32, #tpu.memory_space<vmem>>, vector<2x64xf32>
    %c0_20 = arith.constant 0 : index
    %c0_21 = arith.constant 0 : index
    %16 = vector.load %arg10[%c0_20, %c0_21] : memref<2x64xf32, #tpu.memory_space<vmem>>, vector<2x64xf32>
    %c0_22 = arith.constant 0 : index
    %c0_23 = arith.constant 0 : index
    %17 = vector.load %arg11[%c0_22, %c0_23] : memref<2x64xf32, #tpu.memory_space<vmem>>, vector<2x64xf32>
    %18 = vector.extract_strided_slice %5 {offsets = [0, 0], sizes = [2, 256], strides = [1, 1]} : vector<16x256xf32> to vector<2x256xf32>
    %cst_24 = arith.constant dense<0.000000e+00> : vector<2x256xf32>
    %19 = tpu.matmul %14, %12, %cst_24 {dimension_numbers = #tpu.dot_dimension_numbers<[1], [0], [0], [1], [0, 0, 1, 1], [], []>} : vector<2x64xf32>, vector<64x256xf32>, vector<2x256xf32> -> vector<2x256xf32>
    %20 = arith.addf %18, %19 : vector<2x256xf32>
    %21 = arith.negf %20 : vector<2x256xf32>
    %22 = math.exp %21 : vector<2x256xf32>
    %cst_25 = arith.constant 1.000000e+00 : f32
    %23 = vector.broadcast %cst_25 : f32 to vector<2x256xf32>
    %24 = arith.addf %23, %22 : vector<2x256xf32>
    %25 = arith.divf %23, %24 : vector<2x256xf32>
    %26 = vector.extract_strided_slice %25 {offsets = [0, 0], sizes = [2, 64], strides = [1, 1]} : vector<2x256xf32> to vector<2x64xf32>
    %27 = vector.extract_strided_slice %25 {offsets = [0, 64], sizes = [2, 64], strides = [1, 1]} : vector<2x256xf32> to vector<2x64xf32>
    %28 = vector.extract_strided_slice %25 {offsets = [0, 192], sizes = [2, 64], strides = [1, 1]} : vector<2x256xf32> to vector<2x64xf32>
    %29 = vector.extract_strided_slice %20 {offsets = [0, 128], sizes = [2, 64], strides = [1, 1]} : vector<2x256xf32> to vector<2x64xf32>
    %30 = math.tanh %29 : vector<2x64xf32>
    %31 = arith.mulf %27, %15 : vector<2x64xf32>
    %32 = arith.mulf %26, %30 : vector<2x64xf32>
    %33 = arith.addf %31, %32 : vector<2x64xf32>
    %34 = math.tanh %33 : vector<2x64xf32>
    %35 = arith.mulf %28, %34 : vector<2x64xf32>
    %36 = vector.extract_strided_slice %35 {offsets = [0, 0], sizes = [2, 32], strides = [1, 1]} : vector<2x64xf32> to vector<2x32xf32>
    %c0_26 = arith.constant 0 : index
    %c0_27 = arith.constant 0 : index
    %37 = vector.load %arg12[%c0_26, %c0_27] : memref<2x1536xf32, #tpu.memory_space<vmem>>, vector<2x32xf32>
    tpu.vector_store %arg12[%c0_26, %c0_27], %36 {strides = array<i32>} : memref<2x1536xf32, #tpu.memory_space<vmem>>, vector<2x32xf32>,
    %38 = vector.extract_strided_slice %35 {offsets = [0, 32], sizes = [2, 32], strides = [1, 1]} : vector<2x64xf32> to vector<2x32xf32>
    %c0_28 = arith.constant 0 : index
    %c480 = arith.constant 480 : index
    %39 = vector.load %arg12[%c0_28, %c480] : memref<2x1536xf32, #tpu.memory_space<vmem>>, vector<2x32xf32>
    tpu.vector_store %arg12[%c0_28, %c480], %38 {strides = array<i32>} : memref<2x1536xf32, #tpu.memory_space<vmem>>, vector<2x32xf32>,
    %40 = vector.extract_strided_slice %11 {offsets = [0, 0], sizes = [2, 256], strides = [1, 1]} : vector<32x256xf32> to vector<2x256xf32>
    %cst_29 = arith.constant dense<0.000000e+00> : vector<2x256xf32>
    %41 = tpu.matmul %16, %13, %cst_29 {dimension_numbers = #tpu.dot_dimension_numbers<[1], [0], [0], [1], [0, 0, 1, 1], [], []>} : vector<2x64xf32>, vector<64x256xf32>, vector<2x256xf32> -> vector<2x256xf32>
    %42 = arith.addf %40, %41 : vector<2x256xf32>
    %43 = arith.negf %42 : vector<2x256xf32>
    %44 = math.exp %43 : vector<2x256xf32>
    %cst_30 = arith.constant 1.000000e+00 : f32
    %45 = vector.broadcast %cst_30 : f32 to vector<2x256xf32>
    %46 = arith.addf %45, %44 : vector<2x256xf32>
    %47 = arith.divf %45, %46 : vector<2x256xf32>
    %48 = vector.extract_strided_slice %47 {offsets = [0, 0], sizes = [2, 64], strides = [1, 1]} : vector<2x256xf32> to vector<2x64xf32>
    %49 = vector.extract_strided_slice %47 {offsets = [0, 64], sizes = [2, 64], strides = [1, 1]} : vector<2x256xf32> to vector<2x64xf32>
    %50 = vector.extract_strided_slice %47 {offsets = [0, 192], sizes = [2, 64], strides = [1, 1]} : vector<2x256xf32> to vector<2x64xf32>
    %51 = vector.extract_strided_slice %42 {offsets = [0, 128], sizes = [2, 64], strides = [1, 1]} : vector<2x256xf32> to vector<2x64xf32>
    %52 = math.tanh %51 : vector<2x64xf32>
    %53 = arith.mulf %49, %17 : vector<2x64xf32>
    %54 = arith.mulf %48, %52 : vector<2x64xf32>
    %55 = arith.addf %53, %54 : vector<2x64xf32>
    %56 = math.tanh %55 : vector<2x64xf32>
    %57 = arith.mulf %50, %56 : vector<2x64xf32>
    %58 = vector.extract_strided_slice %57 {offsets = [0, 0], sizes = [2, 32], strides = [1, 1]} : vector<2x64xf32> to vector<2x32xf32>
    %c0_31 = arith.constant 0 : index
    %c512 = arith.constant 512 : index
    %59 = vector.load %arg12[%c0_31, %c512] : memref<2x1536xf32, #tpu.memory_space<vmem>>, vector<2x32xf32>
    tpu.vector_store %arg12[%c0_31, %c512], %58 {strides = array<i32>} : memref<2x1536xf32, #tpu.memory_space<vmem>>, vector<2x32xf32>,
    %60 = vector.extract_strided_slice %57 {offsets = [0, 32], sizes = [2, 32], strides = [1, 1]} : vector<2x64xf32> to vector<2x32xf32>
    %c0_32 = arith.constant 0 : index
    %c1504 = arith.constant 1504 : index
    %61 = vector.load %arg12[%c0_32, %c1504] : memref<2x1536xf32, #tpu.memory_space<vmem>>, vector<2x32xf32>
    tpu.vector_store %arg12[%c0_32, %c1504], %60 {strides = array<i32>} : memref<2x1536xf32, #tpu.memory_space<vmem>>, vector<2x32xf32>,
    %62 = vector.extract_strided_slice %5 {offsets = [2, 0], sizes = [2, 256], strides = [1, 1]} : vector<16x256xf32> to vector<2x256xf32>
    %cst_33 = arith.constant dense<0.000000e+00> : vector<2x256xf32>
    %63 = tpu.matmul %35, %12, %cst_33 {dimension_numbers = #tpu.dot_dimension_numbers<[1], [0], [0], [1], [0, 0, 1, 1], [], []>} : vector<2x64xf32>, vector<64x256xf32>, vector<2x256xf32> -> vector<2x256xf32>
    %64 = arith.addf %62, %63 : vector<2x256xf32>
    %65 = arith.negf %64 : vector<2x256xf32>
    %66 = math.exp %65 : vector<2x256xf32>
    %cst_34 = arith.constant 1.000000e+00 : f32
    %67 = vector.broadcast %cst_34 : f32 to vector<2x256xf32>
    %68 = arith.addf %67, %66 : vector<2x256xf32>
    %69 = arith.divf %67, %68 : vector<2x256xf32>
    %70 = vector.extract_strided_slice %69 {offsets = [0, 0], sizes = [2, 64], strides = [1, 1]} : vector<2x256xf32> to vector<2x64xf32>
    %71 = vector.extract_strided_slice %69 {offsets = [0, 64], sizes = [2, 64], strides = [1, 1]} : vector<2x256xf32> to vector<2x64xf32>
    %72 = vector.extract_strided_slice %69 {offsets = [0, 192], sizes = [2, 64], strides = [1, 1]} : vector<2x256xf32> to vector<2x64xf32>
    %73 = vector.extract_strided_slice %64 {offsets = [0, 128], sizes = [2, 64], strides = [1, 1]} : vector<2x256xf32> to vector<2x64xf32>
    %74 = math.tanh %73 : vector<2x64xf32>
    %75 = arith.mulf %71, %33 : vector<2x64xf32>
    %76 = arith.mulf %70, %74 : vector<2x64xf32>
    %77 = arith.addf %75, %76 : vector<2x64xf32>
    %78 = math.tanh %77 : vector<2x64xf32>
    %79 = arith.mulf %72, %78 : vector<2x64xf32>
    %80 = vector.extract_strided_slice %79 {offsets = [0, 0], sizes = [2, 32], strides = [1, 1]} : vector<2x64xf32> to vector<2x32xf32>
    %c0_35 = arith.constant 0 : index
    %c64 = arith.constant 64 : index
    %81 = vector.load %arg12[%c0_35, %c64] : memref<2x1536xf32, #tpu.memory_space<vmem>>, vector<2x32xf32>
    tpu.vector_store %arg12[%c0_35, %c64], %80 {strides = array<i32>} : memref<2x1536xf32, #tpu.memory_space<vmem>>, vector<2x32xf32>,
    %82 = vector.extract_strided_slice %79 {offsets = [0, 32], sizes = [2, 32], strides = [1, 1]} : vector<2x64xf32> to vector<2x32xf32>
    %c0_36 = arith.constant 0 : index
    %c416 = arith.constant 416 : index
    %83 = vector.load %arg12[%c0_36, %c416] : memref<2x1536xf32, #tpu.memory_space<vmem>>, vector<2x32xf32>
    tpu.vector_store %arg12[%c0_36, %c416], %82 {strides = array<i32>} : memref<2x1536xf32, #tpu.memory_space<vmem>>, vector<2x32xf32>,
    %84 = vector.extract_strided_slice %11 {offsets = [2, 0], sizes = [2, 256], strides = [1, 1]} : vector<32x256xf32> to vector<2x256xf32>
    %cst_37 = arith.constant dense<0.000000e+00> : vector<2x256xf32>
    %85 = tpu.matmul %57, %13, %cst_37 {dimension_numbers = #tpu.dot_dimension_numbers<[1], [0], [0], [1], [0, 0, 1, 1], [], []>} : vector<2x64xf32>, vector<64x256xf32>, vector<2x256xf32> -> vector<2x256xf32>
    %86 = arith.addf %84, %85 : vector<2x256xf32>
    %87 = arith.negf %86 : vector<2x256xf32>
    %88 = math.exp %87 : vector<2x256xf32>
    %cst_38 = arith.constant 1.000000e+00 : f32
    %89 = vector.broadcast %cst_38 : f32 to vector<2x256xf32>
    %90 = arith.addf %89, %88 : vector<2x256xf32>
    %91 = arith.divf %89, %90 : vector<2x256xf32>
    %92 = vector.extract_strided_slice %91 {offsets = [0, 0], sizes = [2, 64], strides = [1, 1]} : vector<2x256xf32> to vector<2x64xf32>
    %93 = vector.extract_strided_slice %91 {offsets = [0, 64], sizes = [2, 64], strides = [1, 1]} : vector<2x256xf32> to vector<2x64xf32>
    %94 = vector.extract_strided_slice %91 {offsets = [0, 192], sizes = [2, 64], strides = [1, 1]} : vector<2x256xf32> to vector<2x64xf32>
    %95 = vector.extract_strided_slice %86 {offsets = [0, 128], sizes = [2, 64], strides = [1, 1]} : vector<2x256xf32> to vector<2x64xf32>
    %96 = math.tanh %95 : vector<2x64xf32>
    %97 = arith.mulf %93, %55 : vector<2x64xf32>
    %98 = arith.mulf %92, %96 : vector<2x64xf32>
    %99 = arith.addf %97, %98 : vector<2x64xf32>
    %100 = math.tanh %99 : vector<2x64xf32>
    %101 = arith.mulf %94, %100 : vector<2x64xf32>
    %102 = vector.extract_strided_slice %101 {offsets = [0, 0], sizes = [2, 32], strides = [1, 1]} : vector<2x64xf32> to vector<2x32xf32>
    %c0_39 = arith.constant 0 : index
    %c576 = arith.constant 576 : index
    %103 = vector.load %arg12[%c0_39, %c576] : memref<2x1536xf32, #tpu.memory_space<vmem>>, vector<2x32xf32>
    tpu.vector_store %arg12[%c0_39, %c576], %102 {strides = array<i32>} : memref<2x1536xf32, #tpu.memory_space<vmem>>, vector<2x32xf32>,
    %104 = vector.extract_strided_slice %101 {offsets = [0, 32], sizes = [2, 32], strides = [1, 1]} : vector<2x64xf32> to vector<2x32xf32>
    %c0_40 = arith.constant 0 : index
    %c1440 = arith.constant 1440 : index
    %105 = vector.load %arg12[%c0_40, %c1440] : memref<2x1536xf32, #tpu.memory_space<vmem>>, vector<2x32xf32>
    tpu.vector_store %arg12[%c0_40, %c1440], %104 {strides = array<i32>} : memref<2x1536xf32, #tpu.memory_space<vmem>>, vector<2x32xf32>,
    %106 = vector.extract_strided_slice %5 {offsets = [4, 0], sizes = [2, 256], strides = [1, 1]} : vector<16x256xf32> to vector<2x256xf32>
    %cst_41 = arith.constant dense<0.000000e+00> : vector<2x256xf32>
    %107 = tpu.matmul %79, %12, %cst_41 {dimension_numbers = #tpu.dot_dimension_numbers<[1], [0], [0], [1], [0, 0, 1, 1], [], []>} : vector<2x64xf32>, vector<64x256xf32>, vector<2x256xf32> -> vector<2x256xf32>
    %108 = arith.addf %106, %107 : vector<2x256xf32>
    %109 = arith.negf %108 : vector<2x256xf32>
    %110 = math.exp %109 : vector<2x256xf32>
    %cst_42 = arith.constant 1.000000e+00 : f32
    %111 = vector.broadcast %cst_42 : f32 to vector<2x256xf32>
    %112 = arith.addf %111, %110 : vector<2x256xf32>
    %113 = arith.divf %111, %112 : vector<2x256xf32>
    %114 = vector.extract_strided_slice %113 {offsets = [0, 0], sizes = [2, 64], strides = [1, 1]} : vector<2x256xf32> to vector<2x64xf32>
    %115 = vector.extract_strided_slice %113 {offsets = [0, 64], sizes = [2, 64], strides = [1, 1]} : vector<2x256xf32> to vector<2x64xf32>
    %116 = vector.extract_strided_slice %113 {offsets = [0, 192], sizes = [2, 64], strides = [1, 1]} : vector<2x256xf32> to vector<2x64xf32>
    %117 = vector.extract_strided_slice %108 {offsets = [0, 128], sizes = [2, 64], strides = [1, 1]} : vector<2x256xf32> to vector<2x64xf32>
    %118 = math.tanh %117 : vector<2x64xf32>
    %119 = arith.mulf %115, %77 : vector<2x64xf32>
    %120 = arith.mulf %114, %118 : vector<2x64xf32>
    %121 = arith.addf %119, %120 : vector<2x64xf32>
    %122 = math.tanh %121 : vector<2x64xf32>
    %123 = arith.mulf %116, %122 : vector<2x64xf32>
    %124 = vector.extract_strided_slice %123 {offsets = [0, 0], sizes = [2, 32], strides = [1, 1]} : vector<2x64xf32> to vector<2x32xf32>
    %c0_43 = arith.constant 0 : index
    %c128 = arith.constant 128 : index
    %125 = vector.load %arg12[%c0_43, %c128] : memref<2x1536xf32, #tpu.memory_space<vmem>>, vector<2x32xf32>
    tpu.vector_store %arg12[%c0_43, %c128], %124 {strides = array<i32>} : memref<2x1536xf32, #tpu.memory_space<vmem>>, vector<2x32xf32>,
    %126 = vector.extract_strided_slice %123 {offsets = [0, 32], sizes = [2, 32], strides = [1, 1]} : vector<2x64xf32> to vector<2x32xf32>
    %c0_44 = arith.constant 0 : index
    %c352 = arith.constant 352 : index
    %127 = vector.load %arg12[%c0_44, %c352] : memref<2x1536xf32, #tpu.memory_space<vmem>>, vector<2x32xf32>
    tpu.vector_store %arg12[%c0_44, %c352], %126 {strides = array<i32>} : memref<2x1536xf32, #tpu.memory_space<vmem>>, vector<2x32xf32>,
    %128 = vector.extract_strided_slice %11 {offsets = [4, 0], sizes = [2, 256], strides = [1, 1]} : vector<32x256xf32> to vector<2x256xf32>
    %cst_45 = arith.constant dense<0.000000e+00> : vector<2x256xf32>
    %129 = tpu.matmul %101, %13, %cst_45 {dimension_numbers = #tpu.dot_dimension_numbers<[1], [0], [0], [1], [0, 0, 1, 1], [], []>} : vector<2x64xf32>, vector<64x256xf32>, vector<2x256xf32> -> vector<2x256xf32>
    %130 = arith.addf %128, %129 : vector<2x256xf32>
    %131 = arith.negf %130 : vector<2x256xf32>
    %132 = math.exp %131 : vector<2x256xf32>
    %cst_46 = arith.constant 1.000000e+00 : f32
    %133 = vector.broadcast %cst_46 : f32 to vector<2x256xf32>
    %134 = arith.addf %133, %132 : vector<2x256xf32>
    %135 = arith.divf %133, %134 : vector<2x256xf32>
    %136 = vector.extract_strided_slice %135 {offsets = [0, 0], sizes = [2, 64], strides = [1, 1]} : vector<2x256xf32> to vector<2x64xf32>
    %137 = vector.extract_strided_slice %135 {offsets = [0, 64], sizes = [2, 64], strides = [1, 1]} : vector<2x256xf32> to vector<2x64xf32>
    %138 = vector.extract_strided_slice %135 {offsets = [0, 192], sizes = [2, 64], strides = [1, 1]} : vector<2x256xf32> to vector<2x64xf32>
    %139 = vector.extract_strided_slice %130 {offsets = [0, 128], sizes = [2, 64], strides = [1, 1]} : vector<2x256xf32> to vector<2x64xf32>
    %140 = math.tanh %139 : vector<2x64xf32>
    %141 = arith.mulf %137, %99 : vector<2x64xf32>
    %142 = arith.mulf %136, %140 : vector<2x64xf32>
    %143 = arith.addf %141, %142 : vector<2x64xf32>
    %144 = math.tanh %143 : vector<2x64xf32>
    %145 = arith.mulf %138, %144 : vector<2x64xf32>
    %146 = vector.extract_strided_slice %145 {offsets = [0, 0], sizes = [2, 32], strides = [1, 1]} : vector<2x64xf32> to vector<2x32xf32>
    %c0_47 = arith.constant 0 : index
    %c640 = arith.constant 640 : index
    %147 = vector.load %arg12[%c0_47, %c640] : memref<2x1536xf32, #tpu.memory_space<vmem>>, vector<2x32xf32>
    tpu.vector_store %arg12[%c0_47, %c640], %146 {strides = array<i32>} : memref<2x1536xf32, #tpu.memory_space<vmem>>, vector<2x32xf32>,
    %148 = vector.extract_strided_slice %145 {offsets = [0, 32], sizes = [2, 32], strides = [1, 1]} : vector<2x64xf32> to vector<2x32xf32>
    %c0_48 = arith.constant 0 : index
    %c1376 = arith.constant 1376 : index
    %149 = vector.load %arg12[%c0_48, %c1376] : memref<2x1536xf32, #tpu.memory_space<vmem>>, vector<2x32xf32>
    tpu.vector_store %arg12[%c0_48, %c1376], %148 {strides = array<i32>} : memref<2x1536xf32, #tpu.memory_space<vmem>>, vector<2x32xf32>,
    %150 = vector.extract_strided_slice %5 {offsets = [6, 0], sizes = [2, 256], strides = [1, 1]} : vector<16x256xf32> to vector<2x256xf32>
    %cst_49 = arith.constant dense<0.000000e+00> : vector<2x256xf32>
    %151 = tpu.matmul %123, %12, %cst_49 {dimension_numbers = #tpu.dot_dimension_numbers<[1], [0], [0], [1], [0, 0, 1, 1], [], []>} : vector<2x64xf32>, vector<64x256xf32>, vector<2x256xf32> -> vector<2x256xf32>
    %152 = arith.addf %150, %151 : vector<2x256xf32>
    %153 = arith.negf %152 : vector<2x256xf32>
    %154 = math.exp %153 : vector<2x256xf32>
    %cst_50 = arith.constant 1.000000e+00 : f32
    %155 = vector.broadcast %cst_50 : f32 to vector<2x256xf32>
    %156 = arith.addf %155, %154 : vector<2x256xf32>
    %157 = arith.divf %155, %156 : vector<2x256xf32>
    %158 = vector.extract_strided_slice %157 {offsets = [0, 0], sizes = [2, 64], strides = [1, 1]} : vector<2x256xf32> to vector<2x64xf32>
    %159 = vector.extract_strided_slice %157 {offsets = [0, 64], sizes = [2, 64], strides = [1, 1]} : vector<2x256xf32> to vector<2x64xf32>
    %160 = vector.extract_strided_slice %157 {offsets = [0, 192], sizes = [2, 64], strides = [1, 1]} : vector<2x256xf32> to vector<2x64xf32>
    %161 = vector.extract_strided_slice %152 {offsets = [0, 128], sizes = [2, 64], strides = [1, 1]} : vector<2x256xf32> to vector<2x64xf32>
    %162 = math.tanh %161 : vector<2x64xf32>
    %163 = arith.mulf %159, %121 : vector<2x64xf32>
    %164 = arith.mulf %158, %162 : vector<2x64xf32>
    %165 = arith.addf %163, %164 : vector<2x64xf32>
    %166 = math.tanh %165 : vector<2x64xf32>
    %167 = arith.mulf %160, %166 : vector<2x64xf32>
    %168 = vector.extract_strided_slice %167 {offsets = [0, 0], sizes = [2, 32], strides = [1, 1]} : vector<2x64xf32> to vector<2x32xf32>
    %c0_51 = arith.constant 0 : index
    %c192 = arith.constant 192 : index
    %169 = vector.load %arg12[%c0_51, %c192] : memref<2x1536xf32, #tpu.memory_space<vmem>>, vector<2x32xf32>
    tpu.vector_store %arg12[%c0_51, %c192], %168 {strides = array<i32>} : memref<2x1536xf32, #tpu.memory_space<vmem>>, vector<2x32xf32>,
    %170 = vector.extract_strided_slice %167 {offsets = [0, 32], sizes = [2, 32], strides = [1, 1]} : vector<2x64xf32> to vector<2x32xf32>
    %c0_52 = arith.constant 0 : index
    %c288 = arith.constant 288 : index
    %171 = vector.load %arg12[%c0_52, %c288] : memref<2x1536xf32, #tpu.memory_space<vmem>>, vector<2x32xf32>
    tpu.vector_store %arg12[%c0_52, %c288], %170 {strides = array<i32>} : memref<2x1536xf32, #tpu.memory_space<vmem>>, vector<2x32xf32>,
    %172 = vector.extract_strided_slice %11 {offsets = [6, 0], sizes = [2, 256], strides = [1, 1]} : vector<32x256xf32> to vector<2x256xf32>
    %cst_53 = arith.constant dense<0.000000e+00> : vector<2x256xf32>
    %173 = tpu.matmul %145, %13, %cst_53 {dimension_numbers = #tpu.dot_dimension_numbers<[1], [0], [0], [1], [0, 0, 1, 1], [], []>} : vector<2x64xf32>, vector<64x256xf32>, vector<2x256xf32> -> vector<2x256xf32>
    %174 = arith.addf %172, %173 : vector<2x256xf32>
    %175 = arith.negf %174 : vector<2x256xf32>
    %176 = math.exp %175 : vector<2x256xf32>
    %cst_54 = arith.constant 1.000000e+00 : f32
    %177 = vector.broadcast %cst_54 : f32 to vector<2x256xf32>
    %178 = arith.addf %177, %176 : vector<2x256xf32>
    %179 = arith.divf %177, %178 : vector<2x256xf32>
    %180 = vector.extract_strided_slice %179 {offsets = [0, 0], sizes = [2, 64], strides = [1, 1]} : vector<2x256xf32> to vector<2x64xf32>
    %181 = vector.extract_strided_slice %179 {offsets = [0, 64], sizes = [2, 64], strides = [1, 1]} : vector<2x256xf32> to vector<2x64xf32>
    %182 = vector.extract_strided_slice %179 {offsets = [0, 192], sizes = [2, 64], strides = [1, 1]} : vector<2x256xf32> to vector<2x64xf32>
    %183 = vector.extract_strided_slice %174 {offsets = [0, 128], sizes = [2, 64], strides = [1, 1]} : vector<2x256xf32> to vector<2x64xf32>
    %184 = math.tanh %183 : vector<2x64xf32>
    %185 = arith.mulf %181, %143 : vector<2x64xf32>
    %186 = arith.mulf %180, %184 : vector<2x64xf32>
    %187 = arith.addf %185, %186 : vector<2x64xf32>
    %188 = math.tanh %187 : vector<2x64xf32>
    %189 = arith.mulf %182, %188 : vector<2x64xf32>
    %190 = vector.extract_strided_slice %189 {offsets = [0, 0], sizes = [2, 32], strides = [1, 1]} : vector<2x64xf32> to vector<2x32xf32>
    %c0_55 = arith.constant 0 : index
    %c704 = arith.constant 704 : index
    %191 = vector.load %arg12[%c0_55, %c704] : memref<2x1536xf32, #tpu.memory_space<vmem>>, vector<2x32xf32>
    tpu.vector_store %arg12[%c0_55, %c704], %190 {strides = array<i32>} : memref<2x1536xf32, #tpu.memory_space<vmem>>, vector<2x32xf32>,
    %192 = vector.extract_strided_slice %189 {offsets = [0, 32], sizes = [2, 32], strides = [1, 1]} : vector<2x64xf32> to vector<2x32xf32>
    %c0_56 = arith.constant 0 : index
    %c1312 = arith.constant 1312 : index
    %193 = vector.load %arg12[%c0_56, %c1312] : memref<2x1536xf32, #tpu.memory_space<vmem>>, vector<2x32xf32>
    tpu.vector_store %arg12[%c0_56, %c1312], %192 {strides = array<i32>} : memref<2x1536xf32, #tpu.memory_space<vmem>>, vector<2x32xf32>,
    %194 = vector.extract_strided_slice %5 {offsets = [8, 0], sizes = [2, 256], strides = [1, 1]} : vector<16x256xf32> to vector<2x256xf32>
    %cst_57 = arith.constant dense<0.000000e+00> : vector<2x256xf32>
    %195 = tpu.matmul %167, %12, %cst_57 {dimension_numbers = #tpu.dot_dimension_numbers<[1], [0], [0], [1], [0, 0, 1, 1], [], []>} : vector<2x64xf32>, vector<64x256xf32>, vector<2x256xf32> -> vector<2x256xf32>
    %196 = arith.addf %194, %195 : vector<2x256xf32>
    %197 = arith.negf %196 : vector<2x256xf32>
    %198 = math.exp %197 : vector<2x256xf32>
    %cst_58 = arith.constant 1.000000e+00 : f32
    %199 = vector.broadcast %cst_58 : f32 to vector<2x256xf32>
    %200 = arith.addf %199, %198 : vector<2x256xf32>
    %201 = arith.divf %199, %200 : vector<2x256xf32>
    %202 = vector.extract_strided_slice %201 {offsets = [0, 0], sizes = [2, 64], strides = [1, 1]} : vector<2x256xf32> to vector<2x64xf32>
    %203 = vector.extract_strided_slice %201 {offsets = [0, 64], sizes = [2, 64], strides = [1, 1]} : vector<2x256xf32> to vector<2x64xf32>
    %204 = vector.extract_strided_slice %201 {offsets = [0, 192], sizes = [2, 64], strides = [1, 1]} : vector<2x256xf32> to vector<2x64xf32>
    %205 = vector.extract_strided_slice %196 {offsets = [0, 128], sizes = [2, 64], strides = [1, 1]} : vector<2x256xf32> to vector<2x64xf32>
    %206 = math.tanh %205 : vector<2x64xf32>
    %207 = arith.mulf %203, %165 : vector<2x64xf32>
    %208 = arith.mulf %202, %206 : vector<2x64xf32>
    %209 = arith.addf %207, %208 : vector<2x64xf32>
    %210 = math.tanh %209 : vector<2x64xf32>
    %211 = arith.mulf %204, %210 : vector<2x64xf32>
    %212 = vector.extract_strided_slice %211 {offsets = [0, 0], sizes = [2, 32], strides = [1, 1]} : vector<2x64xf32> to vector<2x32xf32>
    %c0_59 = arith.constant 0 : index
    %c256 = arith.constant 256 : index
    %213 = vector.load %arg12[%c0_59, %c256] : memref<2x1536xf32, #tpu.memory_space<vmem>>, vector<2x32xf32>
    tpu.vector_store %arg12[%c0_59, %c256], %212 {strides = array<i32>} : memref<2x1536xf32, #tpu.memory_space<vmem>>, vector<2x32xf32>,
    %214 = vector.extract_strided_slice %211 {offsets = [0, 32], sizes = [2, 32], strides = [1, 1]} : vector<2x64xf32> to vector<2x32xf32>
    %c0_60 = arith.constant 0 : index
    %c224 = arith.constant 224 : index
    %215 = vector.load %arg12[%c0_60, %c224] : memref<2x1536xf32, #tpu.memory_space<vmem>>, vector<2x32xf32>
    tpu.vector_store %arg12[%c0_60, %c224], %214 {strides = array<i32>} : memref<2x1536xf32, #tpu.memory_space<vmem>>, vector<2x32xf32>,
    %216 = vector.extract_strided_slice %11 {offsets = [8, 0], sizes = [2, 256], strides = [1, 1]} : vector<32x256xf32> to vector<2x256xf32>
    %cst_61 = arith.constant dense<0.000000e+00> : vector<2x256xf32>
    %217 = tpu.matmul %189, %13, %cst_61 {dimension_numbers = #tpu.dot_dimension_numbers<[1], [0], [0], [1], [0, 0, 1, 1], [], []>} : vector<2x64xf32>, vector<64x256xf32>, vector<2x256xf32> -> vector<2x256xf32>
    %218 = arith.addf %216, %217 : vector<2x256xf32>
    %219 = arith.negf %218 : vector<2x256xf32>
    %220 = math.exp %219 : vector<2x256xf32>
    %cst_62 = arith.constant 1.000000e+00 : f32
    %221 = vector.broadcast %cst_62 : f32 to vector<2x256xf32>
    %222 = arith.addf %221, %220 : vector<2x256xf32>
    %223 = arith.divf %221, %222 : vector<2x256xf32>
    %224 = vector.extract_strided_slice %223 {offsets = [0, 0], sizes = [2, 64], strides = [1, 1]} : vector<2x256xf32> to vector<2x64xf32>
    %225 = vector.extract_strided_slice %223 {offsets = [0, 64], sizes = [2, 64], strides = [1, 1]} : vector<2x256xf32> to vector<2x64xf32>
    %226 = vector.extract_strided_slice %223 {offsets = [0, 192], sizes = [2, 64], strides = [1, 1]} : vector<2x256xf32> to vector<2x64xf32>
    %227 = vector.extract_strided_slice %218 {offsets = [0, 128], sizes = [2, 64], strides = [1, 1]} : vector<2x256xf32> to vector<2x64xf32>
    %228 = math.tanh %227 : vector<2x64xf32>
    %229 = arith.mulf %225, %187 : vector<2x64xf32>
    %230 = arith.mulf %224, %228 : vector<2x64xf32>
    %231 = arith.addf %229, %230 : vector<2x64xf32>
    %232 = math.tanh %231 : vector<2x64xf32>
    %233 = arith.mulf %226, %232 : vector<2x64xf32>
    %234 = vector.extract_strided_slice %233 {offsets = [0, 0], sizes = [2, 32], strides = [1, 1]} : vector<2x64xf32> to vector<2x32xf32>
    %c0_63 = arith.constant 0 : index
    %c768 = arith.constant 768 : index
    %235 = vector.load %arg12[%c0_63, %c768] : memref<2x1536xf32, #tpu.memory_space<vmem>>, vector<2x32xf32>
    tpu.vector_store %arg12[%c0_63, %c768], %234 {strides = array<i32>} : memref<2x1536xf32, #tpu.memory_space<vmem>>, vector<2x32xf32>,
    %236 = vector.extract_strided_slice %233 {offsets = [0, 32], sizes = [2, 32], strides = [1, 1]} : vector<2x64xf32> to vector<2x32xf32>
    %c0_64 = arith.constant 0 : index
    %c1248 = arith.constant 1248 : index
    %237 = vector.load %arg12[%c0_64, %c1248] : memref<2x1536xf32, #tpu.memory_space<vmem>>, vector<2x32xf32>
    tpu.vector_store %arg12[%c0_64, %c1248], %236 {strides = array<i32>} : memref<2x1536xf32, #tpu.memory_space<vmem>>, vector<2x32xf32>,
    %238 = vector.extract_strided_slice %5 {offsets = [10, 0], sizes = [2, 256], strides = [1, 1]} : vector<16x256xf32> to vector<2x256xf32>
    %cst_65 = arith.constant dense<0.000000e+00> : vector<2x256xf32>
    %239 = tpu.matmul %211, %12, %cst_65 {dimension_numbers = #tpu.dot_dimension_numbers<[1], [0], [0], [1], [0, 0, 1, 1], [], []>} : vector<2x64xf32>, vector<64x256xf32>, vector<2x256xf32> -> vector<2x256xf32>
    %240 = arith.addf %238, %239 : vector<2x256xf32>
    %241 = arith.negf %240 : vector<2x256xf32>
    %242 = math.exp %241 : vector<2x256xf32>
    %cst_66 = arith.constant 1.000000e+00 : f32
    %243 = vector.broadcast %cst_66 : f32 to vector<2x256xf32>
    %244 = arith.addf %243, %242 : vector<2x256xf32>
    %245 = arith.divf %243, %244 : vector<2x256xf32>
    %246 = vector.extract_strided_slice %245 {offsets = [0, 0], sizes = [2, 64], strides = [1, 1]} : vector<2x256xf32> to vector<2x64xf32>
    %247 = vector.extract_strided_slice %245 {offsets = [0, 64], sizes = [2, 64], strides = [1, 1]} : vector<2x256xf32> to vector<2x64xf32>
    %248 = vector.extract_strided_slice %245 {offsets = [0, 192], sizes = [2, 64], strides = [1, 1]} : vector<2x256xf32> to vector<2x64xf32>
    %249 = vector.extract_strided_slice %240 {offsets = [0, 128], sizes = [2, 64], strides = [1, 1]} : vector<2x256xf32> to vector<2x64xf32>
    %250 = math.tanh %249 : vector<2x64xf32>
    %251 = arith.mulf %247, %209 : vector<2x64xf32>
    %252 = arith.mulf %246, %250 : vector<2x64xf32>
    %253 = arith.addf %251, %252 : vector<2x64xf32>
    %254 = math.tanh %253 : vector<2x64xf32>
    %255 = arith.mulf %248, %254 : vector<2x64xf32>
    %256 = vector.extract_strided_slice %255 {offsets = [0, 0], sizes = [2, 32], strides = [1, 1]} : vector<2x64xf32> to vector<2x32xf32>
    %c0_67 = arith.constant 0 : index
    %c320 = arith.constant 320 : index
    %257 = vector.load %arg12[%c0_67, %c320] : memref<2x1536xf32, #tpu.memory_space<vmem>>, vector<2x32xf32>
    tpu.vector_store %arg12[%c0_67, %c320], %256 {strides = array<i32>} : memref<2x1536xf32, #tpu.memory_space<vmem>>, vector<2x32xf32>,
    %258 = vector.extract_strided_slice %255 {offsets = [0, 32], sizes = [2, 32], strides = [1, 1]} : vector<2x64xf32> to vector<2x32xf32>
    %c0_68 = arith.constant 0 : index
    %c160 = arith.constant 160 : index
    %259 = vector.load %arg12[%c0_68, %c160] : memref<2x1536xf32, #tpu.memory_space<vmem>>, vector<2x32xf32>
    tpu.vector_store %arg12[%c0_68, %c160], %258 {strides = array<i32>} : memref<2x1536xf32, #tpu.memory_space<vmem>>, vector<2x32xf32>,
    %260 = vector.extract_strided_slice %11 {offsets = [10, 0], sizes = [2, 256], strides = [1, 1]} : vector<32x256xf32> to vector<2x256xf32>
    %cst_69 = arith.constant dense<0.000000e+00> : vector<2x256xf32>
    %261 = tpu.matmul %233, %13, %cst_69 {dimension_numbers = #tpu.dot_dimension_numbers<[1], [0], [0], [1], [0, 0, 1, 1], [], []>} : vector<2x64xf32>, vector<64x256xf32>, vector<2x256xf32> -> vector<2x256xf32>
    %262 = arith.addf %260, %261 : vector<2x256xf32>
    %263 = arith.negf %262 : vector<2x256xf32>
    %264 = math.exp %263 : vector<2x256xf32>
    %cst_70 = arith.constant 1.000000e+00 : f32
    %265 = vector.broadcast %cst_70 : f32 to vector<2x256xf32>
    %266 = arith.addf %265, %264 : vector<2x256xf32>
    %267 = arith.divf %265, %266 : vector<2x256xf32>
    %268 = vector.extract_strided_slice %267 {offsets = [0, 0], sizes = [2, 64], strides = [1, 1]} : vector<2x256xf32> to vector<2x64xf32>
    %269 = vector.extract_strided_slice %267 {offsets = [0, 64], sizes = [2, 64], strides = [1, 1]} : vector<2x256xf32> to vector<2x64xf32>
    %270 = vector.extract_strided_slice %267 {offsets = [0, 192], sizes = [2, 64], strides = [1, 1]} : vector<2x256xf32> to vector<2x64xf32>
    %271 = vector.extract_strided_slice %262 {offsets = [0, 128], sizes = [2, 64], strides = [1, 1]} : vector<2x256xf32> to vector<2x64xf32>
    %272 = math.tanh %271 : vector<2x64xf32>
    %273 = arith.mulf %269, %231 : vector<2x64xf32>
    %274 = arith.mulf %268, %272 : vector<2x64xf32>
    %275 = arith.addf %273, %274 : vector<2x64xf32>
    %276 = math.tanh %275 : vector<2x64xf32>
    %277 = arith.mulf %270, %276 : vector<2x64xf32>
    %278 = vector.extract_strided_slice %277 {offsets = [0, 0], sizes = [2, 32], strides = [1, 1]} : vector<2x64xf32> to vector<2x32xf32>
    %c0_71 = arith.constant 0 : index
    %c832 = arith.constant 832 : index
    %279 = vector.load %arg12[%c0_71, %c832] : memref<2x1536xf32, #tpu.memory_space<vmem>>, vector<2x32xf32>
    tpu.vector_store %arg12[%c0_71, %c832], %278 {strides = array<i32>} : memref<2x1536xf32, #tpu.memory_space<vmem>>, vector<2x32xf32>,
    %280 = vector.extract_strided_slice %277 {offsets = [0, 32], sizes = [2, 32], strides = [1, 1]} : vector<2x64xf32> to vector<2x32xf32>
    %c0_72 = arith.constant 0 : index
    %c1184 = arith.constant 1184 : index
    %281 = vector.load %arg12[%c0_72, %c1184] : memref<2x1536xf32, #tpu.memory_space<vmem>>, vector<2x32xf32>
    tpu.vector_store %arg12[%c0_72, %c1184], %280 {strides = array<i32>} : memref<2x1536xf32, #tpu.memory_space<vmem>>, vector<2x32xf32>,
    %282 = vector.extract_strided_slice %5 {offsets = [12, 0], sizes = [2, 256], strides = [1, 1]} : vector<16x256xf32> to vector<2x256xf32>
    %cst_73 = arith.constant dense<0.000000e+00> : vector<2x256xf32>
    %283 = tpu.matmul %255, %12, %cst_73 {dimension_numbers = #tpu.dot_dimension_numbers<[1], [0], [0], [1], [0, 0, 1, 1], [], []>} : vector<2x64xf32>, vector<64x256xf32>, vector<2x256xf32> -> vector<2x256xf32>
    %284 = arith.addf %282, %283 : vector<2x256xf32>
    %285 = arith.negf %284 : vector<2x256xf32>
    %286 = math.exp %285 : vector<2x256xf32>
    %cst_74 = arith.constant 1.000000e+00 : f32
    %287 = vector.broadcast %cst_74 : f32 to vector<2x256xf32>
    %288 = arith.addf %287, %286 : vector<2x256xf32>
    %289 = arith.divf %287, %288 : vector<2x256xf32>
    %290 = vector.extract_strided_slice %289 {offsets = [0, 0], sizes = [2, 64], strides = [1, 1]} : vector<2x256xf32> to vector<2x64xf32>
    %291 = vector.extract_strided_slice %289 {offsets = [0, 64], sizes = [2, 64], strides = [1, 1]} : vector<2x256xf32> to vector<2x64xf32>
    %292 = vector.extract_strided_slice %289 {offsets = [0, 192], sizes = [2, 64], strides = [1, 1]} : vector<2x256xf32> to vector<2x64xf32>
    %293 = vector.extract_strided_slice %284 {offsets = [0, 128], sizes = [2, 64], strides = [1, 1]} : vector<2x256xf32> to vector<2x64xf32>
    %294 = math.tanh %293 : vector<2x64xf32>
    %295 = arith.mulf %291, %253 : vector<2x64xf32>
    %296 = arith.mulf %290, %294 : vector<2x64xf32>
    %297 = arith.addf %295, %296 : vector<2x64xf32>
    %298 = math.tanh %297 : vector<2x64xf32>
    %299 = arith.mulf %292, %298 : vector<2x64xf32>
    %300 = vector.extract_strided_slice %299 {offsets = [0, 0], sizes = [2, 32], strides = [1, 1]} : vector<2x64xf32> to vector<2x32xf32>
    %c0_75 = arith.constant 0 : index
    %c384 = arith.constant 384 : index
    %301 = vector.load %arg12[%c0_75, %c384] : memref<2x1536xf32, #tpu.memory_space<vmem>>, vector<2x32xf32>
    tpu.vector_store %arg12[%c0_75, %c384], %300 {strides = array<i32>} : memref<2x1536xf32, #tpu.memory_space<vmem>>, vector<2x32xf32>,
    %302 = vector.extract_strided_slice %299 {offsets = [0, 32], sizes = [2, 32], strides = [1, 1]} : vector<2x64xf32> to vector<2x32xf32>
    %c0_76 = arith.constant 0 : index
    %c96 = arith.constant 96 : index
    %303 = vector.load %arg12[%c0_76, %c96] : memref<2x1536xf32, #tpu.memory_space<vmem>>, vector<2x32xf32>
    tpu.vector_store %arg12[%c0_76, %c96], %302 {strides = array<i32>} : memref<2x1536xf32, #tpu.memory_space<vmem>>, vector<2x32xf32>,
    %304 = vector.extract_strided_slice %11 {offsets = [12, 0], sizes = [2, 256], strides = [1, 1]} : vector<32x256xf32> to vector<2x256xf32>
    %cst_77 = arith.constant dense<0.000000e+00> : vector<2x256xf32>
    %305 = tpu.matmul %277, %13, %cst_77 {dimension_numbers = #tpu.dot_dimension_numbers<[1], [0], [0], [1], [0, 0, 1, 1], [], []>} : vector<2x64xf32>, vector<64x256xf32>, vector<2x256xf32> -> vector<2x256xf32>
    %306 = arith.addf %304, %305 : vector<2x256xf32>
    %307 = arith.negf %306 : vector<2x256xf32>
    %308 = math.exp %307 : vector<2x256xf32>
    %cst_78 = arith.constant 1.000000e+00 : f32
    %309 = vector.broadcast %cst_78 : f32 to vector<2x256xf32>
    %310 = arith.addf %309, %308 : vector<2x256xf32>
    %311 = arith.divf %309, %310 : vector<2x256xf32>
    %312 = vector.extract_strided_slice %311 {offsets = [0, 0], sizes = [2, 64], strides = [1, 1]} : vector<2x256xf32> to vector<2x64xf32>
    %313 = vector.extract_strided_slice %311 {offsets = [0, 64], sizes = [2, 64], strides = [1, 1]} : vector<2x256xf32> to vector<2x64xf32>
    %314 = vector.extract_strided_slice %311 {offsets = [0, 192], sizes = [2, 64], strides = [1, 1]} : vector<2x256xf32> to vector<2x64xf32>
    %315 = vector.extract_strided_slice %306 {offsets = [0, 128], sizes = [2, 64], strides = [1, 1]} : vector<2x256xf32> to vector<2x64xf32>
    %316 = math.tanh %315 : vector<2x64xf32>
    %317 = arith.mulf %313, %275 : vector<2x64xf32>
    %318 = arith.mulf %312, %316 : vector<2x64xf32>
    %319 = arith.addf %317, %318 : vector<2x64xf32>
    %320 = math.tanh %319 : vector<2x64xf32>
    %321 = arith.mulf %314, %320 : vector<2x64xf32>
    %322 = vector.extract_strided_slice %321 {offsets = [0, 0], sizes = [2, 32], strides = [1, 1]} : vector<2x64xf32> to vector<2x32xf32>
    %c0_79 = arith.constant 0 : index
    %c896 = arith.constant 896 : index
    %323 = vector.load %arg12[%c0_79, %c896] : memref<2x1536xf32, #tpu.memory_space<vmem>>, vector<2x32xf32>
    tpu.vector_store %arg12[%c0_79, %c896], %322 {strides = array<i32>} : memref<2x1536xf32, #tpu.memory_space<vmem>>, vector<2x32xf32>,
    %324 = vector.extract_strided_slice %321 {offsets = [0, 32], sizes = [2, 32], strides = [1, 1]} : vector<2x64xf32> to vector<2x32xf32>
    %c0_80 = arith.constant 0 : index
    %c1120 = arith.constant 1120 : index
    %325 = vector.load %arg12[%c0_80, %c1120] : memref<2x1536xf32, #tpu.memory_space<vmem>>, vector<2x32xf32>
    tpu.vector_store %arg12[%c0_80, %c1120], %324 {strides = array<i32>} : memref<2x1536xf32, #tpu.memory_space<vmem>>, vector<2x32xf32>,
    %326 = vector.extract_strided_slice %5 {offsets = [14, 0], sizes = [2, 256], strides = [1, 1]} : vector<16x256xf32> to vector<2x256xf32>
    %cst_81 = arith.constant dense<0.000000e+00> : vector<2x256xf32>
    %327 = tpu.matmul %299, %12, %cst_81 {dimension_numbers = #tpu.dot_dimension_numbers<[1], [0], [0], [1], [0, 0, 1, 1], [], []>} : vector<2x64xf32>, vector<64x256xf32>, vector<2x256xf32> -> vector<2x256xf32>
    %328 = arith.addf %326, %327 : vector<2x256xf32>
    %329 = arith.negf %328 : vector<2x256xf32>
    %330 = math.exp %329 : vector<2x256xf32>
    %cst_82 = arith.constant 1.000000e+00 : f32
    %331 = vector.broadcast %cst_82 : f32 to vector<2x256xf32>
    %332 = arith.addf %331, %330 : vector<2x256xf32>
    %333 = arith.divf %331, %332 : vector<2x256xf32>
    %334 = vector.extract_strided_slice %333 {offsets = [0, 0], sizes = [2, 64], strides = [1, 1]} : vector<2x256xf32> to vector<2x64xf32>
    %335 = vector.extract_strided_slice %333 {offsets = [0, 64], sizes = [2, 64], strides = [1, 1]} : vector<2x256xf32> to vector<2x64xf32>
    %336 = vector.extract_strided_slice %333 {offsets = [0, 192], sizes = [2, 64], strides = [1, 1]} : vector<2x256xf32> to vector<2x64xf32>
    %337 = vector.extract_strided_slice %328 {offsets = [0, 128], sizes = [2, 64], strides = [1, 1]} : vector<2x256xf32> to vector<2x64xf32>
    %338 = math.tanh %337 : vector<2x64xf32>
    %339 = arith.mulf %335, %297 : vector<2x64xf32>
    %340 = arith.mulf %334, %338 : vector<2x64xf32>
    %341 = arith.addf %339, %340 : vector<2x64xf32>
    %342 = math.tanh %341 : vector<2x64xf32>
    %343 = arith.mulf %336, %342 : vector<2x64xf32>
    %344 = vector.extract_strided_slice %343 {offsets = [0, 0], sizes = [2, 32], strides = [1, 1]} : vector<2x64xf32> to vector<2x32xf32>
    %c0_83 = arith.constant 0 : index
    %c448 = arith.constant 448 : index
    %345 = vector.load %arg12[%c0_83, %c448] : memref<2x1536xf32, #tpu.memory_space<vmem>>, vector<2x32xf32>
    tpu.vector_store %arg12[%c0_83, %c448], %344 {strides = array<i32>} : memref<2x1536xf32, #tpu.memory_space<vmem>>, vector<2x32xf32>,
    %346 = vector.extract_strided_slice %343 {offsets = [0, 32], sizes = [2, 32], strides = [1, 1]} : vector<2x64xf32> to vector<2x32xf32>
    %c0_84 = arith.constant 0 : index
    %c32 = arith.constant 32 : index
    %347 = vector.load %arg12[%c0_84, %c32] : memref<2x1536xf32, #tpu.memory_space<vmem>>, vector<2x32xf32>
    tpu.vector_store %arg12[%c0_84, %c32], %346 {strides = array<i32>} : memref<2x1536xf32, #tpu.memory_space<vmem>>, vector<2x32xf32>,
    %348 = vector.extract_strided_slice %11 {offsets = [14, 0], sizes = [2, 256], strides = [1, 1]} : vector<32x256xf32> to vector<2x256xf32>
    %cst_85 = arith.constant dense<0.000000e+00> : vector<2x256xf32>
    %349 = tpu.matmul %321, %13, %cst_85 {dimension_numbers = #tpu.dot_dimension_numbers<[1], [0], [0], [1], [0, 0, 1, 1], [], []>} : vector<2x64xf32>, vector<64x256xf32>, vector<2x256xf32> -> vector<2x256xf32>
    %350 = arith.addf %348, %349 : vector<2x256xf32>
    %351 = arith.negf %350 : vector<2x256xf32>
    %352 = math.exp %351 : vector<2x256xf32>
    %cst_86 = arith.constant 1.000000e+00 : f32
    %353 = vector.broadcast %cst_86 : f32 to vector<2x256xf32>
    %354 = arith.addf %353, %352 : vector<2x256xf32>
    %355 = arith.divf %353, %354 : vector<2x256xf32>
    %356 = vector.extract_strided_slice %355 {offsets = [0, 0], sizes = [2, 64], strides = [1, 1]} : vector<2x256xf32> to vector<2x64xf32>
    %357 = vector.extract_strided_slice %355 {offsets = [0, 64], sizes = [2, 64], strides = [1, 1]} : vector<2x256xf32> to vector<2x64xf32>
    %358 = vector.extract_strided_slice %355 {offsets = [0, 192], sizes = [2, 64], strides = [1, 1]} : vector<2x256xf32> to vector<2x64xf32>
    %359 = vector.extract_strided_slice %350 {offsets = [0, 128], sizes = [2, 64], strides = [1, 1]} : vector<2x256xf32> to vector<2x64xf32>
    %360 = math.tanh %359 : vector<2x64xf32>
    %361 = arith.mulf %357, %319 : vector<2x64xf32>
    %362 = arith.mulf %356, %360 : vector<2x64xf32>
    %363 = arith.addf %361, %362 : vector<2x64xf32>
    %364 = math.tanh %363 : vector<2x64xf32>
    %365 = arith.mulf %358, %364 : vector<2x64xf32>
    %366 = vector.extract_strided_slice %365 {offsets = [0, 0], sizes = [2, 32], strides = [1, 1]} : vector<2x64xf32> to vector<2x32xf32>
    %c0_87 = arith.constant 0 : index
    %c960 = arith.constant 960 : index
    %367 = vector.load %arg12[%c0_87, %c960] : memref<2x1536xf32, #tpu.memory_space<vmem>>, vector<2x32xf32>
    tpu.vector_store %arg12[%c0_87, %c960], %366 {strides = array<i32>} : memref<2x1536xf32, #tpu.memory_space<vmem>>, vector<2x32xf32>,
    %368 = vector.extract_strided_slice %365 {offsets = [0, 32], sizes = [2, 32], strides = [1, 1]} : vector<2x64xf32> to vector<2x32xf32>
    %c0_88 = arith.constant 0 : index
    %c1056 = arith.constant 1056 : index
    %369 = vector.load %arg12[%c0_88, %c1056] : memref<2x1536xf32, #tpu.memory_space<vmem>>, vector<2x32xf32>
    tpu.vector_store %arg12[%c0_88, %c1056], %368 {strides = array<i32>} : memref<2x1536xf32, #tpu.memory_space<vmem>>, vector<2x32xf32>,
    %370 = vector.extract_strided_slice %11 {offsets = [16, 0], sizes = [2, 256], strides = [1, 1]} : vector<32x256xf32> to vector<2x256xf32>
    %cst_89 = arith.constant dense<0.000000e+00> : vector<2x256xf32>
    %371 = tpu.matmul %365, %13, %cst_89 {dimension_numbers = #tpu.dot_dimension_numbers<[1], [0], [0], [1], [0, 0, 1, 1], [], []>} : vector<2x64xf32>, vector<64x256xf32>, vector<2x256xf32> -> vector<2x256xf32>
    %372 = arith.addf %370, %371 : vector<2x256xf32>
    %373 = arith.negf %372 : vector<2x256xf32>
    %374 = math.exp %373 : vector<2x256xf32>
    %cst_90 = arith.constant 1.000000e+00 : f32
    %375 = vector.broadcast %cst_90 : f32 to vector<2x256xf32>
    %376 = arith.addf %375, %374 : vector<2x256xf32>
    %377 = arith.divf %375, %376 : vector<2x256xf32>
    %378 = vector.extract_strided_slice %377 {offsets = [0, 0], sizes = [2, 64], strides = [1, 1]} : vector<2x256xf32> to vector<2x64xf32>
    %379 = vector.extract_strided_slice %377 {offsets = [0, 64], sizes = [2, 64], strides = [1, 1]} : vector<2x256xf32> to vector<2x64xf32>
    %380 = vector.extract_strided_slice %377 {offsets = [0, 192], sizes = [2, 64], strides = [1, 1]} : vector<2x256xf32> to vector<2x64xf32>
    %381 = vector.extract_strided_slice %372 {offsets = [0, 128], sizes = [2, 64], strides = [1, 1]} : vector<2x256xf32> to vector<2x64xf32>
    %382 = math.tanh %381 : vector<2x64xf32>
    %383 = arith.mulf %379, %363 : vector<2x64xf32>
    %384 = arith.mulf %378, %382 : vector<2x64xf32>
    %385 = arith.addf %383, %384 : vector<2x64xf32>
    %386 = math.tanh %385 : vector<2x64xf32>
    %387 = arith.mulf %380, %386 : vector<2x64xf32>
    %388 = vector.extract_strided_slice %387 {offsets = [0, 0], sizes = [2, 32], strides = [1, 1]} : vector<2x64xf32> to vector<2x32xf32>
    %c0_91 = arith.constant 0 : index
    %c1024 = arith.constant 1024 : index
    %389 = vector.load %arg12[%c0_91, %c1024] : memref<2x1536xf32, #tpu.memory_space<vmem>>, vector<2x32xf32>
    tpu.vector_store %arg12[%c0_91, %c1024], %388 {strides = array<i32>} : memref<2x1536xf32, #tpu.memory_space<vmem>>, vector<2x32xf32>,
    %390 = vector.extract_strided_slice %387 {offsets = [0, 32], sizes = [2, 32], strides = [1, 1]} : vector<2x64xf32> to vector<2x32xf32>
    %c0_92 = arith.constant 0 : index
    %c992 = arith.constant 992 : index
    %391 = vector.load %arg12[%c0_92, %c992] : memref<2x1536xf32, #tpu.memory_space<vmem>>, vector<2x32xf32>
    tpu.vector_store %arg12[%c0_92, %c992], %390 {strides = array<i32>} : memref<2x1536xf32, #tpu.memory_space<vmem>>, vector<2x32xf32>,
    %392 = vector.extract_strided_slice %11 {offsets = [18, 0], sizes = [2, 256], strides = [1, 1]} : vector<32x256xf32> to vector<2x256xf32>
    %cst_93 = arith.constant dense<0.000000e+00> : vector<2x256xf32>
    %393 = tpu.matmul %387, %13, %cst_93 {dimension_numbers = #tpu.dot_dimension_numbers<[1], [0], [0], [1], [0, 0, 1, 1], [], []>} : vector<2x64xf32>, vector<64x256xf32>, vector<2x256xf32> -> vector<2x256xf32>
    %394 = arith.addf %392, %393 : vector<2x256xf32>
    %395 = arith.negf %394 : vector<2x256xf32>
    %396 = math.exp %395 : vector<2x256xf32>
    %cst_94 = arith.constant 1.000000e+00 : f32
    %397 = vector.broadcast %cst_94 : f32 to vector<2x256xf32>
    %398 = arith.addf %397, %396 : vector<2x256xf32>
    %399 = arith.divf %397, %398 : vector<2x256xf32>
    %400 = vector.extract_strided_slice %399 {offsets = [0, 0], sizes = [2, 64], strides = [1, 1]} : vector<2x256xf32> to vector<2x64xf32>
    %401 = vector.extract_strided_slice %399 {offsets = [0, 64], sizes = [2, 64], strides = [1, 1]} : vector<2x256xf32> to vector<2x64xf32>
    %402 = vector.extract_strided_slice %399 {offsets = [0, 192], sizes = [2, 64], strides = [1, 1]} : vector<2x256xf32> to vector<2x64xf32>
    %403 = vector.extract_strided_slice %394 {offsets = [0, 128], sizes = [2, 64], strides = [1, 1]} : vector<2x256xf32> to vector<2x64xf32>
    %404 = math.tanh %403 : vector<2x64xf32>
    %405 = arith.mulf %401, %385 : vector<2x64xf32>
    %406 = arith.mulf %400, %404 : vector<2x64xf32>
    %407 = arith.addf %405, %406 : vector<2x64xf32>
    %408 = math.tanh %407 : vector<2x64xf32>
    %409 = arith.mulf %402, %408 : vector<2x64xf32>
    %410 = vector.extract_strided_slice %409 {offsets = [0, 0], sizes = [2, 32], strides = [1, 1]} : vector<2x64xf32> to vector<2x32xf32>
    %c0_95 = arith.constant 0 : index
    %c1088 = arith.constant 1088 : index
    %411 = vector.load %arg12[%c0_95, %c1088] : memref<2x1536xf32, #tpu.memory_space<vmem>>, vector<2x32xf32>
    tpu.vector_store %arg12[%c0_95, %c1088], %410 {strides = array<i32>} : memref<2x1536xf32, #tpu.memory_space<vmem>>, vector<2x32xf32>,
    %412 = vector.extract_strided_slice %409 {offsets = [0, 32], sizes = [2, 32], strides = [1, 1]} : vector<2x64xf32> to vector<2x32xf32>
    %c0_96 = arith.constant 0 : index
    %c928 = arith.constant 928 : index
    %413 = vector.load %arg12[%c0_96, %c928] : memref<2x1536xf32, #tpu.memory_space<vmem>>, vector<2x32xf32>
    tpu.vector_store %arg12[%c0_96, %c928], %412 {strides = array<i32>} : memref<2x1536xf32, #tpu.memory_space<vmem>>, vector<2x32xf32>,
    %414 = vector.extract_strided_slice %11 {offsets = [20, 0], sizes = [2, 256], strides = [1, 1]} : vector<32x256xf32> to vector<2x256xf32>
    %cst_97 = arith.constant dense<0.000000e+00> : vector<2x256xf32>
    %415 = tpu.matmul %409, %13, %cst_97 {dimension_numbers = #tpu.dot_dimension_numbers<[1], [0], [0], [1], [0, 0, 1, 1], [], []>} : vector<2x64xf32>, vector<64x256xf32>, vector<2x256xf32> -> vector<2x256xf32>
    %416 = arith.addf %414, %415 : vector<2x256xf32>
    %417 = arith.negf %416 : vector<2x256xf32>
    %418 = math.exp %417 : vector<2x256xf32>
    %cst_98 = arith.constant 1.000000e+00 : f32
    %419 = vector.broadcast %cst_98 : f32 to vector<2x256xf32>
    %420 = arith.addf %419, %418 : vector<2x256xf32>
    %421 = arith.divf %419, %420 : vector<2x256xf32>
    %422 = vector.extract_strided_slice %421 {offsets = [0, 0], sizes = [2, 64], strides = [1, 1]} : vector<2x256xf32> to vector<2x64xf32>
    %423 = vector.extract_strided_slice %421 {offsets = [0, 64], sizes = [2, 64], strides = [1, 1]} : vector<2x256xf32> to vector<2x64xf32>
    %424 = vector.extract_strided_slice %421 {offsets = [0, 192], sizes = [2, 64], strides = [1, 1]} : vector<2x256xf32> to vector<2x64xf32>
    %425 = vector.extract_strided_slice %416 {offsets = [0, 128], sizes = [2, 64], strides = [1, 1]} : vector<2x256xf32> to vector<2x64xf32>
    %426 = math.tanh %425 : vector<2x64xf32>
    %427 = arith.mulf %423, %407 : vector<2x64xf32>
    %428 = arith.mulf %422, %426 : vector<2x64xf32>
    %429 = arith.addf %427, %428 : vector<2x64xf32>
    %430 = math.tanh %429 : vector<2x64xf32>
    %431 = arith.mulf %424, %430 : vector<2x64xf32>
    %432 = vector.extract_strided_slice %431 {offsets = [0, 0], sizes = [2, 32], strides = [1, 1]} : vector<2x64xf32> to vector<2x32xf32>
    %c0_99 = arith.constant 0 : index
    %c1152 = arith.constant 1152 : index
    %433 = vector.load %arg12[%c0_99, %c1152] : memref<2x1536xf32, #tpu.memory_space<vmem>>, vector<2x32xf32>
    tpu.vector_store %arg12[%c0_99, %c1152], %432 {strides = array<i32>} : memref<2x1536xf32, #tpu.memory_space<vmem>>, vector<2x32xf32>,
    %434 = vector.extract_strided_slice %431 {offsets = [0, 32], sizes = [2, 32], strides = [1, 1]} : vector<2x64xf32> to vector<2x32xf32>
    %c0_100 = arith.constant 0 : index
    %c864 = arith.constant 864 : index
    %435 = vector.load %arg12[%c0_100, %c864] : memref<2x1536xf32, #tpu.memory_space<vmem>>, vector<2x32xf32>
    tpu.vector_store %arg12[%c0_100, %c864], %434 {strides = array<i32>} : memref<2x1536xf32, #tpu.memory_space<vmem>>, vector<2x32xf32>,
    %436 = vector.extract_strided_slice %11 {offsets = [22, 0], sizes = [2, 256], strides = [1, 1]} : vector<32x256xf32> to vector<2x256xf32>
    %cst_101 = arith.constant dense<0.000000e+00> : vector<2x256xf32>
    %437 = tpu.matmul %431, %13, %cst_101 {dimension_numbers = #tpu.dot_dimension_numbers<[1], [0], [0], [1], [0, 0, 1, 1], [], []>} : vector<2x64xf32>, vector<64x256xf32>, vector<2x256xf32> -> vector<2x256xf32>
    %438 = arith.addf %436, %437 : vector<2x256xf32>
    %439 = arith.negf %438 : vector<2x256xf32>
    %440 = math.exp %439 : vector<2x256xf32>
    %cst_102 = arith.constant 1.000000e+00 : f32
    %441 = vector.broadcast %cst_102 : f32 to vector<2x256xf32>
    %442 = arith.addf %441, %440 : vector<2x256xf32>
    %443 = arith.divf %441, %442 : vector<2x256xf32>
    %444 = vector.extract_strided_slice %443 {offsets = [0, 0], sizes = [2, 64], strides = [1, 1]} : vector<2x256xf32> to vector<2x64xf32>
    %445 = vector.extract_strided_slice %443 {offsets = [0, 64], sizes = [2, 64], strides = [1, 1]} : vector<2x256xf32> to vector<2x64xf32>
    %446 = vector.extract_strided_slice %443 {offsets = [0, 192], sizes = [2, 64], strides = [1, 1]} : vector<2x256xf32> to vector<2x64xf32>
    %447 = vector.extract_strided_slice %438 {offsets = [0, 128], sizes = [2, 64], strides = [1, 1]} : vector<2x256xf32> to vector<2x64xf32>
    %448 = math.tanh %447 : vector<2x64xf32>
    %449 = arith.mulf %445, %429 : vector<2x64xf32>
    %450 = arith.mulf %444, %448 : vector<2x64xf32>
    %451 = arith.addf %449, %450 : vector<2x64xf32>
    %452 = math.tanh %451 : vector<2x64xf32>
    %453 = arith.mulf %446, %452 : vector<2x64xf32>
    %454 = vector.extract_strided_slice %453 {offsets = [0, 0], sizes = [2, 32], strides = [1, 1]} : vector<2x64xf32> to vector<2x32xf32>
    %c0_103 = arith.constant 0 : index
    %c1216 = arith.constant 1216 : index
    %455 = vector.load %arg12[%c0_103, %c1216] : memref<2x1536xf32, #tpu.memory_space<vmem>>, vector<2x32xf32>
    tpu.vector_store %arg12[%c0_103, %c1216], %454 {strides = array<i32>} : memref<2x1536xf32, #tpu.memory_space<vmem>>, vector<2x32xf32>,
    %456 = vector.extract_strided_slice %453 {offsets = [0, 32], sizes = [2, 32], strides = [1, 1]} : vector<2x64xf32> to vector<2x32xf32>
    %c0_104 = arith.constant 0 : index
    %c800 = arith.constant 800 : index
    %457 = vector.load %arg12[%c0_104, %c800] : memref<2x1536xf32, #tpu.memory_space<vmem>>, vector<2x32xf32>
    tpu.vector_store %arg12[%c0_104, %c800], %456 {strides = array<i32>} : memref<2x1536xf32, #tpu.memory_space<vmem>>, vector<2x32xf32>,
    %458 = vector.extract_strided_slice %11 {offsets = [24, 0], sizes = [2, 256], strides = [1, 1]} : vector<32x256xf32> to vector<2x256xf32>
    %cst_105 = arith.constant dense<0.000000e+00> : vector<2x256xf32>
    %459 = tpu.matmul %453, %13, %cst_105 {dimension_numbers = #tpu.dot_dimension_numbers<[1], [0], [0], [1], [0, 0, 1, 1], [], []>} : vector<2x64xf32>, vector<64x256xf32>, vector<2x256xf32> -> vector<2x256xf32>
    %460 = arith.addf %458, %459 : vector<2x256xf32>
    %461 = arith.negf %460 : vector<2x256xf32>
    %462 = math.exp %461 : vector<2x256xf32>
    %cst_106 = arith.constant 1.000000e+00 : f32
    %463 = vector.broadcast %cst_106 : f32 to vector<2x256xf32>
    %464 = arith.addf %463, %462 : vector<2x256xf32>
    %465 = arith.divf %463, %464 : vector<2x256xf32>
    %466 = vector.extract_strided_slice %465 {offsets = [0, 0], sizes = [2, 64], strides = [1, 1]} : vector<2x256xf32> to vector<2x64xf32>
    %467 = vector.extract_strided_slice %465 {offsets = [0, 64], sizes = [2, 64], strides = [1, 1]} : vector<2x256xf32> to vector<2x64xf32>
    %468 = vector.extract_strided_slice %465 {offsets = [0, 192], sizes = [2, 64], strides = [1, 1]} : vector<2x256xf32> to vector<2x64xf32>
    %469 = vector.extract_strided_slice %460 {offsets = [0, 128], sizes = [2, 64], strides = [1, 1]} : vector<2x256xf32> to vector<2x64xf32>
    %470 = math.tanh %469 : vector<2x64xf32>
    %471 = arith.mulf %467, %451 : vector<2x64xf32>
    %472 = arith.mulf %466, %470 : vector<2x64xf32>
    %473 = arith.addf %471, %472 : vector<2x64xf32>
    %474 = math.tanh %473 : vector<2x64xf32>
    %475 = arith.mulf %468, %474 : vector<2x64xf32>
    %476 = vector.extract_strided_slice %475 {offsets = [0, 0], sizes = [2, 32], strides = [1, 1]} : vector<2x64xf32> to vector<2x32xf32>
    %c0_107 = arith.constant 0 : index
    %c1280 = arith.constant 1280 : index
    %477 = vector.load %arg12[%c0_107, %c1280] : memref<2x1536xf32, #tpu.memory_space<vmem>>, vector<2x32xf32>
    tpu.vector_store %arg12[%c0_107, %c1280], %476 {strides = array<i32>} : memref<2x1536xf32, #tpu.memory_space<vmem>>, vector<2x32xf32>,
    %478 = vector.extract_strided_slice %475 {offsets = [0, 32], sizes = [2, 32], strides = [1, 1]} : vector<2x64xf32> to vector<2x32xf32>
    %c0_108 = arith.constant 0 : index
    %c736 = arith.constant 736 : index
    %479 = vector.load %arg12[%c0_108, %c736] : memref<2x1536xf32, #tpu.memory_space<vmem>>, vector<2x32xf32>
    tpu.vector_store %arg12[%c0_108, %c736], %478 {strides = array<i32>} : memref<2x1536xf32, #tpu.memory_space<vmem>>, vector<2x32xf32>,
    %480 = vector.extract_strided_slice %11 {offsets = [26, 0], sizes = [2, 256], strides = [1, 1]} : vector<32x256xf32> to vector<2x256xf32>
    %cst_109 = arith.constant dense<0.000000e+00> : vector<2x256xf32>
    %481 = tpu.matmul %475, %13, %cst_109 {dimension_numbers = #tpu.dot_dimension_numbers<[1], [0], [0], [1], [0, 0, 1, 1], [], []>} : vector<2x64xf32>, vector<64x256xf32>, vector<2x256xf32> -> vector<2x256xf32>
    %482 = arith.addf %480, %481 : vector<2x256xf32>
    %483 = arith.negf %482 : vector<2x256xf32>
    %484 = math.exp %483 : vector<2x256xf32>
    %cst_110 = arith.constant 1.000000e+00 : f32
    %485 = vector.broadcast %cst_110 : f32 to vector<2x256xf32>
    %486 = arith.addf %485, %484 : vector<2x256xf32>
    %487 = arith.divf %485, %486 : vector<2x256xf32>
    %488 = vector.extract_strided_slice %487 {offsets = [0, 0], sizes = [2, 64], strides = [1, 1]} : vector<2x256xf32> to vector<2x64xf32>
    %489 = vector.extract_strided_slice %487 {offsets = [0, 64], sizes = [2, 64], strides = [1, 1]} : vector<2x256xf32> to vector<2x64xf32>
    %490 = vector.extract_strided_slice %487 {offsets = [0, 192], sizes = [2, 64], strides = [1, 1]} : vector<2x256xf32> to vector<2x64xf32>
    %491 = vector.extract_strided_slice %482 {offsets = [0, 128], sizes = [2, 64], strides = [1, 1]} : vector<2x256xf32> to vector<2x64xf32>
    %492 = math.tanh %491 : vector<2x64xf32>
    %493 = arith.mulf %489, %473 : vector<2x64xf32>
    %494 = arith.mulf %488, %492 : vector<2x64xf32>
    %495 = arith.addf %493, %494 : vector<2x64xf32>
    %496 = math.tanh %495 : vector<2x64xf32>
    %497 = arith.mulf %490, %496 : vector<2x64xf32>
    %498 = vector.extract_strided_slice %497 {offsets = [0, 0], sizes = [2, 32], strides = [1, 1]} : vector<2x64xf32> to vector<2x32xf32>
    %c0_111 = arith.constant 0 : index
    %c1344 = arith.constant 1344 : index
    %499 = vector.load %arg12[%c0_111, %c1344] : memref<2x1536xf32, #tpu.memory_space<vmem>>, vector<2x32xf32>
    tpu.vector_store %arg12[%c0_111, %c1344], %498 {strides = array<i32>} : memref<2x1536xf32, #tpu.memory_space<vmem>>, vector<2x32xf32>,
    %500 = vector.extract_strided_slice %497 {offsets = [0, 32], sizes = [2, 32], strides = [1, 1]} : vector<2x64xf32> to vector<2x32xf32>
    %c0_112 = arith.constant 0 : index
    %c672 = arith.constant 672 : index
    %501 = vector.load %arg12[%c0_112, %c672] : memref<2x1536xf32, #tpu.memory_space<vmem>>, vector<2x32xf32>
    tpu.vector_store %arg12[%c0_112, %c672], %500 {strides = array<i32>} : memref<2x1536xf32, #tpu.memory_space<vmem>>, vector<2x32xf32>,
    %502 = vector.extract_strided_slice %11 {offsets = [28, 0], sizes = [2, 256], strides = [1, 1]} : vector<32x256xf32> to vector<2x256xf32>
    %cst_113 = arith.constant dense<0.000000e+00> : vector<2x256xf32>
    %503 = tpu.matmul %497, %13, %cst_113 {dimension_numbers = #tpu.dot_dimension_numbers<[1], [0], [0], [1], [0, 0, 1, 1], [], []>} : vector<2x64xf32>, vector<64x256xf32>, vector<2x256xf32> -> vector<2x256xf32>
    %504 = arith.addf %502, %503 : vector<2x256xf32>
    %505 = arith.negf %504 : vector<2x256xf32>
    %506 = math.exp %505 : vector<2x256xf32>
    %cst_114 = arith.constant 1.000000e+00 : f32
    %507 = vector.broadcast %cst_114 : f32 to vector<2x256xf32>
    %508 = arith.addf %507, %506 : vector<2x256xf32>
    %509 = arith.divf %507, %508 : vector<2x256xf32>
    %510 = vector.extract_strided_slice %509 {offsets = [0, 0], sizes = [2, 64], strides = [1, 1]} : vector<2x256xf32> to vector<2x64xf32>
    %511 = vector.extract_strided_slice %509 {offsets = [0, 64], sizes = [2, 64], strides = [1, 1]} : vector<2x256xf32> to vector<2x64xf32>
    %512 = vector.extract_strided_slice %509 {offsets = [0, 192], sizes = [2, 64], strides = [1, 1]} : vector<2x256xf32> to vector<2x64xf32>
    %513 = vector.extract_strided_slice %504 {offsets = [0, 128], sizes = [2, 64], strides = [1, 1]} : vector<2x256xf32> to vector<2x64xf32>
    %514 = math.tanh %513 : vector<2x64xf32>
    %515 = arith.mulf %511, %495 : vector<2x64xf32>
    %516 = arith.mulf %510, %514 : vector<2x64xf32>
    %517 = arith.addf %515, %516 : vector<2x64xf32>
    %518 = math.tanh %517 : vector<2x64xf32>
    %519 = arith.mulf %512, %518 : vector<2x64xf32>
    %520 = vector.extract_strided_slice %519 {offsets = [0, 0], sizes = [2, 32], strides = [1, 1]} : vector<2x64xf32> to vector<2x32xf32>
    %c0_115 = arith.constant 0 : index
    %c1408 = arith.constant 1408 : index
    %521 = vector.load %arg12[%c0_115, %c1408] : memref<2x1536xf32, #tpu.memory_space<vmem>>, vector<2x32xf32>
    tpu.vector_store %arg12[%c0_115, %c1408], %520 {strides = array<i32>} : memref<2x1536xf32, #tpu.memory_space<vmem>>, vector<2x32xf32>,
    %522 = vector.extract_strided_slice %519 {offsets = [0, 32], sizes = [2, 32], strides = [1, 1]} : vector<2x64xf32> to vector<2x32xf32>
    %c0_116 = arith.constant 0 : index
    %c608 = arith.constant 608 : index
    %523 = vector.load %arg12[%c0_116, %c608] : memref<2x1536xf32, #tpu.memory_space<vmem>>, vector<2x32xf32>
    tpu.vector_store %arg12[%c0_116, %c608], %522 {strides = array<i32>} : memref<2x1536xf32, #tpu.memory_space<vmem>>, vector<2x32xf32>,
    %524 = vector.extract_strided_slice %11 {offsets = [30, 0], sizes = [2, 256], strides = [1, 1]} : vector<32x256xf32> to vector<2x256xf32>
    %cst_117 = arith.constant dense<0.000000e+00> : vector<2x256xf32>
    %525 = tpu.matmul %519, %13, %cst_117 {dimension_numbers = #tpu.dot_dimension_numbers<[1], [0], [0], [1], [0, 0, 1, 1], [], []>} : vector<2x64xf32>, vector<64x256xf32>, vector<2x256xf32> -> vector<2x256xf32>
    %526 = arith.addf %524, %525 : vector<2x256xf32>
    %527 = arith.negf %526 : vector<2x256xf32>
    %528 = math.exp %527 : vector<2x256xf32>
    %cst_118 = arith.constant 1.000000e+00 : f32
    %529 = vector.broadcast %cst_118 : f32 to vector<2x256xf32>
    %530 = arith.addf %529, %528 : vector<2x256xf32>
    %531 = arith.divf %529, %530 : vector<2x256xf32>
    %532 = vector.extract_strided_slice %531 {offsets = [0, 0], sizes = [2, 64], strides = [1, 1]} : vector<2x256xf32> to vector<2x64xf32>
    %533 = vector.extract_strided_slice %531 {offsets = [0, 64], sizes = [2, 64], strides = [1, 1]} : vector<2x256xf32> to vector<2x64xf32>
    %534 = vector.extract_strided_slice %531 {offsets = [0, 192], sizes = [2, 64], strides = [1, 1]} : vector<2x256xf32> to vector<2x64xf32>
    %535 = vector.extract_strided_slice %526 {offsets = [0, 128], sizes = [2, 64], strides = [1, 1]} : vector<2x256xf32> to vector<2x64xf32>
    %536 = math.tanh %535 : vector<2x64xf32>
    %537 = arith.mulf %533, %517 : vector<2x64xf32>
    %538 = arith.mulf %532, %536 : vector<2x64xf32>
    %539 = arith.addf %537, %538 : vector<2x64xf32>
    %540 = math.tanh %539 : vector<2x64xf32>
    %541 = arith.mulf %534, %540 : vector<2x64xf32>
    %542 = vector.extract_strided_slice %541 {offsets = [0, 0], sizes = [2, 32], strides = [1, 1]} : vector<2x64xf32> to vector<2x32xf32>
    %c0_119 = arith.constant 0 : index
    %c1472 = arith.constant 1472 : index
    %543 = vector.load %arg12[%c0_119, %c1472] : memref<2x1536xf32, #tpu.memory_space<vmem>>, vector<2x32xf32>
    tpu.vector_store %arg12[%c0_119, %c1472], %542 {strides = array<i32>} : memref<2x1536xf32, #tpu.memory_space<vmem>>, vector<2x32xf32>,
    %544 = vector.extract_strided_slice %541 {offsets = [0, 32], sizes = [2, 32], strides = [1, 1]} : vector<2x64xf32> to vector<2x32xf32>
    %c0_120 = arith.constant 0 : index
    %c544 = arith.constant 544 : index
    %545 = vector.load %arg12[%c0_120, %c544] : memref<2x1536xf32, #tpu.memory_space<vmem>>, vector<2x32xf32>
    tpu.vector_store %arg12[%c0_120, %c544], %544 {strides = array<i32>} : memref<2x1536xf32, #tpu.memory_space<vmem>>, vector<2x32xf32>,
    return
  }
}

</mosaic_0001>

<llo_original>
// kernel: tpu_custom_call.1
$region0: #{tpu_custom_call.1}
  #allocation0 [shape = 'u32[]', space=smem, size = 0x4, offset = 0x4, fixed_abs, tag = 'smem constant byte address 0x4 - core index']
  #allocation1 [shape = 'u32[144,128]{1,0:T(1,128)}', space=vmem, size = 0x12000, scoped, tag = 'internal scratch']
  %s0 = inlined_call_operand.vmem [shape: f32[16,32], index: 0, kind: input, shape index: {}]
  %s1 = inlined_call_operand.hbm [shape: f32[32,256], index: 1, kind: input, shape index: {}]
  %s2 = inlined_call_operand.hbm [shape: f32[64,256], index: 2, kind: input, shape index: {}]
  %s3 = inlined_call_operand.vmem [shape: f32[1,256], index: 3, kind: input, shape index: {}]
  %s4 = inlined_call_operand.vmem [shape: f32[2,64], index: 4, kind: input, shape index: {}]
  %s5 = inlined_call_operand.vmem [shape: f32[2,64], index: 5, kind: input, shape index: {}]
  %s6 = inlined_call_operand.vmem [shape: f32[32,16], index: 6, kind: input, shape index: {}]
  %s7 = inlined_call_operand.vmem [shape: f32[16,256], index: 7, kind: input, shape index: {}]
  %s8 = inlined_call_operand.hbm [shape: f32[64,256], index: 8, kind: input, shape index: {}]
  %s9 = inlined_call_operand.vmem [shape: f32[1,256], index: 9, kind: input, shape index: {}]
  %s10 = inlined_call_operand.vmem [shape: f32[2,64], index: 10, kind: input, shape index: {}]
  %s11 = inlined_call_operand.vmem [shape: f32[2,64], index: 11, kind: input, shape index: {}]
  %s12 = inlined_call_operand.hbm [shape: f32[2,1536], index: 12, kind: output, shape index: {}]
  %s13 = sld [smem:[#allocation0]]
  $region70: #{tpu_custom_call.1} parent=0
    _
  %s15 = ssub.s32 1, %s13
  %s16 = scalar_select 0, %s15, %s13
  $region1: #{tpu_custom_call.1} parent=0
    #allocation2 [shape = 'u8[32768]{0}', space=vmem, size = 0x8000, scoped, tag = 'input window, operand 1, single buffered']
    #allocation3 [shape = 's32[1]{0}', space=sflag, size = 0x4, scoped, tag = 'scoped memory for tpu_custom_call.1']
    #allocation4 [shape = 's32[1]{0}', space=sflag, size = 0x4, scoped, tag = 'scoped memory for tpu_custom_call.1']
    #allocation5 [shape = 'u8[65536]{0}', space=vmem, size = 0x10000, scoped, tag = 'input window, operand 2, single buffered']
    #allocation6 [shape = 's32[1]{0}', space=sflag, size = 0x4, scoped, tag = 'scoped memory for tpu_custom_call.1']
    #allocation7 [shape = 'u8[65536]{0}', space=vmem, size = 0x10000, scoped, tag = 'input window, operand 8, single buffered']
    #allocation8 [shape = 'u8[12288]{0}', space=vmem, size = 0x3000, scoped, tag = 'output window, operand 0, single buffered']
    %17 = vsyncpa [#allocation3], 0
    %18 = vsyncpa [#allocation6], 0
    %19 = vsyncpa [#allocation4], 0
    // Predicated region
    $region2: #{tpu_custom_call.1} parent=1 // pred_check
      _
    $region3: #{tpu_custom_call.1} parent=1 // pred_check_branch
      %21 = sbr.rel (0) target = $region5
    $region4: #{tpu_custom_call.1} parent=1 // pred_region
      _
    $region5: #{tpu_custom_call.1} parent=1 // pred_fallthru
      _
    // Predicated region
    $region6: #{tpu_custom_call.1} parent=1 // pred_check
      _
    $region7: #{tpu_custom_call.1} parent=1 // pred_check_branch
      %23 = sbr.rel (0) target = $region9
    $region8: #{tpu_custom_call.1} parent=1 // pred_region
      %s25 = ssub.s32 1024, 1024
      %26 = vsyncadd [#allocation3], %s25
      %s27 = sshll.u32 [#allocation2], 4
      %s28 = int_to_ptr.vmem [resolvable:$true] %s27
      %33 = dma.hbm_to_vmem [thread:$0]  %s1, 1024, %s28, [#allocation3], 256, 256, 16
    $region9: #{tpu_custom_call.1} parent=1 // pred_fallthru
      _
    // Predicated region
    $region10: #{tpu_custom_call.1} parent=1 // pred_check
      _
    $region11: #{tpu_custom_call.1} parent=1 // pred_check_branch
      %35 = sbr.rel (0) target = $region13
    $region12: #{tpu_custom_call.1} parent=1 // pred_region
      %s37 = ssub.s32 2048, 2048
      %38 = vsyncadd [#allocation6], %s37
      %s39 = sshll.u32 [#allocation5], 4
      %s40 = int_to_ptr.vmem [resolvable:$true] %s39
      %45 = dma.hbm_to_vmem [thread:$0]  %s2, 2048, %s40, [#allocation6], 256, 256, 16
    $region13: #{tpu_custom_call.1} parent=1 // pred_fallthru
      _
    // Predicated region
    $region14: #{tpu_custom_call.1} parent=1 // pred_check
      _
    $region15: #{tpu_custom_call.1} parent=1 // pred_check_branch
      %47 = sbr.rel (0) target = $region17
    $region16: #{tpu_custom_call.1} parent=1 // pred_region
      _
    $region17: #{tpu_custom_call.1} parent=1 // pred_fallthru
      _
    // Predicated region
    $region18: #{tpu_custom_call.1} parent=1 // pred_check
      _
    $region19: #{tpu_custom_call.1} parent=1 // pred_check_branch
      %49 = sbr.rel (0) target = $region21
    $region20: #{tpu_custom_call.1} parent=1 // pred_region
      _
    $region21: #{tpu_custom_call.1} parent=1 // pred_fallthru
      _
    // Predicated region
    $region22: #{tpu_custom_call.1} parent=1 // pred_check
      _
    $region23: #{tpu_custom_call.1} parent=1 // pred_check_branch
      %51 = sbr.rel (0) target = $region25
    $region24: #{tpu_custom_call.1} parent=1 // pred_region
      _
    $region25: #{tpu_custom_call.1} parent=1 // pred_fallthru
      _
    // Predicated region
    $region26: #{tpu_custom_call.1} parent=1 // pred_check
      _
    $region27: #{tpu_custom_call.1} parent=1 // pred_check_branch
      %53 = sbr.rel (0) target = $region29
    $region28: #{tpu_custom_call.1} parent=1 // pred_region
      _
    $region29: #{tpu_custom_call.1} parent=1 // pred_fallthru
      _
    // Predicated region
    $region30: #{tpu_custom_call.1} parent=1 // pred_check
      _
    $region31: #{tpu_custom_call.1} parent=1 // pred_check_branch
      %55 = sbr.rel (0) target = $region33
    $region32: #{tpu_custom_call.1} parent=1 // pred_region
      _
    $region33: #{tpu_custom_call.1} parent=1 // pred_fallthru
      _
    // Predicated region
    $region34: #{tpu_custom_call.1} parent=1 // pred_check
      _
    $region35: #{tpu_custom_call.1} parent=1 // pred_check_branch
      %57 = sbr.rel (0) target = $region37
    $region36: #{tpu_custom_call.1} parent=1 // pred_region
      %s59 = ssub.s32 2048, 2048
      %60 = vsyncadd [#allocation6], %s59
      %s61 = sshll.u32 [#allocation7], 4
      %s62 = int_to_ptr.vmem [resolvable:$true] %s61
      %67 = dma.hbm_to_vmem [thread:$0]  %s8, 2048, %s62, [#allocation6], 256, 256, 16
    $region37: #{tpu_custom_call.1} parent=1 // pred_fallthru
      _
    // Predicated region
    $region38: #{tpu_custom_call.1} parent=1 // pred_check
      _
    $region39: #{tpu_custom_call.1} parent=1 // pred_check_branch
      %69 = sbr.rel (0) target = $region41
    $region40: #{tpu_custom_call.1} parent=1 // pred_region
      _
    $region41: #{tpu_custom_call.1} parent=1 // pred_fallthru
      _
    // Predicated region
    $region42: #{tpu_custom_call.1} parent=1 // pred_check
      _
    $region43: #{tpu_custom_call.1} parent=1 // pred_check_branch
      %71 = sbr.rel (0) target = $region45
    $region44: #{tpu_custom_call.1} parent=1 // pred_region
      _
    $region45: #{tpu_custom_call.1} parent=1 // pred_fallthru
      _
    // Predicated region
    $region46: #{tpu_custom_call.1} parent=1 // pred_check
      _
    $region47: #{tpu_custom_call.1} parent=1 // pred_check_branch
      %73 = sbr.rel (0) target = $region49
    $region48: #{tpu_custom_call.1} parent=1 // pred_region
      _
    $region49: #{tpu_custom_call.1} parent=1 // pred_fallthru
      _
    // Predicated region
    $region50: #{tpu_custom_call.1} parent=1 // pred_check
      _
    $region51: #{tpu_custom_call.1} parent=1 // pred_check_branch
      %75 = sbr.rel (0) target = $region53
    $region52: #{tpu_custom_call.1} parent=1 // pred_region
      %76 = dma.done [#allocation3], 1024
    $region53: #{tpu_custom_call.1} parent=1 // pred_fallthru
      _
    // Predicated region
    $region54: #{tpu_custom_call.1} parent=1 // pred_check
      _
    $region55: #{tpu_custom_call.1} parent=1 // pred_check_branch
      %78 = sbr.rel (0) target = $region57
    $region56: #{tpu_custom_call.1} parent=1 // pred_region
      %79 = dma.done [#allocation6], 2048
    $region57: #{tpu_custom_call.1} parent=1 // pred_fallthru
      _
    // Predicated region
    $region58: #{tpu_custom_call.1} parent=1 // pred_check
      _
    $region59: #{tpu_custom_call.1} parent=1 // pred_check_branch
      %81 = sbr.rel (0) target = $region61
    $region60: #{tpu_custom_call.1} parent=1 // pred_region
      %82 = dma.done [#allocation6], 2048
    $region61: #{tpu_custom_call.1} parent=1 // pred_fallthru
      _
    %v83 = vld [vmem:[%s0] sm:$0xff]
    %v84 = vld [vmem:[%s0 + $0x8] sm:$0xff]
    %v85 = vld [vmem:[#allocation2] sm:$0xff]
    %v86 = vld [vmem:[#allocation2 + $0x8] sm:$0xff]
    %v87 = vld [vmem:[#allocation2 + $0x10] sm:$0xff]
    %v88 = vld [vmem:[#allocation2 + $0x18] sm:$0xff]
    %v89 = vld [vmem:[#allocation2 + $0x20] sm:$0xff]
    %v90 = vld [vmem:[#allocation2 + $0x28] sm:$0xff]
    %v91 = vld [vmem:[#allocation2 + $0x30] sm:$0xff]
    %v92 = vld [vmem:[#allocation2 + $0x38] sm:$0xff]
    %v93 = vld [vmem:[%s3] sm:$0x3]
    %v95 = vlaneseq
    %v96 = vshrl.u32 %v95, 7
    %v97 = vsub.s32 0, %v96
    %v98 = vrot.slane %v93, %v97
    %v99 = vlaneseq
    %v100 = vshrl.u32 %v99, 7
    %v101 = vsub.s32 1, %v100
    %v102 = vrot.slane %v93, %v101
    %vm105 = vcmask 261120
    %v107 = vsel %vm105, %v83, 0
    %v110 = vsel %vm105, %v84, 0
    %112 = vmatprep.subr.mxu0 %v86
    %113 = vmatpush1.msra.mxu0 %v85
    %114 = vmatprep.subr.mxu0 %v88
    %115 = vmatpush1.msra.mxu0 %v87
    %116 = vmatprep.subr.mxu0 %v90
    %117 = vmatpush1.msra.mxu0 %v89
    %118 = vmatprep.subr.mxu0 %v92
    %119 = vmatpush1.msra.mxu0 %v91
    %120 = vmatprep.subr.mxu0 0.0
    %121 = vmatpush1.msra.mxu0 0.0
    %122 = vmatprep.subr.mxu0 0.0
    %123 = vmatpush1.msra.mxu0 0.0
    %124 = vmatprep.subr.mxu0 0.0
    %125 = vmatpush1.msra.mxu0 0.0
    %126 = vmatprep.subr.mxu0 0.0
    %127 = vmatpush1.msra.mxu0 0.0
    %128 = vmatprep.subr.mxu0 0.0
    %129 = vmatpush1.msra.mxu0 0.0
    %130 = vmatprep.subr.mxu0 0.0
    %131 = vmatpush1.msra.mxu0 0.0
    %132 = vmatprep.subr.mxu0 0.0
    %133 = vmatpush1.msra.mxu0 0.0
    %134 = vmatprep.subr.mxu0 0.0
    %135 = vmatpush1.msra.mxu0 0.0
    %136 = vmatprep.subr.mxu0 0.0
    %137 = vmatpush1.msra.mxu0 0.0
    %138 = vmatprep.subr.mxu0 0.0
    %139 = vmatpush1.msra.mxu0 0.0
    %140 = vmatprep.subr.mxu0 0.0
    %141 = vmatpush1.msra.mxu0 0.0
    %142 = vmatprep.subr.mxu0 0.0
    %143 = vmatpush1.msra.mxu0 0.0
    %144 = vmatprep.subr.mxu0 0.0
    %145 = vmatpush1.msra.mxu0 0.0
    %146 = vmatprep.subr.mxu0 0.0
    %147 = vmatpush1.msra.mxu0 0.0
    %148 = vmatprep.subr.mxu0 0.0
    %149 = vmatpush1.msra.mxu0 0.0
    %150 = vmatprep.subr.mxu0 0.0
    %151 = vmatpush1.msra.mxu0 0.0
    %152 = vmatprep.subr.mxu0 0.0
    %153 = vmatpush1.msra.mxu0 0.0
    %154 = vmatprep.subr.mxu0 0.0
    %155 = vmatpush1.msra.mxu0 0.0
    %156 = vmatprep.subr.mxu0 0.0
    %157 = vmatpush1.msra.mxu0 0.0
    %158 = vmatprep.subr.mxu0 0.0
    %159 = vmatpush1.msra.mxu0 0.0
    %160 = vmatprep.subr.mxu0 0.0
    %161 = vmatpush1.msra.mxu0 0.0
    %162 = vmatprep.subr.mxu0 0.0
    %163 = vmatpush1.msra.mxu0 0.0
    %164 = vmatprep.subr.mxu0 0.0
    %165 = vmatpush1.msra.mxu0 0.0
    %166 = vmatprep.subr.mxu0 0.0
    %167 = vmatpush1.msra.mxu0 0.0
    %168 = vmatprep.subr.mxu0 0.0
    %169 = vmatpush1.msra.mxu0 0.0
    %170 = vmatprep.subr.mxu0 0.0
    %171 = vmatpush1.msra.mxu0 0.0
    %172 = vmatprep.subr.mxu0 0.0
    %173 = vmatpush1.msra.mxu0 0.0
    %174 = vmatprep.subr.mxu0 0.0
    %175 = vmatpush1.msra.mxu0 0.0
    %176 = vmatprep.mubr.f32.mxu0 0.0
    %177 = vmatmul.mubr.f32.gmra.mrb[0].mxu0 %v107
    %v178 = vpop.f32.mrb[0].mxu0
    %v179 = vadd.f32 %v98, %v178
    %v180 = vpop.f32.mrb[0].mxu0
    %v181 = vadd.f32 %v102, %v180
    %182 = vmatprep.mubr.f32.mxu0 0.0
    %183 = vmatmul.mubr.f32.gmra.mrb[0].mxu0 %v110
    %v184 = vpop.f32.mrb[0].mxu0
    %v185 = vadd.f32 %v98, %v184
    %v186 = vpop.f32.mrb[0].mxu0
    %v187 = vadd.f32 %v102, %v186
    %188 = vdwg.mxu0
    %v189 = vld [vmem:[%s6] sm:$0xff]
    %v190 = vld [vmem:[%s6 + $0x8] sm:$0xff]
    %v191 = vld [vmem:[%s6 + $0x10] sm:$0xff]
    %v192 = vld [vmem:[%s6 + $0x18] sm:$0xff]
    %v193 = vld [vmem:[%s7] sm:$0xff]
    %v194 = vld [vmem:[%s7 + $0x8] sm:$0xff]
    %v195 = vld [vmem:[%s7 + $0x10] sm:$0xff]
    %v196 = vld [vmem:[%s7 + $0x18] sm:$0xff]
    %v197 = vld [vmem:[%s9] sm:$0x3]
    %v199 = vlaneseq
    %v200 = vshrl.u32 %v199, 7
    %v201 = vsub.s32 0, %v200
    %v202 = vrot.slane %v197, %v201
    %v203 = vlaneseq
    %v204 = vshrl.u32 %v203, 7
    %v205 = vsub.s32 1, %v204
    %v206 = vrot.slane %v197, %v205
    %vm209 = vcmask 130048
    %v211 = vsel %vm209, %v189, 0
    %v214 = vsel %vm209, %v190, 0
    %v217 = vsel %vm209, %v191, 0
    %v220 = vsel %vm209, %v192, 0
    %222 = vmatprep.subr.mxu0 %v194
    %223 = vmatpush1.msra.mxu0 %v193
    %224 = vmatprep.subr.mxu0 %v196
    %225 = vmatpush1.msra.mxu0 %v195
    %226 = vmatprep.subr.mxu0 0.0
    %227 = vmatpush1.msra.mxu0 0.0
    %228 = vmatprep.subr.mxu0 0.0
    %229 = vmatpush1.msra.mxu0 0.0
    %230 = vmatprep.subr.mxu0 0.0
    %231 = vmatpush1.msra.mxu0 0.0
    %232 = vmatprep.subr.mxu0 0.0
    %233 = vmatpush1.msra.mxu0 0.0
    %234 = vmatprep.subr.mxu0 0.0
    %235 = vmatpush1.msra.mxu0 0.0
    %236 = vmatprep.subr.mxu0 0.0
    %237 = vmatpush1.msra.mxu0 0.0
    %238 = vmatprep.subr.mxu0 0.0
    %239 = vmatpush1.msra.mxu0 0.0
    %240 = vmatprep.subr.mxu0 0.0
    %241 = vmatpush1.msra.mxu0 0.0
    %242 = vmatprep.subr.mxu0 0.0
    %243 = vmatpush1.msra.mxu0 0.0
    %244 = vmatprep.subr.mxu0 0.0
    %245 = vmatpush1.msra.mxu0 0.0
    %246 = vmatprep.subr.mxu0 0.0
    %247 = vmatpush1.msra.mxu0 0.0
    %248 = vmatprep.subr.mxu0 0.0
    %249 = vmatpush1.msra.mxu0 0.0
    %250 = vmatprep.subr.mxu0 0.0
    %251 = vmatpush1.msra.mxu0 0.0
    %252 = vmatprep.subr.mxu0 0.0
    %253 = vmatpush1.msra.mxu0 0.0
    %254 = vmatprep.subr.mxu0 0.0
    %255 = vmatpush1.msra.mxu0 0.0
    %256 = vmatprep.subr.mxu0 0.0
    %257 = vmatpush1.msra.mxu0 0.0
    %258 = vmatprep.subr.mxu0 0.0
    %259 = vmatpush1.msra.mxu0 0.0
    %260 = vmatprep.subr.mxu0 0.0
    %261 = vmatpush1.msra.mxu0 0.0
    %262 = vmatprep.subr.mxu0 0.0
    %263 = vmatpush1.msra.mxu0 0.0
    %264 = vmatprep.subr.mxu0 0.0
    %265 = vmatpush1.msra.mxu0 0.0
    %266 = vmatprep.subr.mxu0 0.0
    %267 = vmatpush1.msra.mxu0 0.0
    %268 = vmatprep.subr.mxu0 0.0
    %269 = vmatpush1.msra.mxu0 0.0
    %270 = vmatprep.subr.mxu0 0.0
    %271 = vmatpush1.msra.mxu0 0.0
    %272 = vmatprep.subr.mxu0 0.0
    %273 = vmatpush1.msra.mxu0 0.0
    %274 = vmatprep.subr.mxu0 0.0
    %275 = vmatpush1.msra.mxu0 0.0
    %276 = vmatprep.subr.mxu0 0.0
    %277 = vmatpush1.msra.mxu0 0.0
    %278 = vmatprep.subr.mxu0 0.0
    %279 = vmatpush1.msra.mxu0 0.0
    %280 = vmatprep.subr.mxu0 0.0
    %281 = vmatpush1.msra.mxu0 0.0
    %282 = vmatprep.subr.mxu0 0.0
    %283 = vmatpush1.msra.mxu0 0.0
    %284 = vmatprep.subr.mxu0 0.0
    %285 = vmatpush1.msra.mxu0 0.0
    %286 = vmatprep.mubr.f32.mxu0 0.0
    %287 = vmatmul.mubr.f32.gmra.mrb[0].mxu0 %v211
    %v288 = vpop.f32.mrb[0].mxu0
    %v289 = vadd.f32 %v202, %v288
    %v290 = vpop.f32.mrb[0].mxu0
    %v291 = vadd.f32 %v206, %v290
    %292 = vmatprep.mubr.f32.mxu0 0.0
    %293 = vmatmul.mubr.f32.gmra.mrb[0].mxu0 %v214
    %v294 = vpop.f32.mrb[0].mxu0
    %v295 = vadd.f32 %v202, %v294
    %v296 = vpop.f32.mrb[0].mxu0
    %v297 = vadd.f32 %v206, %v296
    %298 = vmatprep.mubr.f32.mxu0 0.0
    %299 = vmatmul.mubr.f32.gmra.mrb[0].mxu0 %v217
    %v300 = vpop.f32.mrb[0].mxu0
    %v301 = vadd.f32 %v202, %v300
    %v302 = vpop.f32.mrb[0].mxu0
    %v303 = vadd.f32 %v206, %v302
    %304 = vmatprep.mubr.f32.mxu0 0.0
    %305 = vmatmul.mubr.f32.gmra.mrb[0].mxu0 %v220
    %v306 = vpop.f32.mrb[0].mxu0
    %v307 = vadd.f32 %v202, %v306
    %v308 = vpop.f32.mrb[0].mxu0
    %v309 = vadd.f32 %v206, %v308
    %310 = vdwg.mxu0
    %v311 = vld [vmem:[#allocation5] sm:$0xff]
    %v312 = vld [vmem:[#allocation5 + $0x8] sm:$0xff]
    %v313 = vld [vmem:[#allocation5 + $0x10] sm:$0xff]
    %v314 = vld [vmem:[#allocation5 + $0x18] sm:$0xff]
    %v315 = vld [vmem:[#allocation5 + $0x20] sm:$0xff]
    %v316 = vld [vmem:[#allocation5 + $0x28] sm:$0xff]
    %v317 = vld [vmem:[#allocation5 + $0x30] sm:$0xff]
    %v318 = vld [vmem:[#allocation5 + $0x38] sm:$0xff]
    %v319 = vld [vmem:[#allocation5 + $0x40] sm:$0xff]
    %v320 = vld [vmem:[#allocation5 + $0x48] sm:$0xff]
    %v321 = vld [vmem:[#allocation5 + $0x50] sm:$0xff]
    %v322 = vld [vmem:[#allocation5 + $0x58] sm:$0xff]
    %v323 = vld [vmem:[#allocation5 + $0x60] sm:$0xff]
    %v324 = vld [vmem:[#allocation5 + $0x68] sm:$0xff]
    %v325 = vld [vmem:[#allocation5 + $0x70] sm:$0xff]
    %v326 = vld [vmem:[#allocation5 + $0x78] sm:$0xff]
    %v327 = vld [vmem:[#allocation7] sm:$0xff]
    %v328 = vld [vmem:[#allocation7 + $0x8] sm:$0xff]
    %v329 = vld [vmem:[#allocation7 + $0x10] sm:$0xff]
    %v330 = vld [vmem:[#allocation7 + $0x18] sm:$0xff]
    %v331 = vld [vmem:[#allocation7 + $0x20] sm:$0xff]
    %v332 = vld [vmem:[#allocation7 + $0x28] sm:$0xff]
    %v333 = vld [vmem:[#allocation7 + $0x30] sm:$0xff]
    %v334 = vld [vmem:[#allocation7 + $0x38] sm:$0xff]
    %v335 = vld [vmem:[#allocation7 + $0x40] sm:$0xff]
    %v336 = vld [vmem:[#allocation7 + $0x48] sm:$0xff]
    %v337 = vld [vmem:[#allocation7 + $0x50] sm:$0xff]
    %v338 = vld [vmem:[#allocation7 + $0x58] sm:$0xff]
    %v339 = vld [vmem:[#allocation7 + $0x60] sm:$0xff]
    %v340 = vld [vmem:[#allocation7 + $0x68] sm:$0xff]
    %v341 = vld [vmem:[#allocation7 + $0x70] sm:$0xff]
    %v342 = vld [vmem:[#allocation7 + $0x78] sm:$0xff]
    %v343 = vld [vmem:[%s4] sm:$0x3]
    %v344 = vld [vmem:[%s5] sm:$0x3]
    %v345 = vld [vmem:[%s10] sm:$0x3]
    %v346 = vld [vmem:[%s11] sm:$0x3]
    %vm347 = vcmask 523264
    %v349 = vsel %vm347, %v343, 0
    %351 = vmatprep.subr.mxu0 %v312
    %352 = vmatpush1.msra.mxu0 %v311
    %353 = vmatprep.subr.mxu0 %v314
    %354 = vmatpush1.msra.mxu0 %v313
    %355 = vmatprep.subr.mxu0 %v316
    %356 = vmatpush1.msra.mxu0 %v315
    %357 = vmatprep.subr.mxu0 %v318
    %358 = vmatpush1.msra.mxu0 %v317
    %359 = vmatprep.subr.mxu0 %v320
    %360 = vmatpush1.msra.mxu0 %v319
    %361 = vmatprep.subr.mxu0 %v322
    %362 = vmatpush1.msra.mxu0 %v321
    %363 = vmatprep.subr.mxu0 %v324
    %364 = vmatpush1.msra.mxu0 %v323
    %365 = vmatprep.subr.mxu0 %v326
    %366 = vmatpush1.msra.mxu0 %v325
    %367 = vmatprep.subr.mxu0 0.0
    %368 = vmatpush1.msra.mxu0 0.0
    %369 = vmatprep.subr.mxu0 0.0
    %370 = vmatpush1.msra.mxu0 0.0
    %371 = vmatprep.subr.mxu0 0.0
    %372 = vmatpush1.msra.mxu0 0.0
    %373 = vmatprep.subr.mxu0 0.0
    %374 = vmatpush1.msra.mxu0 0.0
    %375 = vmatprep.subr.mxu0 0.0
    %376 = vmatpush1.msra.mxu0 0.0
    %377 = vmatprep.subr.mxu0 0.0
    %378 = vmatpush1.msra.mxu0 0.0
    %379 = vmatprep.subr.mxu0 0.0
    %380 = vmatpush1.msra.mxu0 0.0
    %381 = vmatprep.subr.mxu0 0.0
    %382 = vmatpush1.msra.mxu0 0.0
    %383 = vmatprep.subr.mxu0 0.0
    %384 = vmatpush1.msra.mxu0 0.0
    %385 = vmatprep.subr.mxu0 0.0
    %386 = vmatpush1.msra.mxu0 0.0
    %387 = vmatprep.subr.mxu0 0.0
    %388 = vmatpush1.msra.mxu0 0.0
    %389 = vmatprep.subr.mxu0 0.0
    %390 = vmatpush1.msra.mxu0 0.0
    %391 = vmatprep.subr.mxu0 0.0
    %392 = vmatpush1.msra.mxu0 0.0
    %393 = vmatprep.subr.mxu0 0.0
    %394 = vmatpush1.msra.mxu0 0.0
    %395 = vmatprep.subr.mxu0 0.0
    %396 = vmatpush1.msra.mxu0 0.0
    %397 = vmatprep.subr.mxu0 0.0
    %398 = vmatpush1.msra.mxu0 0.0
    %399 = vmatprep.subr.mxu0 0.0
    %400 = vmatpush1.msra.mxu0 0.0
    %401 = vmatprep.subr.mxu0 0.0
    %402 = vmatpush1.msra.mxu0 0.0
    %403 = vmatprep.subr.mxu0 0.0
    %404 = vmatpush1.msra.mxu0 0.0
    %405 = vmatprep.subr.mxu0 0.0
    %406 = vmatpush1.msra.mxu0 0.0
    %407 = vmatprep.subr.mxu0 0.0
    %408 = vmatpush1.msra.mxu0 0.0
    %409 = vmatprep.subr.mxu0 0.0
    %410 = vmatpush1.msra.mxu0 0.0
    %411 = vmatprep.subr.mxu0 0.0
    %412 = vmatpush1.msra.mxu0 0.0
    %413 = vmatprep.subr.mxu0 0.0
    %414 = vmatpush1.msra.mxu0 0.0
    %415 = vmatprep.mubr.f32.mxu0 0.0
    %416 = vmatmul.mubr.f32.gmra.mrb[0].mxu0 %v349
    %v417 = vpop.f32.mrb[0].mxu0
    %v418 = vadd.f32 0.0, %v417
    %v419 = vpop.f32.mrb[0].mxu0
    %v420 = vadd.f32 0.0, %v419
    %421 = vdwg.mxu0
    %v422 = vadd.f32 %v179, %v418
    %v423 = vadd.f32 %v181, %v420
    %v424 = vxor.u32 %v422, 2147483648
    %v425 = vxor.u32 %v423, 2147483648
    %v426 = vmul.f32 %v424, 1.442695
    %v427 = vpow.pop %v426
    %v428 = vmul.f32 %v425, 1.442695
    %v429 = vpow.pop %v428
    %v430 = vadd.f32 %v427, 1.0
    %v431 = vadd.f32 %v429, 1.0
    %v432 = vrcp.pop %v430
    %v433 = vmul.f32 1.0, %v432
    %v434 = vrcp.pop %v431
    %v435 = vmul.f32 1.0, %v434
    %v436 = vtanh.pop %v423
    %438 = vrot.lane.b32.xlu0 %v344, 64
    %v439 = vpop.permute.xlu0 %438
    %v441 = vmul.f32 %v433, %v439
    %v442 = vmul.f32 %v433, %v436
    %444 = vrot.lane.b32.xlu0 %v442, 64
    %v445 = vpop.permute.xlu0 %444
    %v447 = vadd.f32 %v441, %v445
    %v448 = vtanh.pop %v447
    %v449 = vmul.f32 %v435, %v448
    %v452 = vunpack.c.l.s4 1983009808
    %v453 = vunpack.c.0.s8 %v452
    %v454 = vlaneseq
    %v455 = vshrl.u32 %v454, 7
    %v456 = vsub.s32 %v453, %v455
    %v457 = vrot.slane %v449, %v456
    %458 = vrot.lane.b32.xlu0 %v457, 64
    %v459 = vpop.permute.xlu0 %458
    %vm461 = vcmask 254976
    %462 = vst.msk [vmem:[#allocation8] sm:$0x3] %vm461, %v459
    %vm463 = vcmask 1042176
    %464 = vst.msk [vmem:[#allocation8 + $0x6] sm:$0x3] %vm463, %v449
    %v466 = vsel %vm347, %v345, 0
    %468 = vmatprep.subr.mxu0 %v328
    %469 = vmatpush1.msra.mxu0 %v327
    %470 = vmatprep.subr.mxu0 %v330
    %471 = vmatpush1.msra.mxu0 %v329
    %472 = vmatprep.subr.mxu0 %v332
    %473 = vmatpush1.msra.mxu0 %v331
    %474 = vmatprep.subr.mxu0 %v334
    %475 = vmatpush1.msra.mxu0 %v333
    %476 = vmatprep.subr.mxu0 %v336
    %477 = vmatpush1.msra.mxu0 %v335
    %478 = vmatprep.subr.mxu0 %v338
    %479 = vmatpush1.msra.mxu0 %v337
    %480 = vmatprep.subr.mxu0 %v340
    %481 = vmatpush1.msra.mxu0 %v339
    %482 = vmatprep.subr.mxu0 %v342
    %483 = vmatpush1.msra.mxu0 %v341
    %484 = vmatprep.subr.mxu0 0.0
    %485 = vmatpush1.msra.mxu0 0.0
    %486 = vmatprep.subr.mxu0 0.0
    %487 = vmatpush1.msra.mxu0 0.0
    %488 = vmatprep.subr.mxu0 0.0
    %489 = vmatpush1.msra.mxu0 0.0
    %490 = vmatprep.subr.mxu0 0.0
    %491 = vmatpush1.msra.mxu0 0.0
    %492 = vmatprep.subr.mxu0 0.0
    %493 = vmatpush1.msra.mxu0 0.0
    %494 = vmatprep.subr.mxu0 0.0
    %495 = vmatpush1.msra.mxu0 0.0
    %496 = vmatprep.subr.mxu0 0.0
    %497 = vmatpush1.msra.mxu0 0.0
    %498 = vmatprep.subr.mxu0 0.0
    %499 = vmatpush1.msra.mxu0 0.0
    %500 = vmatprep.subr.mxu0 0.0
    %501 = vmatpush1.msra.mxu0 0.0
    %502 = vmatprep.subr.mxu0 0.0
    %503 = vmatpush1.msra.mxu0 0.0
    %504 = vmatprep.subr.mxu0 0.0
    %505 = vmatpush1.msra.mxu0 0.0
    %506 = vmatprep.subr.mxu0 0.0
    %507 = vmatpush1.msra.mxu0 0.0
    %508 = vmatprep.subr.mxu0 0.0
    %509 = vmatpush1.msra.mxu0 0.0
    %510 = vmatprep.subr.mxu0 0.0
    %511 = vmatpush1.msra.mxu0 0.0
    %512 = vmatprep.subr.mxu0 0.0
    %513 = vmatpush1.msra.mxu0 0.0
    %514 = vmatprep.subr.mxu0 0.0
    %515 = vmatpush1.msra.mxu0 0.0
    %516 = vmatprep.subr.mxu0 0.0
    %517 = vmatpush1.msra.mxu0 0.0
    %518 = vmatprep.subr.mxu0 0.0
    %519 = vmatpush1.msra.mxu0 0.0
    %520 = vmatprep.subr.mxu0 0.0
    %521 = vmatpush1.msra.mxu0 0.0
    %522 = vmatprep.subr.mxu0 0.0
    %523 = vmatpush1.msra.mxu0 0.0
    %524 = vmatprep.subr.mxu0 0.0
    %525 = vmatpush1.msra.mxu0 0.0
    %526 = vmatprep.subr.mxu0 0.0
    %527 = vmatpush1.msra.mxu0 0.0
    %528 = vmatprep.subr.mxu0 0.0
    %529 = vmatpush1.msra.mxu0 0.0
    %530 = vmatprep.subr.mxu0 0.0
    %531 = vmatpush1.msra.mxu0 0.0
    %532 = vmatprep.mubr.f32.mxu0 0.0
    %533 = vmatmul.mubr.f32.gmra.mrb[0].mxu0 %v466
    %v534 = vpop.f32.mrb[0].mxu0
    %v535 = vadd.f32 0.0, %v534
    %v536 = vpop.f32.mrb[0].mxu0
    %v537 = vadd.f32 0.0, %v536
    %538 = vdwg.mxu0
    %v539 = vadd.f32 %v289, %v535
    %v540 = vadd.f32 %v291, %v537
    %v541 = vxor.u32 %v539, 2147483648
    %v542 = vxor.u32 %v540, 2147483648
    %v543 = vmul.f32 %v541, 1.442695
    %v544 = vpow.pop %v543
    %v545 = vmul.f32 %v542, 1.442695
    %v546 = vpow.pop %v545
    %v547 = vadd.f32 %v544, 1.0
    %v548 = vadd.f32 %v546, 1.0
    %v549 = vrcp.pop %v547
    %v550 = vmul.f32 1.0, %v549
    %v551 = vrcp.pop %v548
    %v552 = vmul.f32 1.0, %v551
    %v553 = vtanh.pop %v540
    %555 = vrot.lane.b32.xlu0 %v346, 64
    %v556 = vpop.permute.xlu0 %555
    %v558 = vmul.f32 %v550, %v556
    %v559 = vmul.f32 %v550, %v553
    %561 = vrot.lane.b32.xlu0 %v559, 64
    %v562 = vpop.permute.xlu0 %561
    %v564 = vadd.f32 %v558, %v562
    %v565 = vtanh.pop %v564
    %v566 = vmul.f32 %v552, %v565
    %v569 = vunpack.c.l.s4 1983009808
    %v570 = vunpack.c.0.s8 %v569
    %v571 = vlaneseq
    %v572 = vshrl.u32 %v571, 7
    %v573 = vsub.s32 %v570, %v572
    %v574 = vrot.slane %v566, %v573
    %575 = vrot.lane.b32.xlu0 %v574, 64
    %v576 = vpop.permute.xlu0 %575
    %578 = vst.msk [vmem:[#allocation8 + $0x8] sm:$0x3] %vm461, %v576
    %579 = vst.msk [vmem:[#allocation8 + $0x16] sm:$0x3] %vm463, %v566
    %580 = vrot.lane.b32.xlu0 %v449, 64
    %v581 = vpop.permute.xlu0 %580
    %v582 = vsel %vm347, %v581, 0
    %584 = vmatprep.subr.mxu0 %v312
    %585 = vmatpush1.msra.mxu0 %v311
    %586 = vmatprep.subr.mxu0 %v314
    %587 = vmatpush1.msra.mxu0 %v313
    %588 = vmatprep.subr.mxu0 %v316
    %589 = vmatpush1.msra.mxu0 %v315
    %590 = vmatprep.subr.mxu0 %v318
    %591 = vmatpush1.msra.mxu0 %v317
    %592 = vmatprep.subr.mxu0 %v320
    %593 = vmatpush1.msra.mxu0 %v319
    %594 = vmatprep.subr.mxu0 %v322
    %595 = vmatpush1.msra.mxu0 %v321
    %596 = vmatprep.subr.mxu0 %v324
    %597 = vmatpush1.msra.mxu0 %v323
    %598 = vmatprep.subr.mxu0 %v326
    %599 = vmatpush1.msra.mxu0 %v325
    %600 = vmatprep.subr.mxu0 0.0
    %601 = vmatpush1.msra.mxu0 0.0
    %602 = vmatprep.subr.mxu0 0.0
    %603 = vmatpush1.msra.mxu0 0.0
    %604 = vmatprep.subr.mxu0 0.0
    %605 = vmatpush1.msra.mxu0 0.0
    %606 = vmatprep.subr.mxu0 0.0
    %607 = vmatpush1.msra.mxu0 0.0
    %608 = vmatprep.subr.mxu0 0.0
    %609 = vmatpush1.msra.mxu0 0.0
    %610 = vmatprep.subr.mxu0 0.0
    %611 = vmatpush1.msra.mxu0 0.0
    %612 = vmatprep.subr.mxu0 0.0
    %613 = vmatpush1.msra.mxu0 0.0
    %614 = vmatprep.subr.mxu0 0.0
    %615 = vmatpush1.msra.mxu0 0.0
    %616 = vmatprep.subr.mxu0 0.0
    %617 = vmatpush1.msra.mxu0 0.0
    %618 = vmatprep.subr.mxu0 0.0
    %619 = vmatpush1.msra.mxu0 0.0
    %620 = vmatprep.subr.mxu0 0.0
    %621 = vmatpush1.msra.mxu0 0.0
    %622 = vmatprep.subr.mxu0 0.0
    %623 = vmatpush1.msra.mxu0 0.0
    %624 = vmatprep.subr.mxu0 0.0
    %625 = vmatpush1.msra.mxu0 0.0
    %626 = vmatprep.subr.mxu0 0.0
    %627 = vmatpush1.msra.mxu0 0.0
    %628 = vmatprep.subr.mxu0 0.0
    %629 = vmatpush1.msra.mxu0 0.0
    %630 = vmatprep.subr.mxu0 0.0
    %631 = vmatpush1.msra.mxu0 0.0
    %632 = vmatprep.subr.mxu0 0.0
    %633 = vmatpush1.msra.mxu0 0.0
    %634 = vmatprep.subr.mxu0 0.0
    %635 = vmatpush1.msra.mxu0 0.0
    %636 = vmatprep.subr.mxu0 0.0
    %637 = vmatpush1.msra.mxu0 0.0
    %638 = vmatprep.subr.mxu0 0.0
    %639 = vmatpush1.msra.mxu0 0.0
    %640 = vmatprep.subr.mxu0 0.0
    %641 = vmatpush1.msra.mxu0 0.0
    %642 = vmatprep.subr.mxu0 0.0
    %643 = vmatpush1.msra.mxu0 0.0
    %644 = vmatprep.subr.mxu0 0.0
    %645 = vmatpush1.msra.mxu0 0.0
    %646 = vmatprep.subr.mxu0 0.0
    %647 = vmatpush1.msra.mxu0 0.0
    %648 = vmatprep.mubr.f32.mxu0 0.0
    %649 = vmatmul.mubr.f32.gmra.mrb[0].mxu0 %v582
    %v650 = vpop.f32.mrb[0].mxu0
    %v651 = vadd.f32 0.0, %v650
    %v652 = vpop.f32.mrb[0].mxu0
    %v653 = vadd.f32 0.0, %v652
    %654 = vdwg.mxu0
    %v657 = vrot.slane %v651, 6
    %v658 = vrot.slane %v653, 6
    %v661 = vadd.f32 %v179, %v657
    %v662 = vadd.f32 %v181, %v658
    %v663 = vxor.u32 %v661, 2147483648
    %v664 = vxor.u32 %v662, 2147483648
    %v665 = vmul.f32 %v663, 1.442695
    %v666 = vpow.pop %v665
    %v667 = vmul.f32 %v664, 1.442695
    %v668 = vpow.pop %v667
    %v669 = vadd.f32 %v666, 1.0
    %v670 = vadd.f32 %v668, 1.0
    %v671 = vrcp.pop %v669
    %v672 = vmul.f32 1.0, %v671
    %v673 = vrcp.pop %v670
    %v674 = vmul.f32 1.0, %v673
    %v675 = vtanh.pop %v662
    %v677 = vrot.slane %v447, 6
    %v679 = vmul.f32 %v672, %v677
    %v680 = vmul.f32 %v672, %v675
    %682 = vrot.lane.b32.xlu0 %v680, 64
    %v683 = vpop.permute.xlu0 %682
    %v685 = vadd.f32 %v679, %v683
    %v686 = vtanh.pop %v685
    %v687 = vmul.f32 %v674, %v686
    %v690 = vunpack.c.l.s4 1983009808
    %v691 = vunpack.c.0.s8 %v690
    %v692 = vlaneseq
    %v693 = vshrl.u32 %v692, 7
    %v694 = vsub.s32 %v691, %v693
    %v695 = vrot.slane %v687, %v694
    %v696 = vcombine.high %v695, %v695
    %vm698 = vcmask 779776
    %699 = vst.msk [vmem:[#allocation8] sm:$0x3] %vm698, %v696
    %700 = vrot.lane.b32.xlu0 %v696, 64
    %v701 = vpop.permute.xlu0 %700
    %vm703 = vcmask 517376
    %704 = vst.msk [vmem:[#allocation8 + $0x6] sm:$0x3] %vm703, %v701
    %705 = vrot.lane.b32.xlu0 %v566, 64
    %v706 = vpop.permute.xlu0 %705
    %v707 = vsel %vm347, %v706, 0
    %709 = vmatprep.subr.mxu0 %v328
    %710 = vmatpush1.msra.mxu0 %v327
    %711 = vmatprep.subr.mxu0 %v330
    %712 = vmatpush1.msra.mxu0 %v329
    %713 = vmatprep.subr.mxu0 %v332
    %714 = vmatpush1.msra.mxu0 %v331
    %715 = vmatprep.subr.mxu0 %v334
    %716 = vmatpush1.msra.mxu0 %v333
    %717 = vmatprep.subr.mxu0 %v336
    %718 = vmatpush1.msra.mxu0 %v335
    %719 = vmatprep.subr.mxu0 %v338
    %720 = vmatpush1.msra.mxu0 %v337
    %721 = vmatprep.subr.mxu0 %v340
    %722 = vmatpush1.msra.mxu0 %v339
    %723 = vmatprep.subr.mxu0 %v342
    %724 = vmatpush1.msra.mxu0 %v341
    %725 = vmatprep.subr.mxu0 0.0
    %726 = vmatpush1.msra.mxu0 0.0
    %727 = vmatprep.subr.mxu0 0.0
    %728 = vmatpush1.msra.mxu0 0.0
    %729 = vmatprep.subr.mxu0 0.0
    %730 = vmatpush1.msra.mxu0 0.0
    %731 = vmatprep.subr.mxu0 0.0
    %732 = vmatpush1.msra.mxu0 0.0
    %733 = vmatprep.subr.mxu0 0.0
    %734 = vmatpush1.msra.mxu0 0.0
    %735 = vmatprep.subr.mxu0 0.0
    %736 = vmatpush1.msra.mxu0 0.0
    %737 = vmatprep.subr.mxu0 0.0
    %738 = vmatpush1.msra.mxu0 0.0
    %739 = vmatprep.subr.mxu0 0.0
    %740 = vmatpush1.msra.mxu0 0.0
    %741 = vmatprep.subr.mxu0 0.0
    %742 = vmatpush1.msra.mxu0 0.0
    %743 = vmatprep.subr.mxu0 0.0
    %744 = vmatpush1.msra.mxu0 0.0
    %745 = vmatprep.subr.mxu0 0.0
    %746 = vmatpush1.msra.mxu0 0.0
    %747 = vmatprep.subr.mxu0 0.0
    %748 = vmatpush1.msra.mxu0 0.0
    %749 = vmatprep.subr.mxu0 0.0
    %750 = vmatpush1.msra.mxu0 0.0
    %751 = vmatprep.subr.mxu0 0.0
    %752 = vmatpush1.msra.mxu0 0.0
    %753 = vmatprep.subr.mxu0 0.0
    %754 = vmatpush1.msra.mxu0 0.0
    %755 = vmatprep.subr.mxu0 0.0
    %756 = vmatpush1.msra.mxu0 0.0
    %757 = vmatprep.subr.mxu0 0.0
    %758 = vmatpush1.msra.mxu0 0.0
    %759 = vmatprep.subr.mxu0 0.0
    %760 = vmatpush1.msra.mxu0 0.0
    %761 = vmatprep.subr.mxu0 0.0
    %762 = vmatpush1.msra.mxu0 0.0
    %763 = vmatprep.subr.mxu0 0.0
    %764 = vmatpush1.msra.mxu0 0.0
    %765 = vmatprep.subr.mxu0 0.0
    %766 = vmatpush1.msra.mxu0 0.0
    %767 = vmatprep.subr.mxu0 0.0
    %768 = vmatpush1.msra.mxu0 0.0
    %769 = vmatprep.subr.mxu0 0.0
    %770 = vmatpush1.msra.mxu0 0.0
    %771 = vmatprep.subr.mxu0 0.0
    %772 = vmatpush1.msra.mxu0 0.0
    %773 = vmatprep.mubr.f32.mxu0 0.0
    %774 = vmatmul.mubr.f32.gmra.mrb[0].mxu0 %v707
    %v775 = vpop.f32.mrb[0].mxu0
    %v776 = vadd.f32 0.0, %v775
    %v777 = vpop.f32.mrb[0].mxu0
    %v778 = vadd.f32 0.0, %v777
    %779 = vdwg.mxu0
    %v782 = vrot.slane %v776, 6
    %v783 = vrot.slane %v778, 6
    %v786 = vadd.f32 %v289, %v782
    %v787 = vadd.f32 %v291, %v783
    %v788 = vxor.u32 %v786, 2147483648
    %v789 = vxor.u32 %v787, 2147483648
    %v790 = vmul.f32 %v788, 1.442695
    %v791 = vpow.pop %v790
    %v792 = vmul.f32 %v789, 1.442695
    %v793 = vpow.pop %v792
    %v794 = vadd.f32 %v791, 1.0
    %v795 = vadd.f32 %v793, 1.0
    %v796 = vrcp.pop %v794
    %v797 = vmul.f32 1.0, %v796
    %v798 = vrcp.pop %v795
    %v799 = vmul.f32 1.0, %v798
    %v800 = vtanh.pop %v787
    %v802 = vrot.slane %v564, 6
    %v804 = vmul.f32 %v797, %v802
    %v805 = vmul.f32 %v797, %v800
    %807 = vrot.lane.b32.xlu0 %v805, 64
    %v808 = vpop.permute.xlu0 %807
    %v810 = vadd.f32 %v804, %v808
    %v811 = vtanh.pop %v810
    %v812 = vmul.f32 %v799, %v811
    %v815 = vunpack.c.l.s4 1983009808
    %v816 = vunpack.c.0.s8 %v815
    %v817 = vlaneseq
    %v818 = vshrl.u32 %v817, 7
    %v819 = vsub.s32 %v816, %v818
    %v820 = vrot.slane %v812, %v819
    %v821 = vcombine.high %v820, %v820
    %823 = vst.msk [vmem:[#allocation8 + $0x8] sm:$0x3] %vm698, %v821
    %824 = vrot.lane.b32.xlu0 %v821, 64
    %v825 = vpop.permute.xlu0 %824
    %827 = vst.msk [vmem:[#allocation8 + $0x16] sm:$0x3] %vm703, %v825
    %v828 = vrot.slane %v687, 2
    %829 = vrot.lane.b32.xlu0 %v828, 64
    %v830 = vpop.permute.xlu0 %829
    %v831 = vsel %vm347, %v830, 0
    %833 = vmatprep.subr.mxu0 %v312
    %834 = vmatpush1.msra.mxu0 %v311
    %835 = vmatprep.subr.mxu0 %v314
    %836 = vmatpush1.msra.mxu0 %v313
    %837 = vmatprep.subr.mxu0 %v316
    %838 = vmatpush1.msra.mxu0 %v315
    %839 = vmatprep.subr.mxu0 %v318
    %840 = vmatpush1.msra.mxu0 %v317
    %841 = vmatprep.subr.mxu0 %v320
    %842 = vmatpush1.msra.mxu0 %v319
    %843 = vmatprep.subr.mxu0 %v322
    %844 = vmatpush1.msra.mxu0 %v321
    %845 = vmatprep.subr.mxu0 %v324
    %846 = vmatpush1.msra.mxu0 %v323
    %847 = vmatprep.subr.mxu0 %v326
    %848 = vmatpush1.msra.mxu0 %v325
    %849 = vmatprep.subr.mxu0 0.0
    %850 = vmatpush1.msra.mxu0 0.0
    %851 = vmatprep.subr.mxu0 0.0
    %852 = vmatpush1.msra.mxu0 0.0
    %853 = vmatprep.subr.mxu0 0.0
    %854 = vmatpush1.msra.mxu0 0.0
    %855 = vmatprep.subr.mxu0 0.0
    %856 = vmatpush1.msra.mxu0 0.0
    %857 = vmatprep.subr.mxu0 0.0
    %858 = vmatpush1.msra.mxu0 0.0
    %859 = vmatprep.subr.mxu0 0.0
    %860 = vmatpush1.msra.mxu0 0.0
    %861 = vmatprep.subr.mxu0 0.0
    %862 = vmatpush1.msra.mxu0 0.0
    %863 = vmatprep.subr.mxu0 0.0
    %864 = vmatpush1.msra.mxu0 0.0
    %865 = vmatprep.subr.mxu0 0.0
    %866 = vmatpush1.msra.mxu0 0.0
    %867 = vmatprep.subr.mxu0 0.0
    %868 = vmatpush1.msra.mxu0 0.0
    %869 = vmatprep.subr.mxu0 0.0
    %870 = vmatpush1.msra.mxu0 0.0
    %871 = vmatprep.subr.mxu0 0.0
    %872 = vmatpush1.msra.mxu0 0.0
    %873 = vmatprep.subr.mxu0 0.0
    %874 = vmatpush1.msra.mxu0 0.0
    %875 = vmatprep.subr.mxu0 0.0
    %876 = vmatpush1.msra.mxu0 0.0
    %877 = vmatprep.subr.mxu0 0.0
    %878 = vmatpush1.msra.mxu0 0.0
    %879 = vmatprep.subr.mxu0 0.0
    %880 = vmatpush1.msra.mxu0 0.0
    %881 = vmatprep.subr.mxu0 0.0
    %882 = vmatpush1.msra.mxu0 0.0
    %883 = vmatprep.subr.mxu0 0.0
    %884 = vmatpush1.msra.mxu0 0.0
    %885 = vmatprep.subr.mxu0 0.0
    %886 = vmatpush1.msra.mxu0 0.0
    %887 = vmatprep.subr.mxu0 0.0
    %888 = vmatpush1.msra.mxu0 0.0
    %889 = vmatprep.subr.mxu0 0.0
    %890 = vmatpush1.msra.mxu0 0.0
    %891 = vmatprep.subr.mxu0 0.0
    %892 = vmatpush1.msra.mxu0 0.0
    %893 = vmatprep.subr.mxu0 0.0
    %894 = vmatpush1.msra.mxu0 0.0
    %895 = vmatprep.subr.mxu0 0.0
    %896 = vmatpush1.msra.mxu0 0.0
    %897 = vmatprep.mubr.f32.mxu0 0.0
    %898 = vmatmul.mubr.f32.gmra.mrb[0].mxu0 %v831
    %v899 = vpop.f32.mrb[0].mxu0
    %v900 = vadd.f32 0.0, %v899
    %v901 = vpop.f32.mrb[0].mxu0
    %v902 = vadd.f32 0.0, %v901
    %903 = vdwg.mxu0
    %v906 = vrot.slane %v900, 4
    %v907 = vrot.slane %v902, 4
    %v910 = vadd.f32 %v179, %v906
    %v911 = vadd.f32 %v181, %v907
    %v912 = vxor.u32 %v910, 2147483648
    %v913 = vxor.u32 %v911, 2147483648
    %v914 = vmul.f32 %v912, 1.442695
    %v915 = vpow.pop %v914
    %v916 = vmul.f32 %v913, 1.442695
    %v917 = vpow.pop %v916
    %v918 = vadd.f32 %v915, 1.0
    %v919 = vadd.f32 %v917, 1.0
    %v920 = vrcp.pop %v918
    %v921 = vmul.f32 1.0, %v920
    %v922 = vrcp.pop %v919
    %v923 = vmul.f32 1.0, %v922
    %v924 = vtanh.pop %v911
    %v926 = vrot.slane %v685, 6
    %v928 = vmul.f32 %v921, %v926
    %v929 = vmul.f32 %v921, %v924
    %931 = vrot.lane.b32.xlu0 %v929, 64
    %v932 = vpop.permute.xlu0 %931
    %v934 = vadd.f32 %v928, %v932
    %v935 = vtanh.pop %v934
    %v936 = vmul.f32 %v923, %v935
    %v938 = vcombine.high %v936, %v936
    %v940 = vunpack.c.l.s4 1983009808
    %v941 = vunpack.c.0.s8 %v940
    %v942 = vlaneseq
    %v943 = vshrl.u32 %v942, 7
    %v944 = vsub.s32 %v941, %v943
    %v945 = vrot.slane %v938, %v944
    %946 = vrot.lane.b32.xlu0 %v945, 64
    %v947 = vpop.permute.xlu0 %946
    %949 = vst.msk [vmem:[#allocation8 + $0x2] sm:$0x3] %vm461, %v947
    %951 = vst.msk [vmem:[#allocation8 + $0x4] sm:$0x3] %vm463, %v945
    %v952 = vrot.slane %v812, 2
    %953 = vrot.lane.b32.xlu0 %v952, 64
    %v954 = vpop.permute.xlu0 %953
    %v955 = vsel %vm347, %v954, 0
    %957 = vmatprep.subr.mxu0 %v328
    %958 = vmatpush1.msra.mxu0 %v327
    %959 = vmatprep.subr.mxu0 %v330
    %960 = vmatpush1.msra.mxu0 %v329
    %961 = vmatprep.subr.mxu0 %v332
    %962 = vmatpush1.msra.mxu0 %v331
    %963 = vmatprep.subr.mxu0 %v334
    %964 = vmatpush1.msra.mxu0 %v333
    %965 = vmatprep.subr.mxu0 %v336
    %966 = vmatpush1.msra.mxu0 %v335
    %967 = vmatprep.subr.mxu0 %v338
    %968 = vmatpush1.msra.mxu0 %v337
    %969 = vmatprep.subr.mxu0 %v340
    %970 = vmatpush1.msra.mxu0 %v339
    %971 = vmatprep.subr.mxu0 %v342
    %972 = vmatpush1.msra.mxu0 %v341
    %973 = vmatprep.subr.mxu0 0.0
    %974 = vmatpush1.msra.mxu0 0.0
    %975 = vmatprep.subr.mxu0 0.0
    %976 = vmatpush1.msra.mxu0 0.0
    %977 = vmatprep.subr.mxu0 0.0
    %978 = vmatpush1.msra.mxu0 0.0
    %979 = vmatprep.subr.mxu0 0.0
    %980 = vmatpush1.msra.mxu0 0.0
    %981 = vmatprep.subr.mxu0 0.0
    %982 = vmatpush1.msra.mxu0 0.0
    %983 = vmatprep.subr.mxu0 0.0
    %984 = vmatpush1.msra.mxu0 0.0
    %985 = vmatprep.subr.mxu0 0.0
    %986 = vmatpush1.msra.mxu0 0.0
    %987 = vmatprep.subr.mxu0 0.0
    %988 = vmatpush1.msra.mxu0 0.0
    %989 = vmatprep.subr.mxu0 0.0
    %990 = vmatpush1.msra.mxu0 0.0
    %991 = vmatprep.subr.mxu0 0.0
    %992 = vmatpush1.msra.mxu0 0.0
    %993 = vmatprep.subr.mxu0 0.0
    %994 = vmatpush1.msra.mxu0 0.0
    %995 = vmatprep.subr.mxu0 0.0
    %996 = vmatpush1.msra.mxu0 0.0
    %997 = vmatprep.subr.mxu0 0.0
    %998 = vmatpush1.msra.mxu0 0.0
    %999 = vmatprep.subr.mxu0 0.0
    %1000 = vmatpush1.msra.mxu0 0.0
    %1001 = vmatprep.subr.mxu0 0.0
    %1002 = vmatpush1.msra.mxu0 0.0
    %1003 = vmatprep.subr.mxu0 0.0
    %1004 = vmatpush1.msra.mxu0 0.0
    %1005 = vmatprep.subr.mxu0 0.0
    %1006 = vmatpush1.msra.mxu0 0.0
    %1007 = vmatprep.subr.mxu0 0.0
    %1008 = vmatpush1.msra.mxu0 0.0
    %1009 = vmatprep.subr.mxu0 0.0
    %1010 = vmatpush1.msra.mxu0 0.0
    %1011 = vmatprep.subr.mxu0 0.0
    %1012 = vmatpush1.msra.mxu0 0.0
    %1013 = vmatprep.subr.mxu0 0.0
    %1014 = vmatpush1.msra.mxu0 0.0
    %1015 = vmatprep.subr.mxu0 0.0
    %1016 = vmatpush1.msra.mxu0 0.0
    %1017 = vmatprep.subr.mxu0 0.0
    %1018 = vmatpush1.msra.mxu0 0.0
    %1019 = vmatprep.subr.mxu0 0.0
    %1020 = vmatpush1.msra.mxu0 0.0
    %1021 = vmatprep.mubr.f32.mxu0 0.0
    %1022 = vmatmul.mubr.f32.gmra.mrb[0].mxu0 %v955
    %v1023 = vpop.f32.mrb[0].mxu0
    %v1024 = vadd.f32 0.0, %v1023
    %v1025 = vpop.f32.mrb[0].mxu0
    %v1026 = vadd.f32 0.0, %v1025
    %1027 = vdwg.mxu0
    %v1030 = vrot.slane %v1024, 4
    %v1031 = vrot.slane %v1026, 4
    %v1034 = vadd.f32 %v289, %v1030
    %v1035 = vadd.f32 %v291, %v1031
    %v1036 = vxor.u32 %v1034, 2147483648
    %v1037 = vxor.u32 %v1035, 2147483648
    %v1038 = vmul.f32 %v1036, 1.442695
    %v1039 = vpow.pop %v1038
    %v1040 = vmul.f32 %v1037, 1.442695
    %v1041 = vpow.pop %v1040
    %v1042 = vadd.f32 %v1039, 1.0
    %v1043 = vadd.f32 %v1041, 1.0
    %v1044 = vrcp.pop %v1042
    %v1045 = vmul.f32 1.0, %v1044
    %v1046 = vrcp.pop %v1043
    %v1047 = vmul.f32 1.0, %v1046
    %v1048 = vtanh.pop %v1035
    %v1050 = vrot.slane %v810, 6
    %v1052 = vmul.f32 %v1045, %v1050
    %v1053 = vmul.f32 %v1045, %v1048
    %1055 = vrot.lane.b32.xlu0 %v1053, 64
    %v1056 = vpop.permute.xlu0 %1055
    %v1058 = vadd.f32 %v1052, %v1056
    %v1059 = vtanh.pop %v1058
    %v1060 = vmul.f32 %v1047, %v1059
    %v1062 = vcombine.high %v1060, %v1060
    %v1064 = vunpack.c.l.s4 1983009808
    %v1065 = vunpack.c.0.s8 %v1064
    %v1066 = vlaneseq
    %v1067 = vshrl.u32 %v1066, 7
    %v1068 = vsub.s32 %v1065, %v1067
    %v1069 = vrot.slane %v1062, %v1068
    %1070 = vrot.lane.b32.xlu0 %v1069, 64
    %v1071 = vpop.permute.xlu0 %1070
    %1073 = vst.msk [vmem:[#allocation8 + $0xa] sm:$0x3] %vm461, %v1071
    %1075 = vst.msk [vmem:[#allocation8 + $0x14] sm:$0x3] %vm463, %v1069
    %v1076 = vrot.slane %v936, 4
    %1077 = vrot.lane.b32.xlu0 %v1076, 64
    %v1078 = vpop.permute.xlu0 %1077
    %v1079 = vsel %vm347, %v1078, 0
    %1081 = vmatprep.subr.mxu0 %v312
    %1082 = vmatpush1.msra.mxu0 %v311
    %1083 = vmatprep.subr.mxu0 %v314
    %1084 = vmatpush1.msra.mxu0 %v313
    %1085 = vmatprep.subr.mxu0 %v316
    %1086 = vmatpush1.msra.mxu0 %v315
    %1087 = vmatprep.subr.mxu0 %v318
    %1088 = vmatpush1.msra.mxu0 %v317
    %1089 = vmatprep.subr.mxu0 %v320
    %1090 = vmatpush1.msra.mxu0 %v319
    %1091 = vmatprep.subr.mxu0 %v322
    %1092 = vmatpush1.msra.mxu0 %v321
    %1093 = vmatprep.subr.mxu0 %v324
    %1094 = vmatpush1.msra.mxu0 %v323
    %1095 = vmatprep.subr.mxu0 %v326
    %1096 = vmatpush1.msra.mxu0 %v325
    %1097 = vmatprep.subr.mxu0 0.0
    %1098 = vmatpush1.msra.mxu0 0.0
    %1099 = vmatprep.subr.mxu0 0.0
    %1100 = vmatpush1.msra.mxu0 0.0
    %1101 = vmatprep.subr.mxu0 0.0
    %1102 = vmatpush1.msra.mxu0 0.0
    %1103 = vmatprep.subr.mxu0 0.0
    %1104 = vmatpush1.msra.mxu0 0.0
    %1105 = vmatprep.subr.mxu0 0.0
    %1106 = vmatpush1.msra.mxu0 0.0
    %1107 = vmatprep.subr.mxu0 0.0
    %1108 = vmatpush1.msra.mxu0 0.0
    %1109 = vmatprep.subr.mxu0 0.0
    %1110 = vmatpush1.msra.mxu0 0.0
    %1111 = vmatprep.subr.mxu0 0.0
    %1112 = vmatpush1.msra.mxu0 0.0
    %1113 = vmatprep.subr.mxu0 0.0
    %1114 = vmatpush1.msra.mxu0 0.0
    %1115 = vmatprep.subr.mxu0 0.0
    %1116 = vmatpush1.msra.mxu0 0.0
    %1117 = vmatprep.subr.mxu0 0.0
    %1118 = vmatpush1.msra.mxu0 0.0
    %1119 = vmatprep.subr.mxu0 0.0
    %1120 = vmatpush1.msra.mxu0 0.0
    %1121 = vmatprep.subr.mxu0 0.0
    %1122 = vmatpush1.msra.mxu0 0.0
    %1123 = vmatprep.subr.mxu0 0.0
    %1124 = vmatpush1.msra.mxu0 0.0
    %1125 = vmatprep.subr.mxu0 0.0
    %1126 = vmatpush1.msra.mxu0 0.0
    %1127 = vmatprep.subr.mxu0 0.0
    %1128 = vmatpush1.msra.mxu0 0.0
    %1129 = vmatprep.subr.mxu0 0.0
    %1130 = vmatpush1.msra.mxu0 0.0
    %1131 = vmatprep.subr.mxu0 0.0
    %1132 = vmatpush1.msra.mxu0 0.0
    %1133 = vmatprep.subr.mxu0 0.0
    %1134 = vmatpush1.msra.mxu0 0.0
    %1135 = vmatprep.subr.mxu0 0.0
    %1136 = vmatpush1.msra.mxu0 0.0
    %1137 = vmatprep.subr.mxu0 0.0
    %1138 = vmatpush1.msra.mxu0 0.0
    %1139 = vmatprep.subr.mxu0 0.0
    %1140 = vmatpush1.msra.mxu0 0.0
    %1141 = vmatprep.subr.mxu0 0.0
    %1142 = vmatpush1.msra.mxu0 0.0
    %1143 = vmatprep.subr.mxu0 0.0
    %1144 = vmatpush1.msra.mxu0 0.0
    %1145 = vmatprep.mubr.f32.mxu0 0.0
    %1146 = vmatmul.mubr.f32.gmra.mrb[0].mxu0 %v1079
    %v1147 = vpop.f32.mrb[0].mxu0
    %v1148 = vadd.f32 0.0, %v1147
    %v1149 = vpop.f32.mrb[0].mxu0
    %v1150 = vadd.f32 0.0, %v1149
    %1151 = vdwg.mxu0
    %v1154 = vrot.slane %v1148, 2
    %v1155 = vrot.slane %v1150, 2
    %v1158 = vadd.f32 %v179, %v1154
    %v1159 = vadd.f32 %v181, %v1155
    %v1160 = vxor.u32 %v1158, 2147483648
    %v1161 = vxor.u32 %v1159, 2147483648
    %v1162 = vmul.f32 %v1160, 1.442695
    %v1163 = vpow.pop %v1162
    %v1164 = vmul.f32 %v1161, 1.442695
    %v1165 = vpow.pop %v1164
    %v1166 = vadd.f32 %v1163, 1.0
    %v1167 = vadd.f32 %v1165, 1.0
    %v1168 = vrcp.pop %v1166
    %v1169 = vmul.f32 1.0, %v1168
    %v1170 = vrcp.pop %v1167
    %v1171 = vmul.f32 1.0, %v1170
    %v1172 = vtanh.pop %v1159
    %v1174 = vrot.slane %v934, 6
    %v1176 = vmul.f32 %v1169, %v1174
    %v1177 = vmul.f32 %v1169, %v1172
    %1179 = vrot.lane.b32.xlu0 %v1177, 64
    %v1180 = vpop.permute.xlu0 %1179
    %v1182 = vadd.f32 %v1176, %v1180
    %v1183 = vtanh.pop %v1182
    %v1184 = vmul.f32 %v1171, %v1183
    %v1186 = vcombine.high %v1184, %v1184
    %v1188 = vunpack.c.l.s4 1983009808
    %v1189 = vunpack.c.0.s8 %v1188
    %v1190 = vlaneseq
    %v1191 = vshrl.u32 %v1190, 7
    %v1192 = vsub.s32 %v1189, %v1191
    %v1193 = vrot.slane %v1186, %v1192
    %v1194 = vcombine.high %v1193, %v1193
    %1196 = vst.msk [vmem:[#allocation8 + $0x2] sm:$0x3] %vm698, %v1194
    %1197 = vrot.lane.b32.xlu0 %v1194, 64
    %v1198 = vpop.permute.xlu0 %1197
    %1200 = vst.msk [vmem:[#allocation8 + $0x4] sm:$0x3] %vm703, %v1198
    %v1201 = vrot.slane %v1060, 4
    %1202 = vrot.lane.b32.xlu0 %v1201, 64
    %v1203 = vpop.permute.xlu0 %1202
    %v1204 = vsel %vm347, %v1203, 0
    %1206 = vmatprep.subr.mxu0 %v328
    %1207 = vmatpush1.msra.mxu0 %v327
    %1208 = vmatprep.subr.mxu0 %v330
    %1209 = vmatpush1.msra.mxu0 %v329
    %1210 = vmatprep.subr.mxu0 %v332
    %1211 = vmatpush1.msra.mxu0 %v331
    %1212 = vmatprep.subr.mxu0 %v334
    %1213 = vmatpush1.msra.mxu0 %v333
    %1214 = vmatprep.subr.mxu0 %v336
    %1215 = vmatpush1.msra.mxu0 %v335
    %1216 = vmatprep.subr.mxu0 %v338
    %1217 = vmatpush1.msra.mxu0 %v337
    %1218 = vmatprep.subr.mxu0 %v340
    %1219 = vmatpush1.msra.mxu0 %v339
    %1220 = vmatprep.subr.mxu0 %v342
    %1221 = vmatpush1.msra.mxu0 %v341
    %1222 = vmatprep.subr.mxu0 0.0
    %1223 = vmatpush1.msra.mxu0 0.0
    %1224 = vmatprep.subr.mxu0 0.0
    %1225 = vmatpush1.msra.mxu0 0.0
    %1226 = vmatprep.subr.mxu0 0.0
    %1227 = vmatpush1.msra.mxu0 0.0
    %1228 = vmatprep.subr.mxu0 0.0
    %1229 = vmatpush1.msra.mxu0 0.0
    %1230 = vmatprep.subr.mxu0 0.0
    %1231 = vmatpush1.msra.mxu0 0.0
    %1232 = vmatprep.subr.mxu0 0.0
    %1233 = vmatpush1.msra.mxu0 0.0
    %1234 = vmatprep.subr.mxu0 0.0
    %1235 = vmatpush1.msra.mxu0 0.0
    %1236 = vmatprep.subr.mxu0 0.0
    %1237 = vmatpush1.msra.mxu0 0.0
    %1238 = vmatprep.subr.mxu0 0.0
    %1239 = vmatpush1.msra.mxu0 0.0
    %1240 = vmatprep.subr.mxu0 0.0
    %1241 = vmatpush1.msra.mxu0 0.0
    %1242 = vmatprep.subr.mxu0 0.0
    %1243 = vmatpush1.msra.mxu0 0.0
    %1244 = vmatprep.subr.mxu0 0.0
    %1245 = vmatpush1.msra.mxu0 0.0
    %1246 = vmatprep.subr.mxu0 0.0
    %1247 = vmatpush1.msra.mxu0 0.0
    %1248 = vmatprep.subr.mxu0 0.0
    %1249 = vmatpush1.msra.mxu0 0.0
    %1250 = vmatprep.subr.mxu0 0.0
    %1251 = vmatpush1.msra.mxu0 0.0
    %1252 = vmatprep.subr.mxu0 0.0
    %1253 = vmatpush1.msra.mxu0 0.0
    %1254 = vmatprep.subr.mxu0 0.0
    %1255 = vmatpush1.msra.mxu0 0.0
    %1256 = vmatprep.subr.mxu0 0.0
    %1257 = vmatpush1.msra.mxu0 0.0
    %1258 = vmatprep.subr.mxu0 0.0
    %1259 = vmatpush1.msra.mxu0 0.0
    %1260 = vmatprep.subr.mxu0 0.0
    %1261 = vmatpush1.msra.mxu0 0.0
    %1262 = vmatprep.subr.mxu0 0.0
    %1263 = vmatpush1.msra.mxu0 0.0
    %1264 = vmatprep.subr.mxu0 0.0
    %1265 = vmatpush1.msra.mxu0 0.0
    %1266 = vmatprep.subr.mxu0 0.0
    %1267 = vmatpush1.msra.mxu0 0.0
    %1268 = vmatprep.subr.mxu0 0.0
    %1269 = vmatpush1.msra.mxu0 0.0
    %1270 = vmatprep.mubr.f32.mxu0 0.0
    %1271 = vmatmul.mubr.f32.gmra.mrb[0].mxu0 %v1204
    %v1272 = vpop.f32.mrb[0].mxu0
    %v1273 = vadd.f32 0.0, %v1272
    %v1274 = vpop.f32.mrb[0].mxu0
    %v1275 = vadd.f32 0.0, %v1274
    %1276 = vdwg.mxu0
    %v1279 = vrot.slane %v1273, 2
    %v1280 = vrot.slane %v1275, 2
    %v1283 = vadd.f32 %v289, %v1279
    %v1284 = vadd.f32 %v291, %v1280
    %v1285 = vxor.u32 %v1283, 2147483648
    %v1286 = vxor.u32 %v1284, 2147483648
    %v1287 = vmul.f32 %v1285, 1.442695
    %v1288 = vpow.pop %v1287
    %v1289 = vmul.f32 %v1286, 1.442695
    %v1290 = vpow.pop %v1289
    %v1291 = vadd.f32 %v1288, 1.0
    %v1292 = vadd.f32 %v1290, 1.0
    %v1293 = vrcp.pop %v1291
    %v1294 = vmul.f32 1.0, %v1293
    %v1295 = vrcp.pop %v1292
    %v1296 = vmul.f32 1.0, %v1295
    %v1297 = vtanh.pop %v1284
    %v1299 = vrot.slane %v1058, 6
    %v1301 = vmul.f32 %v1294, %v1299
    %v1302 = vmul.f32 %v1294, %v1297
    %1304 = vrot.lane.b32.xlu0 %v1302, 64
    %v1305 = vpop.permute.xlu0 %1304
    %v1307 = vadd.f32 %v1301, %v1305
    %v1308 = vtanh.pop %v1307
    %v1309 = vmul.f32 %v1296, %v1308
    %v1311 = vcombine.high %v1309, %v1309
    %v1313 = vunpack.c.l.s4 1983009808
    %v1314 = vunpack.c.0.s8 %v1313
    %v1315 = vlaneseq
    %v1316 = vshrl.u32 %v1315, 7
    %v1317 = vsub.s32 %v1314, %v1316
    %v1318 = vrot.slane %v1311, %v1317
    %v1319 = vcombine.high %v1318, %v1318
    %1321 = vst.msk [vmem:[#allocation8 + $0xa] sm:$0x3] %vm698, %v1319
    %1322 = vrot.lane.b32.xlu0 %v1319, 64
    %v1323 = vpop.permute.xlu0 %1322
    %1325 = vst.msk [vmem:[#allocation8 + $0x14] sm:$0x3] %vm703, %v1323
    %v1326 = vrot.slane %v1184, 6
    %1327 = vrot.lane.b32.xlu0 %v1326, 64
    %v1328 = vpop.permute.xlu0 %1327
    %v1329 = vsel %vm347, %v1328, 0
    %1331 = vmatprep.subr.mxu0 %v312
    %1332 = vmatpush1.msra.mxu0 %v311
    %1333 = vmatprep.subr.mxu0 %v314
    %1334 = vmatpush1.msra.mxu0 %v313
    %1335 = vmatprep.subr.mxu0 %v316
    %1336 = vmatpush1.msra.mxu0 %v315
    %1337 = vmatprep.subr.mxu0 %v318
    %1338 = vmatpush1.msra.mxu0 %v317
    %1339 = vmatprep.subr.mxu0 %v320
    %1340 = vmatpush1.msra.mxu0 %v319
    %1341 = vmatprep.subr.mxu0 %v322
    %1342 = vmatpush1.msra.mxu0 %v321
    %1343 = vmatprep.subr.mxu0 %v324
    %1344 = vmatpush1.msra.mxu0 %v323
    %1345 = vmatprep.subr.mxu0 %v326
    %1346 = vmatpush1.msra.mxu0 %v325
    %1347 = vmatprep.subr.mxu0 0.0
    %1348 = vmatpush1.msra.mxu0 0.0
    %1349 = vmatprep.subr.mxu0 0.0
    %1350 = vmatpush1.msra.mxu0 0.0
    %1351 = vmatprep.subr.mxu0 0.0
    %1352 = vmatpush1.msra.mxu0 0.0
    %1353 = vmatprep.subr.mxu0 0.0
    %1354 = vmatpush1.msra.mxu0 0.0
    %1355 = vmatprep.subr.mxu0 0.0
    %1356 = vmatpush1.msra.mxu0 0.0
    %1357 = vmatprep.subr.mxu0 0.0
    %1358 = vmatpush1.msra.mxu0 0.0
    %1359 = vmatprep.subr.mxu0 0.0
    %1360 = vmatpush1.msra.mxu0 0.0
    %1361 = vmatprep.subr.mxu0 0.0
    %1362 = vmatpush1.msra.mxu0 0.0
    %1363 = vmatprep.subr.mxu0 0.0
    %1364 = vmatpush1.msra.mxu0 0.0
    %1365 = vmatprep.subr.mxu0 0.0
    %1366 = vmatpush1.msra.mxu0 0.0
    %1367 = vmatprep.subr.mxu0 0.0
    %1368 = vmatpush1.msra.mxu0 0.0
    %1369 = vmatprep.subr.mxu0 0.0
    %1370 = vmatpush1.msra.mxu0 0.0
    %1371 = vmatprep.subr.mxu0 0.0
    %1372 = vmatpush1.msra.mxu0 0.0
    %1373 = vmatprep.subr.mxu0 0.0
    %1374 = vmatpush1.msra.mxu0 0.0
    %1375 = vmatprep.subr.mxu0 0.0
    %1376 = vmatpush1.msra.mxu0 0.0
    %1377 = vmatprep.subr.mxu0 0.0
    %1378 = vmatpush1.msra.mxu0 0.0
    %1379 = vmatprep.subr.mxu0 0.0
    %1380 = vmatpush1.msra.mxu0 0.0
    %1381 = vmatprep.subr.mxu0 0.0
    %1382 = vmatpush1.msra.mxu0 0.0
    %1383 = vmatprep.subr.mxu0 0.0
    %1384 = vmatpush1.msra.mxu0 0.0
    %1385 = vmatprep.subr.mxu0 0.0
    %1386 = vmatpush1.msra.mxu0 0.0
    %1387 = vmatprep.subr.mxu0 0.0
    %1388 = vmatpush1.msra.mxu0 0.0
    %1389 = vmatprep.subr.mxu0 0.0
    %1390 = vmatpush1.msra.mxu0 0.0
    %1391 = vmatprep.subr.mxu0 0.0
    %1392 = vmatpush1.msra.mxu0 0.0
    %1393 = vmatprep.subr.mxu0 0.0
    %1394 = vmatpush1.msra.mxu0 0.0
    %1395 = vmatprep.mubr.f32.mxu0 0.0
    %1396 = vmatmul.mubr.f32.gmra.mrb[0].mxu0 %v1329
    %v1397 = vpop.f32.mrb[0].mxu0
    %v1398 = vadd.f32 0.0, %v1397
    %v1399 = vpop.f32.mrb[0].mxu0
    %v1400 = vadd.f32 0.0, %v1399
    %1401 = vdwg.mxu0
    %v1402 = vadd.f32 %v185, %v1398
    %v1403 = vadd.f32 %v187, %v1400
    %v1404 = vxor.u32 %v1402, 2147483648
    %v1405 = vxor.u32 %v1403, 2147483648
    %v1406 = vmul.f32 %v1404, 1.442695
    %v1407 = vpow.pop %v1406
    %v1408 = vmul.f32 %v1405, 1.442695
    %v1409 = vpow.pop %v1408
    %v1410 = vadd.f32 %v1407, 1.0
    %v1411 = vadd.f32 %v1409, 1.0
    %v1412 = vrcp.pop %v1410
    %v1413 = vmul.f32 1.0, %v1412
    %v1414 = vrcp.pop %v1411
    %v1415 = vmul.f32 1.0, %v1414
    %v1416 = vtanh.pop %v1403
    %v1418 = vrot.slane %v1182, 6
    %v1420 = vmul.f32 %v1413, %v1418
    %v1421 = vmul.f32 %v1413, %v1416
    %1423 = vrot.lane.b32.xlu0 %v1421, 64
    %v1424 = vpop.permute.xlu0 %1423
    %v1426 = vadd.f32 %v1420, %v1424
    %v1427 = vtanh.pop %v1426
    %v1428 = vmul.f32 %v1415, %v1427
    %v1431 = vunpack.c.l.s4 1983009808
    %v1432 = vunpack.c.0.s8 %v1431
    %v1433 = vlaneseq
    %v1434 = vshrl.u32 %v1433, 7
    %v1435 = vsub.s32 %v1432, %v1434
    %v1436 = vrot.slane %v1428, %v1435
    %1437 = vrot.lane.b32.xlu0 %v1436, 64
    %v1438 = vpop.permute.xlu0 %1437
    %1440 = vst.msk [vmem:[#allocation8 + $0x4] sm:$0x3] %vm461, %v1438
    %1441 = vst.msk [vmem:[#allocation8 + $0x2] sm:$0x3] %vm463, %v1428
    %v1442 = vrot.slane %v1309, 6
    %1443 = vrot.lane.b32.xlu0 %v1442, 64
    %v1444 = vpop.permute.xlu0 %1443
    %v1445 = vsel %vm347, %v1444, 0
    %1447 = vmatprep.subr.mxu0 %v328
    %1448 = vmatpush1.msra.mxu0 %v327
    %1449 = vmatprep.subr.mxu0 %v330
    %1450 = vmatpush1.msra.mxu0 %v329
    %1451 = vmatprep.subr.mxu0 %v332
    %1452 = vmatpush1.msra.mxu0 %v331
    %1453 = vmatprep.subr.mxu0 %v334
    %1454 = vmatpush1.msra.mxu0 %v333
    %1455 = vmatprep.subr.mxu0 %v336
    %1456 = vmatpush1.msra.mxu0 %v335
    %1457 = vmatprep.subr.mxu0 %v338
    %1458 = vmatpush1.msra.mxu0 %v337
    %1459 = vmatprep.subr.mxu0 %v340
    %1460 = vmatpush1.msra.mxu0 %v339
    %1461 = vmatprep.subr.mxu0 %v342
    %1462 = vmatpush1.msra.mxu0 %v341
    %1463 = vmatprep.subr.mxu0 0.0
    %1464 = vmatpush1.msra.mxu0 0.0
    %1465 = vmatprep.subr.mxu0 0.0
    %1466 = vmatpush1.msra.mxu0 0.0
    %1467 = vmatprep.subr.mxu0 0.0
    %1468 = vmatpush1.msra.mxu0 0.0
    %1469 = vmatprep.subr.mxu0 0.0
    %1470 = vmatpush1.msra.mxu0 0.0
    %1471 = vmatprep.subr.mxu0 0.0
    %1472 = vmatpush1.msra.mxu0 0.0
    %1473 = vmatprep.subr.mxu0 0.0
    %1474 = vmatpush1.msra.mxu0 0.0
    %1475 = vmatprep.subr.mxu0 0.0
    %1476 = vmatpush1.msra.mxu0 0.0
    %1477 = vmatprep.subr.mxu0 0.0
    %1478 = vmatpush1.msra.mxu0 0.0
    %1479 = vmatprep.subr.mxu0 0.0
    %1480 = vmatpush1.msra.mxu0 0.0
    %1481 = vmatprep.subr.mxu0 0.0
    %1482 = vmatpush1.msra.mxu0 0.0
    %1483 = vmatprep.subr.mxu0 0.0
    %1484 = vmatpush1.msra.mxu0 0.0
    %1485 = vmatprep.subr.mxu0 0.0
    %1486 = vmatpush1.msra.mxu0 0.0
    %1487 = vmatprep.subr.mxu0 0.0
    %1488 = vmatpush1.msra.mxu0 0.0
    %1489 = vmatprep.subr.mxu0 0.0
    %1490 = vmatpush1.msra.mxu0 0.0
    %1491 = vmatprep.subr.mxu0 0.0
    %1492 = vmatpush1.msra.mxu0 0.0
    %1493 = vmatprep.subr.mxu0 0.0
    %1494 = vmatpush1.msra.mxu0 0.0
    %1495 = vmatprep.subr.mxu0 0.0
    %1496 = vmatpush1.msra.mxu0 0.0
    %1497 = vmatprep.subr.mxu0 0.0
    %1498 = vmatpush1.msra.mxu0 0.0
    %1499 = vmatprep.subr.mxu0 0.0
    %1500 = vmatpush1.msra.mxu0 0.0
    %1501 = vmatprep.subr.mxu0 0.0
    %1502 = vmatpush1.msra.mxu0 0.0
    %1503 = vmatprep.subr.mxu0 0.0
    %1504 = vmatpush1.msra.mxu0 0.0
    %1505 = vmatprep.subr.mxu0 0.0
    %1506 = vmatpush1.msra.mxu0 0.0
    %1507 = vmatprep.subr.mxu0 0.0
    %1508 = vmatpush1.msra.mxu0 0.0
    %1509 = vmatprep.subr.mxu0 0.0
    %1510 = vmatpush1.msra.mxu0 0.0
    %1511 = vmatprep.mubr.f32.mxu0 0.0
    %1512 = vmatmul.mubr.f32.gmra.mrb[0].mxu0 %v1445
    %v1513 = vpop.f32.mrb[0].mxu0
    %v1514 = vadd.f32 0.0, %v1513
    %v1515 = vpop.f32.mrb[0].mxu0
    %v1516 = vadd.f32 0.0, %v1515
    %1517 = vdwg.mxu0
    %v1518 = vadd.f32 %v295, %v1514
    %v1519 = vadd.f32 %v297, %v1516
    %v1520 = vxor.u32 %v1518, 2147483648
    %v1521 = vxor.u32 %v1519, 2147483648
    %v1522 = vmul.f32 %v1520, 1.442695
    %v1523 = vpow.pop %v1522
    %v1524 = vmul.f32 %v1521, 1.442695
    %v1525 = vpow.pop %v1524
    %v1526 = vadd.f32 %v1523, 1.0
    %v1527 = vadd.f32 %v1525, 1.0
    %v1528 = vrcp.pop %v1526
    %v1529 = vmul.f32 1.0, %v1528
    %v1530 = vrcp.pop %v1527
    %v1531 = vmul.f32 1.0, %v1530
    %v1532 = vtanh.pop %v1519
    %v1534 = vrot.slane %v1307, 6
    %v1536 = vmul.f32 %v1529, %v1534
    %v1537 = vmul.f32 %v1529, %v1532
    %1539 = vrot.lane.b32.xlu0 %v1537, 64
    %v1540 = vpop.permute.xlu0 %1539
    %v1542 = vadd.f32 %v1536, %v1540
    %v1543 = vtanh.pop %v1542
    %v1544 = vmul.f32 %v1531, %v1543
    %v1547 = vunpack.c.l.s4 1983009808
    %v1548 = vunpack.c.0.s8 %v1547
    %v1549 = vlaneseq
    %v1550 = vshrl.u32 %v1549, 7
    %v1551 = vsub.s32 %v1548, %v1550
    %v1552 = vrot.slane %v1544, %v1551
    %1553 = vrot.lane.b32.xlu0 %v1552, 64
    %v1554 = vpop.permute.xlu0 %1553
    %1556 = vst.msk [vmem:[#allocation8 + $0xc] sm:$0x3] %vm461, %v1554
    %1557 = vst.msk [vmem:[#allocation8 + $0x12] sm:$0x3] %vm463, %v1544
    %1558 = vrot.lane.b32.xlu0 %v1428, 64
    %v1559 = vpop.permute.xlu0 %1558
    %v1560 = vsel %vm347, %v1559, 0
    %1562 = vmatprep.subr.mxu0 %v312
    %1563 = vmatpush1.msra.mxu0 %v311
    %1564 = vmatprep.subr.mxu0 %v314
    %1565 = vmatpush1.msra.mxu0 %v313
    %1566 = vmatprep.subr.mxu0 %v316
    %1567 = vmatpush1.msra.mxu0 %v315
    %1568 = vmatprep.subr.mxu0 %v318
    %1569 = vmatpush1.msra.mxu0 %v317
    %1570 = vmatprep.subr.mxu0 %v320
    %1571 = vmatpush1.msra.mxu0 %v319
    %1572 = vmatprep.subr.mxu0 %v322
    %1573 = vmatpush1.msra.mxu0 %v321
    %1574 = vmatprep.subr.mxu0 %v324
    %1575 = vmatpush1.msra.mxu0 %v323
    %1576 = vmatprep.subr.mxu0 %v326
    %1577 = vmatpush1.msra.mxu0 %v325
    %1578 = vmatprep.subr.mxu0 0.0
    %1579 = vmatpush1.msra.mxu0 0.0
    %1580 = vmatprep.subr.mxu0 0.0
    %1581 = vmatpush1.msra.mxu0 0.0
    %1582 = vmatprep.subr.mxu0 0.0
    %1583 = vmatpush1.msra.mxu0 0.0
    %1584 = vmatprep.subr.mxu0 0.0
    %1585 = vmatpush1.msra.mxu0 0.0
    %1586 = vmatprep.subr.mxu0 0.0
    %1587 = vmatpush1.msra.mxu0 0.0
    %1588 = vmatprep.subr.mxu0 0.0
    %1589 = vmatpush1.msra.mxu0 0.0
    %1590 = vmatprep.subr.mxu0 0.0
    %1591 = vmatpush1.msra.mxu0 0.0
    %1592 = vmatprep.subr.mxu0 0.0
    %1593 = vmatpush1.msra.mxu0 0.0
    %1594 = vmatprep.subr.mxu0 0.0
    %1595 = vmatpush1.msra.mxu0 0.0
    %1596 = vmatprep.subr.mxu0 0.0
    %1597 = vmatpush1.msra.mxu0 0.0
    %1598 = vmatprep.subr.mxu0 0.0
    %1599 = vmatpush1.msra.mxu0 0.0
    %1600 = vmatprep.subr.mxu0 0.0
    %1601 = vmatpush1.msra.mxu0 0.0
    %1602 = vmatprep.subr.mxu0 0.0
    %1603 = vmatpush1.msra.mxu0 0.0
    %1604 = vmatprep.subr.mxu0 0.0
    %1605 = vmatpush1.msra.mxu0 0.0
    %1606 = vmatprep.subr.mxu0 0.0
    %1607 = vmatpush1.msra.mxu0 0.0
    %1608 = vmatprep.subr.mxu0 0.0
    %1609 = vmatpush1.msra.mxu0 0.0
    %1610 = vmatprep.subr.mxu0 0.0
    %1611 = vmatpush1.msra.mxu0 0.0
    %1612 = vmatprep.subr.mxu0 0.0
    %1613 = vmatpush1.msra.mxu0 0.0
    %1614 = vmatprep.subr.mxu0 0.0
    %1615 = vmatpush1.msra.mxu0 0.0
    %1616 = vmatprep.subr.mxu0 0.0
    %1617 = vmatpush1.msra.mxu0 0.0
    %1618 = vmatprep.subr.mxu0 0.0
    %1619 = vmatpush1.msra.mxu0 0.0
    %1620 = vmatprep.subr.mxu0 0.0
    %1621 = vmatpush1.msra.mxu0 0.0
    %1622 = vmatprep.subr.mxu0 0.0
    %1623 = vmatpush1.msra.mxu0 0.0
    %1624 = vmatprep.subr.mxu0 0.0
    %1625 = vmatpush1.msra.mxu0 0.0
    %1626 = vmatprep.mubr.f32.mxu0 0.0
    %1627 = vmatmul.mubr.f32.gmra.mrb[0].mxu0 %v1560
    %v1628 = vpop.f32.mrb[0].mxu0
    %v1629 = vadd.f32 0.0, %v1628
    %v1630 = vpop.f32.mrb[0].mxu0
    %v1631 = vadd.f32 0.0, %v1630
    %1632 = vdwg.mxu0
    %v1635 = vrot.slane %v1629, 6
    %v1636 = vrot.slane %v1631, 6
    %v1639 = vadd.f32 %v185, %v1635
    %v1640 = vadd.f32 %v187, %v1636
    %v1641 = vxor.u32 %v1639, 2147483648
    %v1642 = vxor.u32 %v1640, 2147483648
    %v1643 = vmul.f32 %v1641, 1.442695
    %v1644 = vpow.pop %v1643
    %v1645 = vmul.f32 %v1642, 1.442695
    %v1646 = vpow.pop %v1645
    %v1647 = vadd.f32 %v1644, 1.0
    %v1648 = vadd.f32 %v1646, 1.0
    %v1649 = vrcp.pop %v1647
    %v1650 = vmul.f32 1.0, %v1649
    %v1651 = vrcp.pop %v1648
    %v1652 = vmul.f32 1.0, %v1651
    %v1653 = vtanh.pop %v1640
    %v1655 = vrot.slane %v1426, 6
    %v1657 = vmul.f32 %v1650, %v1655
    %v1658 = vmul.f32 %v1650, %v1653
    %1660 = vrot.lane.b32.xlu0 %v1658, 64
    %v1661 = vpop.permute.xlu0 %1660
    %v1663 = vadd.f32 %v1657, %v1661
    %v1664 = vtanh.pop %v1663
    %v1665 = vmul.f32 %v1652, %v1664
    %v1668 = vunpack.c.l.s4 1983009808
    %v1669 = vunpack.c.0.s8 %v1668
    %v1670 = vlaneseq
    %v1671 = vshrl.u32 %v1670, 7
    %v1672 = vsub.s32 %v1669, %v1671
    %v1673 = vrot.slane %v1665, %v1672
    %v1674 = vcombine.high %v1673, %v1673
    %1676 = vst.msk [vmem:[#allocation8 + $0x4] sm:$0x3] %vm698, %v1674
    %1677 = vrot.lane.b32.xlu0 %v1674, 64
    %v1678 = vpop.permute.xlu0 %1677
    %1680 = vst.msk [vmem:[#allocation8 + $0x2] sm:$0x3] %vm703, %v1678
    %1681 = vrot.lane.b32.xlu0 %v1544, 64
    %v1682 = vpop.permute.xlu0 %1681
    %v1683 = vsel %vm347, %v1682, 0
    %1685 = vmatprep.subr.mxu0 %v328
    %1686 = vmatpush1.msra.mxu0 %v327
    %1687 = vmatprep.subr.mxu0 %v330
    %1688 = vmatpush1.msra.mxu0 %v329
    %1689 = vmatprep.subr.mxu0 %v332
    %1690 = vmatpush1.msra.mxu0 %v331
    %1691 = vmatprep.subr.mxu0 %v334
    %1692 = vmatpush1.msra.mxu0 %v333
    %1693 = vmatprep.subr.mxu0 %v336
    %1694 = vmatpush1.msra.mxu0 %v335
    %1695 = vmatprep.subr.mxu0 %v338
    %1696 = vmatpush1.msra.mxu0 %v337
    %1697 = vmatprep.subr.mxu0 %v340
    %1698 = vmatpush1.msra.mxu0 %v339
    %1699 = vmatprep.subr.mxu0 %v342
    %1700 = vmatpush1.msra.mxu0 %v341
    %1701 = vmatprep.subr.mxu0 0.0
    %1702 = vmatpush1.msra.mxu0 0.0
    %1703 = vmatprep.subr.mxu0 0.0
    %1704 = vmatpush1.msra.mxu0 0.0
    %1705 = vmatprep.subr.mxu0 0.0
    %1706 = vmatpush1.msra.mxu0 0.0
    %1707 = vmatprep.subr.mxu0 0.0
    %1708 = vmatpush1.msra.mxu0 0.0
    %1709 = vmatprep.subr.mxu0 0.0
    %1710 = vmatpush1.msra.mxu0 0.0
    %1711 = vmatprep.subr.mxu0 0.0
    %1712 = vmatpush1.msra.mxu0 0.0
    %1713 = vmatprep.subr.mxu0 0.0
    %1714 = vmatpush1.msra.mxu0 0.0
    %1715 = vmatprep.subr.mxu0 0.0
    %1716 = vmatpush1.msra.mxu0 0.0
    %1717 = vmatprep.subr.mxu0 0.0
    %1718 = vmatpush1.msra.mxu0 0.0
    %1719 = vmatprep.subr.mxu0 0.0
    %1720 = vmatpush1.msra.mxu0 0.0
    %1721 = vmatprep.subr.mxu0 0.0
    %1722 = vmatpush1.msra.mxu0 0.0
    %1723 = vmatprep.subr.mxu0 0.0
    %1724 = vmatpush1.msra.mxu0 0.0
    %1725 = vmatprep.subr.mxu0 0.0
    %1726 = vmatpush1.msra.mxu0 0.0
    %1727 = vmatprep.subr.mxu0 0.0
    %1728 = vmatpush1.msra.mxu0 0.0
    %1729 = vmatprep.subr.mxu0 0.0
    %1730 = vmatpush1.msra.mxu0 0.0
    %1731 = vmatprep.subr.mxu0 0.0
    %1732 = vmatpush1.msra.mxu0 0.0
    %1733 = vmatprep.subr.mxu0 0.0
    %1734 = vmatpush1.msra.mxu0 0.0
    %1735 = vmatprep.subr.mxu0 0.0
    %1736 = vmatpush1.msra.mxu0 0.0
    %1737 = vmatprep.subr.mxu0 0.0
    %1738 = vmatpush1.msra.mxu0 0.0
    %1739 = vmatprep.subr.mxu0 0.0
    %1740 = vmatpush1.msra.mxu0 0.0
    %1741 = vmatprep.subr.mxu0 0.0
    %1742 = vmatpush1.msra.mxu0 0.0
    %1743 = vmatprep.subr.mxu0 0.0
    %1744 = vmatpush1.msra.mxu0 0.0
    %1745 = vmatprep.subr.mxu0 0.0
    %1746 = vmatpush1.msra.mxu0 0.0
    %1747 = vmatprep.subr.mxu0 0.0
    %1748 = vmatpush1.msra.mxu0 0.0
    %1749 = vmatprep.mubr.f32.mxu0 0.0
    %1750 = vmatmul.mubr.f32.gmra.mrb[0].mxu0 %v1683
    %v1751 = vpop.f32.mrb[0].mxu0
    %v1752 = vadd.f32 0.0, %v1751
    %v1753 = vpop.f32.mrb[0].mxu0
    %v1754 = vadd.f32 0.0, %v1753
    %1755 = vdwg.mxu0
    %v1758 = vrot.slane %v1752, 6
    %v1759 = vrot.slane %v1754, 6
    %v1762 = vadd.f32 %v295, %v1758
    %v1763 = vadd.f32 %v297, %v1759
    %v1764 = vxor.u32 %v1762, 2147483648
    %v1765 = vxor.u32 %v1763, 2147483648
    %v1766 = vmul.f32 %v1764, 1.442695
    %v1767 = vpow.pop %v1766
    %v1768 = vmul.f32 %v1765, 1.442695
    %v1769 = vpow.pop %v1768
    %v1770 = vadd.f32 %v1767, 1.0
    %v1771 = vadd.f32 %v1769, 1.0
    %v1772 = vrcp.pop %v1770
    %v1773 = vmul.f32 1.0, %v1772
    %v1774 = vrcp.pop %v1771
    %v1775 = vmul.f32 1.0, %v1774
    %v1776 = vtanh.pop %v1763
    %v1778 = vrot.slane %v1542, 6
    %v1780 = vmul.f32 %v1773, %v1778
    %v1781 = vmul.f32 %v1773, %v1776
    %1783 = vrot.lane.b32.xlu0 %v1781, 64
    %v1784 = vpop.permute.xlu0 %1783
    %v1786 = vadd.f32 %v1780, %v1784
    %v1787 = vtanh.pop %v1786
    %v1788 = vmul.f32 %v1775, %v1787
    %v1791 = vunpack.c.l.s4 1983009808
    %v1792 = vunpack.c.0.s8 %v1791
    %v1793 = vlaneseq
    %v1794 = vshrl.u32 %v1793, 7
    %v1795 = vsub.s32 %v1792, %v1794
    %v1796 = vrot.slane %v1788, %v1795
    %v1797 = vcombine.high %v1796, %v1796
    %1799 = vst.msk [vmem:[#allocation8 + $0xc] sm:$0x3] %vm698, %v1797
    %1800 = vrot.lane.b32.xlu0 %v1797, 64
    %v1801 = vpop.permute.xlu0 %1800
    %1803 = vst.msk [vmem:[#allocation8 + $0x12] sm:$0x3] %vm703, %v1801
    %v1804 = vrot.slane %v1665, 2
    %1805 = vrot.lane.b32.xlu0 %v1804, 64
    %v1806 = vpop.permute.xlu0 %1805
    %v1807 = vsel %vm347, %v1806, 0
    %1809 = vmatprep.subr.mxu0 %v312
    %1810 = vmatpush1.msra.mxu0 %v311
    %1811 = vmatprep.subr.mxu0 %v314
    %1812 = vmatpush1.msra.mxu0 %v313
    %1813 = vmatprep.subr.mxu0 %v316
    %1814 = vmatpush1.msra.mxu0 %v315
    %1815 = vmatprep.subr.mxu0 %v318
    %1816 = vmatpush1.msra.mxu0 %v317
    %1817 = vmatprep.subr.mxu0 %v320
    %1818 = vmatpush1.msra.mxu0 %v319
    %1819 = vmatprep.subr.mxu0 %v322
    %1820 = vmatpush1.msra.mxu0 %v321
    %1821 = vmatprep.subr.mxu0 %v324
    %1822 = vmatpush1.msra.mxu0 %v323
    %1823 = vmatprep.subr.mxu0 %v326
    %1824 = vmatpush1.msra.mxu0 %v325
    %1825 = vmatprep.subr.mxu0 0.0
    %1826 = vmatpush1.msra.mxu0 0.0
    %1827 = vmatprep.subr.mxu0 0.0
    %1828 = vmatpush1.msra.mxu0 0.0
    %1829 = vmatprep.subr.mxu0 0.0
    %1830 = vmatpush1.msra.mxu0 0.0
    %1831 = vmatprep.subr.mxu0 0.0
    %1832 = vmatpush1.msra.mxu0 0.0
    %1833 = vmatprep.subr.mxu0 0.0
    %1834 = vmatpush1.msra.mxu0 0.0
    %1835 = vmatprep.subr.mxu0 0.0
    %1836 = vmatpush1.msra.mxu0 0.0
    %1837 = vmatprep.subr.mxu0 0.0
    %1838 = vmatpush1.msra.mxu0 0.0
    %1839 = vmatprep.subr.mxu0 0.0
    %1840 = vmatpush1.msra.mxu0 0.0
    %1841 = vmatprep.subr.mxu0 0.0
    %1842 = vmatpush1.msra.mxu0 0.0
    %1843 = vmatprep.subr.mxu0 0.0
    %1844 = vmatpush1.msra.mxu0 0.0
    %1845 = vmatprep.subr.mxu0 0.0
    %1846 = vmatpush1.msra.mxu0 0.0
    %1847 = vmatprep.subr.mxu0 0.0
    %1848 = vmatpush1.msra.mxu0 0.0
    %1849 = vmatprep.subr.mxu0 0.0
    %1850 = vmatpush1.msra.mxu0 0.0
    %1851 = vmatprep.subr.mxu0 0.0
    %1852 = vmatpush1.msra.mxu0 0.0
    %1853 = vmatprep.subr.mxu0 0.0
    %1854 = vmatpush1.msra.mxu0 0.0
    %1855 = vmatprep.subr.mxu0 0.0
    %1856 = vmatpush1.msra.mxu0 0.0
    %1857 = vmatprep.subr.mxu0 0.0
    %1858 = vmatpush1.msra.mxu0 0.0
    %1859 = vmatprep.subr.mxu0 0.0
    %1860 = vmatpush1.msra.mxu0 0.0
    %1861 = vmatprep.subr.mxu0 0.0
    %1862 = vmatpush1.msra.mxu0 0.0
    %1863 = vmatprep.subr.mxu0 0.0
    %1864 = vmatpush1.msra.mxu0 0.0
    %1865 = vmatprep.subr.mxu0 0.0
    %1866 = vmatpush1.msra.mxu0 0.0
    %1867 = vmatprep.subr.mxu0 0.0
    %1868 = vmatpush1.msra.mxu0 0.0
    %1869 = vmatprep.subr.mxu0 0.0
    %1870 = vmatpush1.msra.mxu0 0.0
    %1871 = vmatprep.subr.mxu0 0.0
    %1872 = vmatpush1.msra.mxu0 0.0
    %1873 = vmatprep.mubr.f32.mxu0 0.0
    %1874 = vmatmul.mubr.f32.gmra.mrb[0].mxu0 %v1807
    %v1875 = vpop.f32.mrb[0].mxu0
    %v1876 = vadd.f32 0.0, %v1875
    %v1877 = vpop.f32.mrb[0].mxu0
    %v1878 = vadd.f32 0.0, %v1877
    %1879 = vdwg.mxu0
    %v1882 = vrot.slane %v1876, 4
    %v1883 = vrot.slane %v1878, 4
    %v1886 = vadd.f32 %v185, %v1882
    %v1887 = vadd.f32 %v187, %v1883
    %v1888 = vxor.u32 %v1886, 2147483648
    %v1889 = vxor.u32 %v1887, 2147483648
    %v1890 = vmul.f32 %v1888, 1.442695
    %v1891 = vpow.pop %v1890
    %v1892 = vmul.f32 %v1889, 1.442695
    %v1893 = vpow.pop %v1892
    %v1894 = vadd.f32 %v1891, 1.0
    %v1895 = vadd.f32 %v1893, 1.0
    %v1896 = vrcp.pop %v1894
    %v1897 = vmul.f32 1.0, %v1896
    %v1898 = vrcp.pop %v1895
    %v1899 = vmul.f32 1.0, %v1898
    %v1900 = vtanh.pop %v1887
    %v1902 = vrot.slane %v1663, 6
    %v1904 = vmul.f32 %v1897, %v1902
    %v1905 = vmul.f32 %v1897, %v1900
    %1907 = vrot.lane.b32.xlu0 %v1905, 64
    %v1908 = vpop.permute.xlu0 %1907
    %v1910 = vadd.f32 %v1904, %v1908
    %v1911 = vtanh.pop %v1910
    %v1912 = vmul.f32 %v1899, %v1911
    %v1914 = vcombine.high %v1912, %v1912
    %v1916 = vunpack.c.l.s4 1983009808
    %v1917 = vunpack.c.0.s8 %v1916
    %v1918 = vlaneseq
    %v1919 = vshrl.u32 %v1918, 7
    %v1920 = vsub.s32 %v1917, %v1919
    %v1921 = vrot.slane %v1914, %v1920
    %1922 = vrot.lane.b32.xlu0 %v1921, 64
    %v1923 = vpop.permute.xlu0 %1922
    %1925 = vst.msk [vmem:[#allocation8 + $0x6] sm:$0x3] %vm461, %v1923
    %1927 = vst.msk [vmem:[#allocation8] sm:$0x3] %vm463, %v1921
    %v1928 = vrot.slane %v1788, 2
    %1929 = vrot.lane.b32.xlu0 %v1928, 64
    %v1930 = vpop.permute.xlu0 %1929
    %v1931 = vsel %vm347, %v1930, 0
    %1933 = vmatprep.subr.mxu0 %v328
    %1934 = vmatpush1.msra.mxu0 %v327
    %1935 = vmatprep.subr.mxu0 %v330
    %1936 = vmatpush1.msra.mxu0 %v329
    %1937 = vmatprep.subr.mxu0 %v332
    %1938 = vmatpush1.msra.mxu0 %v331
    %1939 = vmatprep.subr.mxu0 %v334
    %1940 = vmatpush1.msra.mxu0 %v333
    %1941 = vmatprep.subr.mxu0 %v336
    %1942 = vmatpush1.msra.mxu0 %v335
    %1943 = vmatprep.subr.mxu0 %v338
    %1944 = vmatpush1.msra.mxu0 %v337
    %1945 = vmatprep.subr.mxu0 %v340
    %1946 = vmatpush1.msra.mxu0 %v339
    %1947 = vmatprep.subr.mxu0 %v342
    %1948 = vmatpush1.msra.mxu0 %v341
    %1949 = vmatprep.subr.mxu0 0.0
    %1950 = vmatpush1.msra.mxu0 0.0
    %1951 = vmatprep.subr.mxu0 0.0
    %1952 = vmatpush1.msra.mxu0 0.0
    %1953 = vmatprep.subr.mxu0 0.0
    %1954 = vmatpush1.msra.mxu0 0.0
    %1955 = vmatprep.subr.mxu0 0.0
    %1956 = vmatpush1.msra.mxu0 0.0
    %1957 = vmatprep.subr.mxu0 0.0
    %1958 = vmatpush1.msra.mxu0 0.0
    %1959 = vmatprep.subr.mxu0 0.0
    %1960 = vmatpush1.msra.mxu0 0.0
    %1961 = vmatprep.subr.mxu0 0.0
    %1962 = vmatpush1.msra.mxu0 0.0
    %1963 = vmatprep.subr.mxu0 0.0
    %1964 = vmatpush1.msra.mxu0 0.0
    %1965 = vmatprep.subr.mxu0 0.0
    %1966 = vmatpush1.msra.mxu0 0.0
    %1967 = vmatprep.subr.mxu0 0.0
    %1968 = vmatpush1.msra.mxu0 0.0
    %1969 = vmatprep.subr.mxu0 0.0
    %1970 = vmatpush1.msra.mxu0 0.0
    %1971 = vmatprep.subr.mxu0 0.0
    %1972 = vmatpush1.msra.mxu0 0.0
    %1973 = vmatprep.subr.mxu0 0.0
    %1974 = vmatpush1.msra.mxu0 0.0
    %1975 = vmatprep.subr.mxu0 0.0
    %1976 = vmatpush1.msra.mxu0 0.0
    %1977 = vmatprep.subr.mxu0 0.0
    %1978 = vmatpush1.msra.mxu0 0.0
    %1979 = vmatprep.subr.mxu0 0.0
    %1980 = vmatpush1.msra.mxu0 0.0
    %1981 = vmatprep.subr.mxu0 0.0
    %1982 = vmatpush1.msra.mxu0 0.0
    %1983 = vmatprep.subr.mxu0 0.0
    %1984 = vmatpush1.msra.mxu0 0.0
    %1985 = vmatprep.subr.mxu0 0.0
    %1986 = vmatpush1.msra.mxu0 0.0
    %1987 = vmatprep.subr.mxu0 0.0
    %1988 = vmatpush1.msra.mxu0 0.0
    %1989 = vmatprep.subr.mxu0 0.0
    %1990 = vmatpush1.msra.mxu0 0.0
    %1991 = vmatprep.subr.mxu0 0.0
    %1992 = vmatpush1.msra.mxu0 0.0
    %1993 = vmatprep.subr.mxu0 0.0
    %1994 = vmatpush1.msra.mxu0 0.0
    %1995 = vmatprep.subr.mxu0 0.0
    %1996 = vmatpush1.msra.mxu0 0.0
    %1997 = vmatprep.mubr.f32.mxu0 0.0
    %1998 = vmatmul.mubr.f32.gmra.mrb[0].mxu0 %v1931
    %v1999 = vpop.f32.mrb[0].mxu0
    %v2000 = vadd.f32 0.0, %v1999
    %v2001 = vpop.f32.mrb[0].mxu0
    %v2002 = vadd.f32 0.0, %v2001
    %2003 = vdwg.mxu0
    %v2006 = vrot.slane %v2000, 4
    %v2007 = vrot.slane %v2002, 4
    %v2010 = vadd.f32 %v295, %v2006
    %v2011 = vadd.f32 %v297, %v2007
    %v2012 = vxor.u32 %v2010, 2147483648
    %v2013 = vxor.u32 %v2011, 2147483648
    %v2014 = vmul.f32 %v2012, 1.442695
    %v2015 = vpow.pop %v2014
    %v2016 = vmul.f32 %v2013, 1.442695
    %v2017 = vpow.pop %v2016
    %v2018 = vadd.f32 %v2015, 1.0
    %v2019 = vadd.f32 %v2017, 1.0
    %v2020 = vrcp.pop %v2018
    %v2021 = vmul.f32 1.0, %v2020
    %v2022 = vrcp.pop %v2019
    %v2023 = vmul.f32 1.0, %v2022
    %v2024 = vtanh.pop %v2011
    %v2026 = vrot.slane %v1786, 6
    %v2028 = vmul.f32 %v2021, %v2026
    %v2029 = vmul.f32 %v2021, %v2024
    %2031 = vrot.lane.b32.xlu0 %v2029, 64
    %v2032 = vpop.permute.xlu0 %2031
    %v2034 = vadd.f32 %v2028, %v2032
    %v2035 = vtanh.pop %v2034
    %v2036 = vmul.f32 %v2023, %v2035
    %v2038 = vcombine.high %v2036, %v2036
    %v2040 = vunpack.c.l.s4 1983009808
    %v2041 = vunpack.c.0.s8 %v2040
    %v2042 = vlaneseq
    %v2043 = vshrl.u32 %v2042, 7
    %v2044 = vsub.s32 %v2041, %v2043
    %v2045 = vrot.slane %v2038, %v2044
    %2046 = vrot.lane.b32.xlu0 %v2045, 64
    %v2047 = vpop.permute.xlu0 %2046
    %2049 = vst.msk [vmem:[#allocation8 + $0xe] sm:$0x3] %vm461, %v2047
    %2051 = vst.msk [vmem:[#allocation8 + $0x10] sm:$0x3] %vm463, %v2045
    %v2052 = vrot.slane %v1912, 4
    %2053 = vrot.lane.b32.xlu0 %v2052, 64
    %v2054 = vpop.permute.xlu0 %2053
    %v2055 = vsel %vm347, %v2054, 0
    %2057 = vmatprep.subr.mxu0 %v312
    %2058 = vmatpush1.msra.mxu0 %v311
    %2059 = vmatprep.subr.mxu0 %v314
    %2060 = vmatpush1.msra.mxu0 %v313
    %2061 = vmatprep.subr.mxu0 %v316
    %2062 = vmatpush1.msra.mxu0 %v315
    %2063 = vmatprep.subr.mxu0 %v318
    %2064 = vmatpush1.msra.mxu0 %v317
    %2065 = vmatprep.subr.mxu0 %v320
    %2066 = vmatpush1.msra.mxu0 %v319
    %2067 = vmatprep.subr.mxu0 %v322
    %2068 = vmatpush1.msra.mxu0 %v321
    %2069 = vmatprep.subr.mxu0 %v324
    %2070 = vmatpush1.msra.mxu0 %v323
    %2071 = vmatprep.subr.mxu0 %v326
    %2072 = vmatpush1.msra.mxu0 %v325
    %2073 = vmatprep.subr.mxu0 0.0
    %2074 = vmatpush1.msra.mxu0 0.0
    %2075 = vmatprep.subr.mxu0 0.0
    %2076 = vmatpush1.msra.mxu0 0.0
    %2077 = vmatprep.subr.mxu0 0.0
    %2078 = vmatpush1.msra.mxu0 0.0
    %2079 = vmatprep.subr.mxu0 0.0
    %2080 = vmatpush1.msra.mxu0 0.0
    %2081 = vmatprep.subr.mxu0 0.0
    %2082 = vmatpush1.msra.mxu0 0.0
    %2083 = vmatprep.subr.mxu0 0.0
    %2084 = vmatpush1.msra.mxu0 0.0
    %2085 = vmatprep.subr.mxu0 0.0
    %2086 = vmatpush1.msra.mxu0 0.0
    %2087 = vmatprep.subr.mxu0 0.0
    %2088 = vmatpush1.msra.mxu0 0.0
    %2089 = vmatprep.subr.mxu0 0.0
    %2090 = vmatpush1.msra.mxu0 0.0
    %2091 = vmatprep.subr.mxu0 0.0
    %2092 = vmatpush1.msra.mxu0 0.0
    %2093 = vmatprep.subr.mxu0 0.0
    %2094 = vmatpush1.msra.mxu0 0.0
    %2095 = vmatprep.subr.mxu0 0.0
    %2096 = vmatpush1.msra.mxu0 0.0
    %2097 = vmatprep.subr.mxu0 0.0
    %2098 = vmatpush1.msra.mxu0 0.0
    %2099 = vmatprep.subr.mxu0 0.0
    %2100 = vmatpush1.msra.mxu0 0.0
    %2101 = vmatprep.subr.mxu0 0.0
    %2102 = vmatpush1.msra.mxu0 0.0
    %2103 = vmatprep.subr.mxu0 0.0
    %2104 = vmatpush1.msra.mxu0 0.0
    %2105 = vmatprep.subr.mxu0 0.0
    %2106 = vmatpush1.msra.mxu0 0.0
    %2107 = vmatprep.subr.mxu0 0.0
    %2108 = vmatpush1.msra.mxu0 0.0
    %2109 = vmatprep.subr.mxu0 0.0
    %2110 = vmatpush1.msra.mxu0 0.0
    %2111 = vmatprep.subr.mxu0 0.0
    %2112 = vmatpush1.msra.mxu0 0.0
    %2113 = vmatprep.subr.mxu0 0.0
    %2114 = vmatpush1.msra.mxu0 0.0
    %2115 = vmatprep.subr.mxu0 0.0
    %2116 = vmatpush1.msra.mxu0 0.0
    %2117 = vmatprep.subr.mxu0 0.0
    %2118 = vmatpush1.msra.mxu0 0.0
    %2119 = vmatprep.subr.mxu0 0.0
    %2120 = vmatpush1.msra.mxu0 0.0
    %2121 = vmatprep.mubr.f32.mxu0 0.0
    %2122 = vmatmul.mubr.f32.gmra.mrb[0].mxu0 %v2055
    %v2123 = vpop.f32.mrb[0].mxu0
    %v2124 = vadd.f32 0.0, %v2123
    %v2125 = vpop.f32.mrb[0].mxu0
    %v2126 = vadd.f32 0.0, %v2125
    %2127 = vdwg.mxu0
    %v2130 = vrot.slane %v2124, 2
    %v2131 = vrot.slane %v2126, 2
    %v2134 = vadd.f32 %v185, %v2130
    %v2135 = vadd.f32 %v187, %v2131
    %v2136 = vxor.u32 %v2134, 2147483648
    %v2137 = vxor.u32 %v2135, 2147483648
    %v2138 = vmul.f32 %v2136, 1.442695
    %v2139 = vpow.pop %v2138
    %v2140 = vmul.f32 %v2137, 1.442695
    %v2141 = vpow.pop %v2140
    %v2142 = vadd.f32 %v2139, 1.0
    %v2143 = vadd.f32 %v2141, 1.0
    %v2144 = vrcp.pop %v2142
    %v2145 = vmul.f32 1.0, %v2144
    %v2146 = vrcp.pop %v2143
    %v2147 = vmul.f32 1.0, %v2146
    %v2148 = vtanh.pop %v2135
    %v2150 = vrot.slane %v1910, 6
    %v2152 = vmul.f32 %v2145, %v2150
    %v2153 = vmul.f32 %v2145, %v2148
    %2155 = vrot.lane.b32.xlu0 %v2153, 64
    %v2156 = vpop.permute.xlu0 %2155
    %v2158 = vadd.f32 %v2152, %v2156
    %v2159 = vtanh.pop %v2158
    %v2160 = vmul.f32 %v2147, %v2159
    %v2162 = vcombine.high %v2160, %v2160
    %v2164 = vunpack.c.l.s4 1983009808
    %v2165 = vunpack.c.0.s8 %v2164
    %v2166 = vlaneseq
    %v2167 = vshrl.u32 %v2166, 7
    %v2168 = vsub.s32 %v2165, %v2167
    %v2169 = vrot.slane %v2162, %v2168
    %v2170 = vcombine.high %v2169, %v2169
    %2172 = vst.msk [vmem:[#allocation8 + $0x6] sm:$0x3] %vm698, %v2170
    %2173 = vrot.lane.b32.xlu0 %v2170, 64
    %v2174 = vpop.permute.xlu0 %2173
    %2176 = vst.msk [vmem:[#allocation8] sm:$0x3] %vm703, %v2174
    %v2177 = vrot.slane %v2036, 4
    %2178 = vrot.lane.b32.xlu0 %v2177, 64
    %v2179 = vpop.permute.xlu0 %2178
    %v2180 = vsel %vm347, %v2179, 0
    %2182 = vmatprep.subr.mxu0 %v328
    %2183 = vmatpush1.msra.mxu0 %v327
    %2184 = vmatprep.subr.mxu0 %v330
    %2185 = vmatpush1.msra.mxu0 %v329
    %2186 = vmatprep.subr.mxu0 %v332
    %2187 = vmatpush1.msra.mxu0 %v331
    %2188 = vmatprep.subr.mxu0 %v334
    %2189 = vmatpush1.msra.mxu0 %v333
    %2190 = vmatprep.subr.mxu0 %v336
    %2191 = vmatpush1.msra.mxu0 %v335
    %2192 = vmatprep.subr.mxu0 %v338
    %2193 = vmatpush1.msra.mxu0 %v337
    %2194 = vmatprep.subr.mxu0 %v340
    %2195 = vmatpush1.msra.mxu0 %v339
    %2196 = vmatprep.subr.mxu0 %v342
    %2197 = vmatpush1.msra.mxu0 %v341
    %2198 = vmatprep.subr.mxu0 0.0
    %2199 = vmatpush1.msra.mxu0 0.0
    %2200 = vmatprep.subr.mxu0 0.0
    %2201 = vmatpush1.msra.mxu0 0.0
    %2202 = vmatprep.subr.mxu0 0.0
    %2203 = vmatpush1.msra.mxu0 0.0
    %2204 = vmatprep.subr.mxu0 0.0
    %2205 = vmatpush1.msra.mxu0 0.0
    %2206 = vmatprep.subr.mxu0 0.0
    %2207 = vmatpush1.msra.mxu0 0.0
    %2208 = vmatprep.subr.mxu0 0.0
    %2209 = vmatpush1.msra.mxu0 0.0
    %2210 = vmatprep.subr.mxu0 0.0
    %2211 = vmatpush1.msra.mxu0 0.0
    %2212 = vmatprep.subr.mxu0 0.0
    %2213 = vmatpush1.msra.mxu0 0.0
    %2214 = vmatprep.subr.mxu0 0.0
    %2215 = vmatpush1.msra.mxu0 0.0
    %2216 = vmatprep.subr.mxu0 0.0
    %2217 = vmatpush1.msra.mxu0 0.0
    %2218 = vmatprep.subr.mxu0 0.0
    %2219 = vmatpush1.msra.mxu0 0.0
    %2220 = vmatprep.subr.mxu0 0.0
    %2221 = vmatpush1.msra.mxu0 0.0
    %2222 = vmatprep.subr.mxu0 0.0
    %2223 = vmatpush1.msra.mxu0 0.0
    %2224 = vmatprep.subr.mxu0 0.0
    %2225 = vmatpush1.msra.mxu0 0.0
    %2226 = vmatprep.subr.mxu0 0.0
    %2227 = vmatpush1.msra.mxu0 0.0
    %2228 = vmatprep.subr.mxu0 0.0
    %2229 = vmatpush1.msra.mxu0 0.0
    %2230 = vmatprep.subr.mxu0 0.0
    %2231 = vmatpush1.msra.mxu0 0.0
    %2232 = vmatprep.subr.mxu0 0.0
    %2233 = vmatpush1.msra.mxu0 0.0
    %2234 = vmatprep.subr.mxu0 0.0
    %2235 = vmatpush1.msra.mxu0 0.0
    %2236 = vmatprep.subr.mxu0 0.0
    %2237 = vmatpush1.msra.mxu0 0.0
    %2238 = vmatprep.subr.mxu0 0.0
    %2239 = vmatpush1.msra.mxu0 0.0
    %2240 = vmatprep.subr.mxu0 0.0
    %2241 = vmatpush1.msra.mxu0 0.0
    %2242 = vmatprep.subr.mxu0 0.0
    %2243 = vmatpush1.msra.mxu0 0.0
    %2244 = vmatprep.subr.mxu0 0.0
    %2245 = vmatpush1.msra.mxu0 0.0
    %2246 = vmatprep.mubr.f32.mxu0 0.0
    %2247 = vmatmul.mubr.f32.gmra.mrb[0].mxu0 %v2180
    %v2248 = vpop.f32.mrb[0].mxu0
    %v2249 = vadd.f32 0.0, %v2248
    %v2250 = vpop.f32.mrb[0].mxu0
    %v2251 = vadd.f32 0.0, %v2250
    %2252 = vdwg.mxu0
    %v2255 = vrot.slane %v2249, 2
    %v2256 = vrot.slane %v2251, 2
    %v2259 = vadd.f32 %v295, %v2255
    %v2260 = vadd.f32 %v297, %v2256
    %v2261 = vxor.u32 %v2259, 2147483648
    %v2262 = vxor.u32 %v2260, 2147483648
    %v2263 = vmul.f32 %v2261, 1.442695
    %v2264 = vpow.pop %v2263
    %v2265 = vmul.f32 %v2262, 1.442695
    %v2266 = vpow.pop %v2265
    %v2267 = vadd.f32 %v2264, 1.0
    %v2268 = vadd.f32 %v2266, 1.0
    %v2269 = vrcp.pop %v2267
    %v2270 = vmul.f32 1.0, %v2269
    %v2271 = vrcp.pop %v2268
    %v2272 = vmul.f32 1.0, %v2271
    %v2273 = vtanh.pop %v2260
    %v2275 = vrot.slane %v2034, 6
    %v2277 = vmul.f32 %v2270, %v2275
    %v2278 = vmul.f32 %v2270, %v2273
    %2280 = vrot.lane.b32.xlu0 %v2278, 64
    %v2281 = vpop.permute.xlu0 %2280
    %v2283 = vadd.f32 %v2277, %v2281
    %v2284 = vtanh.pop %v2283
    %v2285 = vmul.f32 %v2272, %v2284
    %v2287 = vcombine.high %v2285, %v2285
    %v2289 = vunpack.c.l.s4 1983009808
    %v2290 = vunpack.c.0.s8 %v2289
    %v2291 = vlaneseq
    %v2292 = vshrl.u32 %v2291, 7
    %v2293 = vsub.s32 %v2290, %v2292
    %v2294 = vrot.slane %v2287, %v2293
    %v2295 = vcombine.high %v2294, %v2294
    %2297 = vst.msk [vmem:[#allocation8 + $0xe] sm:$0x3] %vm698, %v2295
    %2298 = vrot.lane.b32.xlu0 %v2295, 64
    %v2299 = vpop.permute.xlu0 %2298
    %2301 = vst.msk [vmem:[#allocation8 + $0x10] sm:$0x3] %vm703, %v2299
    %v2302 = vrot.slane %v2285, 6
    %2303 = vrot.lane.b32.xlu0 %v2302, 64
    %v2304 = vpop.permute.xlu0 %2303
    %v2305 = vsel %vm347, %v2304, 0
    %2307 = vmatprep.subr.mxu0 %v328
    %2308 = vmatpush1.msra.mxu0 %v327
    %2309 = vmatprep.subr.mxu0 %v330
    %2310 = vmatpush1.msra.mxu0 %v329
    %2311 = vmatprep.subr.mxu0 %v332
    %2312 = vmatpush1.msra.mxu0 %v331
    %2313 = vmatprep.subr.mxu0 %v334
    %2314 = vmatpush1.msra.mxu0 %v333
    %2315 = vmatprep.subr.mxu0 %v336
    %2316 = vmatpush1.msra.mxu0 %v335
    %2317 = vmatprep.subr.mxu0 %v338
    %2318 = vmatpush1.msra.mxu0 %v337
    %2319 = vmatprep.subr.mxu0 %v340
    %2320 = vmatpush1.msra.mxu0 %v339
    %2321 = vmatprep.subr.mxu0 %v342
    %2322 = vmatpush1.msra.mxu0 %v341
    %2323 = vmatprep.subr.mxu0 0.0
    %2324 = vmatpush1.msra.mxu0 0.0
    %2325 = vmatprep.subr.mxu0 0.0
    %2326 = vmatpush1.msra.mxu0 0.0
    %2327 = vmatprep.subr.mxu0 0.0
    %2328 = vmatpush1.msra.mxu0 0.0
    %2329 = vmatprep.subr.mxu0 0.0
    %2330 = vmatpush1.msra.mxu0 0.0
    %2331 = vmatprep.subr.mxu0 0.0
    %2332 = vmatpush1.msra.mxu0 0.0
    %2333 = vmatprep.subr.mxu0 0.0
    %2334 = vmatpush1.msra.mxu0 0.0
    %2335 = vmatprep.subr.mxu0 0.0
    %2336 = vmatpush1.msra.mxu0 0.0
    %2337 = vmatprep.subr.mxu0 0.0
    %2338 = vmatpush1.msra.mxu0 0.0
    %2339 = vmatprep.subr.mxu0 0.0
    %2340 = vmatpush1.msra.mxu0 0.0
    %2341 = vmatprep.subr.mxu0 0.0
    %2342 = vmatpush1.msra.mxu0 0.0
    %2343 = vmatprep.subr.mxu0 0.0
    %2344 = vmatpush1.msra.mxu0 0.0
    %2345 = vmatprep.subr.mxu0 0.0
    %2346 = vmatpush1.msra.mxu0 0.0
    %2347 = vmatprep.subr.mxu0 0.0
    %2348 = vmatpush1.msra.mxu0 0.0
    %2349 = vmatprep.subr.mxu0 0.0
    %2350 = vmatpush1.msra.mxu0 0.0
    %2351 = vmatprep.subr.mxu0 0.0
    %2352 = vmatpush1.msra.mxu0 0.0
    %2353 = vmatprep.subr.mxu0 0.0
    %2354 = vmatpush1.msra.mxu0 0.0
    %2355 = vmatprep.subr.mxu0 0.0
    %2356 = vmatpush1.msra.mxu0 0.0
    %2357 = vmatprep.subr.mxu0 0.0
    %2358 = vmatpush1.msra.mxu0 0.0
    %2359 = vmatprep.subr.mxu0 0.0
    %2360 = vmatpush1.msra.mxu0 0.0
    %2361 = vmatprep.subr.mxu0 0.0
    %2362 = vmatpush1.msra.mxu0 0.0
    %2363 = vmatprep.subr.mxu0 0.0
    %2364 = vmatpush1.msra.mxu0 0.0
    %2365 = vmatprep.subr.mxu0 0.0
    %2366 = vmatpush1.msra.mxu0 0.0
    %2367 = vmatprep.subr.mxu0 0.0
    %2368 = vmatpush1.msra.mxu0 0.0
    %2369 = vmatprep.subr.mxu0 0.0
    %2370 = vmatpush1.msra.mxu0 0.0
    %2371 = vmatprep.mubr.f32.mxu0 0.0
    %2372 = vmatmul.mubr.f32.gmra.mrb[0].mxu0 %v2305
    %v2373 = vpop.f32.mrb[0].mxu0
    %v2374 = vadd.f32 0.0, %v2373
    %v2375 = vpop.f32.mrb[0].mxu0
    %v2376 = vadd.f32 0.0, %v2375
    %2377 = vdwg.mxu0
    %v2378 = vadd.f32 %v301, %v2374
    %v2379 = vadd.f32 %v303, %v2376
    %v2380 = vxor.u32 %v2378, 2147483648
    %v2381 = vxor.u32 %v2379, 2147483648
    %v2382 = vmul.f32 %v2380, 1.442695
    %v2383 = vpow.pop %v2382
    %v2384 = vmul.f32 %v2381, 1.442695
    %v2385 = vpow.pop %v2384
    %v2386 = vadd.f32 %v2383, 1.0
    %v2387 = vadd.f32 %v2385, 1.0
    %v2388 = vrcp.pop %v2386
    %v2389 = vmul.f32 1.0, %v2388
    %v2390 = vrcp.pop %v2387
    %v2391 = vmul.f32 1.0, %v2390
    %v2392 = vtanh.pop %v2379
    %v2394 = vrot.slane %v2283, 6
    %v2396 = vmul.f32 %v2389, %v2394
    %v2397 = vmul.f32 %v2389, %v2392
    %2399 = vrot.lane.b32.xlu0 %v2397, 64
    %v2400 = vpop.permute.xlu0 %2399
    %v2402 = vadd.f32 %v2396, %v2400
    %v2403 = vtanh.pop %v2402
    %v2404 = vmul.f32 %v2391, %v2403
    %v2407 = vunpack.c.l.s4 1983009808
    %v2408 = vunpack.c.0.s8 %v2407
    %v2409 = vlaneseq
    %v2410 = vshrl.u32 %v2409, 7
    %v2411 = vsub.s32 %v2408, %v2410
    %v2412 = vrot.slane %v2404, %v2411
    %2413 = vrot.lane.b32.xlu0 %v2412, 64
    %v2414 = vpop.permute.xlu0 %2413
    %2416 = vst.msk [vmem:[#allocation8 + $0x10] sm:$0x3] %vm461, %v2414
    %2417 = vst.msk [vmem:[#allocation8 + $0xe] sm:$0x3] %vm463, %v2404
    %2418 = vrot.lane.b32.xlu0 %v2404, 64
    %v2419 = vpop.permute.xlu0 %2418
    %v2420 = vsel %vm347, %v2419, 0
    %2422 = vmatprep.subr.mxu0 %v328
    %2423 = vmatpush1.msra.mxu0 %v327
    %2424 = vmatprep.subr.mxu0 %v330
    %2425 = vmatpush1.msra.mxu0 %v329
    %2426 = vmatprep.subr.mxu0 %v332
    %2427 = vmatpush1.msra.mxu0 %v331
    %2428 = vmatprep.subr.mxu0 %v334
    %2429 = vmatpush1.msra.mxu0 %v333
    %2430 = vmatprep.subr.mxu0 %v336
    %2431 = vmatpush1.msra.mxu0 %v335
    %2432 = vmatprep.subr.mxu0 %v338
    %2433 = vmatpush1.msra.mxu0 %v337
    %2434 = vmatprep.subr.mxu0 %v340
    %2435 = vmatpush1.msra.mxu0 %v339
    %2436 = vmatprep.subr.mxu0 %v342
    %2437 = vmatpush1.msra.mxu0 %v341
    %2438 = vmatprep.subr.mxu0 0.0
    %2439 = vmatpush1.msra.mxu0 0.0
    %2440 = vmatprep.subr.mxu0 0.0
    %2441 = vmatpush1.msra.mxu0 0.0
    %2442 = vmatprep.subr.mxu0 0.0
    %2443 = vmatpush1.msra.mxu0 0.0
    %2444 = vmatprep.subr.mxu0 0.0
    %2445 = vmatpush1.msra.mxu0 0.0
    %2446 = vmatprep.subr.mxu0 0.0
    %2447 = vmatpush1.msra.mxu0 0.0
    %2448 = vmatprep.subr.mxu0 0.0
    %2449 = vmatpush1.msra.mxu0 0.0
    %2450 = vmatprep.subr.mxu0 0.0
    %2451 = vmatpush1.msra.mxu0 0.0
    %2452 = vmatprep.subr.mxu0 0.0
    %2453 = vmatpush1.msra.mxu0 0.0
    %2454 = vmatprep.subr.mxu0 0.0
    %2455 = vmatpush1.msra.mxu0 0.0
    %2456 = vmatprep.subr.mxu0 0.0
    %2457 = vmatpush1.msra.mxu0 0.0
    %2458 = vmatprep.subr.mxu0 0.0
    %2459 = vmatpush1.msra.mxu0 0.0
    %2460 = vmatprep.subr.mxu0 0.0
    %2461 = vmatpush1.msra.mxu0 0.0
    %2462 = vmatprep.subr.mxu0 0.0
    %2463 = vmatpush1.msra.mxu0 0.0
    %2464 = vmatprep.subr.mxu0 0.0
    %2465 = vmatpush1.msra.mxu0 0.0
    %2466 = vmatprep.subr.mxu0 0.0
    %2467 = vmatpush1.msra.mxu0 0.0
    %2468 = vmatprep.subr.mxu0 0.0
    %2469 = vmatpush1.msra.mxu0 0.0
    %2470 = vmatprep.subr.mxu0 0.0
    %2471 = vmatpush1.msra.mxu0 0.0
    %2472 = vmatprep.subr.mxu0 0.0
    %2473 = vmatpush1.msra.mxu0 0.0
    %2474 = vmatprep.subr.mxu0 0.0
    %2475 = vmatpush1.msra.mxu0 0.0
    %2476 = vmatprep.subr.mxu0 0.0
    %2477 = vmatpush1.msra.mxu0 0.0
    %2478 = vmatprep.subr.mxu0 0.0
    %2479 = vmatpush1.msra.mxu0 0.0
    %2480 = vmatprep.subr.mxu0 0.0
    %2481 = vmatpush1.msra.mxu0 0.0
    %2482 = vmatprep.subr.mxu0 0.0
    %2483 = vmatpush1.msra.mxu0 0.0
    %2484 = vmatprep.subr.mxu0 0.0
    %2485 = vmatpush1.msra.mxu0 0.0
    %2486 = vmatprep.mubr.f32.mxu0 0.0
    %2487 = vmatmul.mubr.f32.gmra.mrb[0].mxu0 %v2420
    %v2488 = vpop.f32.mrb[0].mxu0
    %v2489 = vadd.f32 0.0, %v2488
    %v2490 = vpop.f32.mrb[0].mxu0
    %v2491 = vadd.f32 0.0, %v2490
    %2492 = vdwg.mxu0
    %v2495 = vrot.slane %v2489, 6
    %v2496 = vrot.slane %v2491, 6
    %v2499 = vadd.f32 %v301, %v2495
    %v2500 = vadd.f32 %v303, %v2496
    %v2501 = vxor.u32 %v2499, 2147483648
    %v2502 = vxor.u32 %v2500, 2147483648
    %v2503 = vmul.f32 %v2501, 1.442695
    %v2504 = vpow.pop %v2503
    %v2505 = vmul.f32 %v2502, 1.442695
    %v2506 = vpow.pop %v2505
    %v2507 = vadd.f32 %v2504, 1.0
    %v2508 = vadd.f32 %v2506, 1.0
    %v2509 = vrcp.pop %v2507
    %v2510 = vmul.f32 1.0, %v2509
    %v2511 = vrcp.pop %v2508
    %v2512 = vmul.f32 1.0, %v2511
    %v2513 = vtanh.pop %v2500
    %v2515 = vrot.slane %v2402, 6
    %v2517 = vmul.f32 %v2510, %v2515
    %v2518 = vmul.f32 %v2510, %v2513
    %2520 = vrot.lane.b32.xlu0 %v2518, 64
    %v2521 = vpop.permute.xlu0 %2520
    %v2523 = vadd.f32 %v2517, %v2521
    %v2524 = vtanh.pop %v2523
    %v2525 = vmul.f32 %v2512, %v2524
    %v2528 = vunpack.c.l.s4 1983009808
    %v2529 = vunpack.c.0.s8 %v2528
    %v2530 = vlaneseq
    %v2531 = vshrl.u32 %v2530, 7
    %v2532 = vsub.s32 %v2529, %v2531
    %v2533 = vrot.slane %v2525, %v2532
    %v2534 = vcombine.high %v2533, %v2533
    %2536 = vst.msk [vmem:[#allocation8 + $0x10] sm:$0x3] %vm698, %v2534
    %2537 = vrot.lane.b32.xlu0 %v2534, 64
    %v2538 = vpop.permute.xlu0 %2537
    %2540 = vst.msk [vmem:[#allocation8 + $0xe] sm:$0x3] %vm703, %v2538
    %v2541 = vrot.slane %v2525, 2
    %2542 = vrot.lane.b32.xlu0 %v2541, 64
    %v2543 = vpop.permute.xlu0 %2542
    %v2544 = vsel %vm347, %v2543, 0
    %2546 = vmatprep.subr.mxu0 %v328
    %2547 = vmatpush1.msra.mxu0 %v327
    %2548 = vmatprep.subr.mxu0 %v330
    %2549 = vmatpush1.msra.mxu0 %v329
    %2550 = vmatprep.subr.mxu0 %v332
    %2551 = vmatpush1.msra.mxu0 %v331
    %2552 = vmatprep.subr.mxu0 %v334
    %2553 = vmatpush1.msra.mxu0 %v333
    %2554 = vmatprep.subr.mxu0 %v336
    %2555 = vmatpush1.msra.mxu0 %v335
    %2556 = vmatprep.subr.mxu0 %v338
    %2557 = vmatpush1.msra.mxu0 %v337
    %2558 = vmatprep.subr.mxu0 %v340
    %2559 = vmatpush1.msra.mxu0 %v339
    %2560 = vmatprep.subr.mxu0 %v342
    %2561 = vmatpush1.msra.mxu0 %v341
    %2562 = vmatprep.subr.mxu0 0.0
    %2563 = vmatpush1.msra.mxu0 0.0
    %2564 = vmatprep.subr.mxu0 0.0
    %2565 = vmatpush1.msra.mxu0 0.0
    %2566 = vmatprep.subr.mxu0 0.0
    %2567 = vmatpush1.msra.mxu0 0.0
    %2568 = vmatprep.subr.mxu0 0.0
    %2569 = vmatpush1.msra.mxu0 0.0
    %2570 = vmatprep.subr.mxu0 0.0
    %2571 = vmatpush1.msra.mxu0 0.0
    %2572 = vmatprep.subr.mxu0 0.0
    %2573 = vmatpush1.msra.mxu0 0.0
    %2574 = vmatprep.subr.mxu0 0.0
    %2575 = vmatpush1.msra.mxu0 0.0
    %2576 = vmatprep.subr.mxu0 0.0
    %2577 = vmatpush1.msra.mxu0 0.0
    %2578 = vmatprep.subr.mxu0 0.0
    %2579 = vmatpush1.msra.mxu0 0.0
    %2580 = vmatprep.subr.mxu0 0.0
    %2581 = vmatpush1.msra.mxu0 0.0
    %2582 = vmatprep.subr.mxu0 0.0
    %2583 = vmatpush1.msra.mxu0 0.0
    %2584 = vmatprep.subr.mxu0 0.0
    %2585 = vmatpush1.msra.mxu0 0.0
    %2586 = vmatprep.subr.mxu0 0.0
    %2587 = vmatpush1.msra.mxu0 0.0
    %2588 = vmatprep.subr.mxu0 0.0
    %2589 = vmatpush1.msra.mxu0 0.0
    %2590 = vmatprep.subr.mxu0 0.0
    %2591 = vmatpush1.msra.mxu0 0.0
    %2592 = vmatprep.subr.mxu0 0.0
    %2593 = vmatpush1.msra.mxu0 0.0
    %2594 = vmatprep.subr.mxu0 0.0
    %2595 = vmatpush1.msra.mxu0 0.0
    %2596 = vmatprep.subr.mxu0 0.0
    %2597 = vmatpush1.msra.mxu0 0.0
    %2598 = vmatprep.subr.mxu0 0.0
    %2599 = vmatpush1.msra.mxu0 0.0
    %2600 = vmatprep.subr.mxu0 0.0
    %2601 = vmatpush1.msra.mxu0 0.0
    %2602 = vmatprep.subr.mxu0 0.0
    %2603 = vmatpush1.msra.mxu0 0.0
    %2604 = vmatprep.subr.mxu0 0.0
    %2605 = vmatpush1.msra.mxu0 0.0
    %2606 = vmatprep.subr.mxu0 0.0
    %2607 = vmatpush1.msra.mxu0 0.0
    %2608 = vmatprep.subr.mxu0 0.0
    %2609 = vmatpush1.msra.mxu0 0.0
    %2610 = vmatprep.mubr.f32.mxu0 0.0
    %2611 = vmatmul.mubr.f32.gmra.mrb[0].mxu0 %v2544
    %v2612 = vpop.f32.mrb[0].mxu0
    %v2613 = vadd.f32 0.0, %v2612
    %v2614 = vpop.f32.mrb[0].mxu0
    %v2615 = vadd.f32 0.0, %v2614
    %2616 = vdwg.mxu0
    %v2619 = vrot.slane %v2613, 4
    %v2620 = vrot.slane %v2615, 4
    %v2623 = vadd.f32 %v301, %v2619
    %v2624 = vadd.f32 %v303, %v2620
    %v2625 = vxor.u32 %v2623, 2147483648
    %v2626 = vxor.u32 %v2624, 2147483648
    %v2627 = vmul.f32 %v2625, 1.442695
    %v2628 = vpow.pop %v2627
    %v2629 = vmul.f32 %v2626, 1.442695
    %v2630 = vpow.pop %v2629
    %v2631 = vadd.f32 %v2628, 1.0
    %v2632 = vadd.f32 %v2630, 1.0
    %v2633 = vrcp.pop %v2631
    %v2634 = vmul.f32 1.0, %v2633
    %v2635 = vrcp.pop %v2632
    %v2636 = vmul.f32 1.0, %v2635
    %v2637 = vtanh.pop %v2624
    %v2639 = vrot.slane %v2523, 6
    %v2641 = vmul.f32 %v2634, %v2639
    %v2642 = vmul.f32 %v2634, %v2637
    %2644 = vrot.lane.b32.xlu0 %v2642, 64
    %v2645 = vpop.permute.xlu0 %2644
    %v2647 = vadd.f32 %v2641, %v2645
    %v2648 = vtanh.pop %v2647
    %v2649 = vmul.f32 %v2636, %v2648
    %v2651 = vcombine.high %v2649, %v2649
    %v2653 = vunpack.c.l.s4 1983009808
    %v2654 = vunpack.c.0.s8 %v2653
    %v2655 = vlaneseq
    %v2656 = vshrl.u32 %v2655, 7
    %v2657 = vsub.s32 %v2654, %v2656
    %v2658 = vrot.slane %v2651, %v2657
    %2659 = vrot.lane.b32.xlu0 %v2658, 64
    %v2660 = vpop.permute.xlu0 %2659
    %2662 = vst.msk [vmem:[#allocation8 + $0x12] sm:$0x3] %vm461, %v2660
    %2664 = vst.msk [vmem:[#allocation8 + $0xc] sm:$0x3] %vm463, %v2658
    %v2665 = vrot.slane %v2649, 4
    %2666 = vrot.lane.b32.xlu0 %v2665, 64
    %v2667 = vpop.permute.xlu0 %2666
    %v2668 = vsel %vm347, %v2667, 0
    %2670 = vmatprep.subr.mxu0 %v328
    %2671 = vmatpush1.msra.mxu0 %v327
    %2672 = vmatprep.subr.mxu0 %v330
    %2673 = vmatpush1.msra.mxu0 %v329
    %2674 = vmatprep.subr.mxu0 %v332
    %2675 = vmatpush1.msra.mxu0 %v331
    %2676 = vmatprep.subr.mxu0 %v334
    %2677 = vmatpush1.msra.mxu0 %v333
    %2678 = vmatprep.subr.mxu0 %v336
    %2679 = vmatpush1.msra.mxu0 %v335
    %2680 = vmatprep.subr.mxu0 %v338
    %2681 = vmatpush1.msra.mxu0 %v337
    %2682 = vmatprep.subr.mxu0 %v340
    %2683 = vmatpush1.msra.mxu0 %v339
    %2684 = vmatprep.subr.mxu0 %v342
    %2685 = vmatpush1.msra.mxu0 %v341
    %2686 = vmatprep.subr.mxu0 0.0
    %2687 = vmatpush1.msra.mxu0 0.0
    %2688 = vmatprep.subr.mxu0 0.0
    %2689 = vmatpush1.msra.mxu0 0.0
    %2690 = vmatprep.subr.mxu0 0.0
    %2691 = vmatpush1.msra.mxu0 0.0
    %2692 = vmatprep.subr.mxu0 0.0
    %2693 = vmatpush1.msra.mxu0 0.0
    %2694 = vmatprep.subr.mxu0 0.0
    %2695 = vmatpush1.msra.mxu0 0.0
    %2696 = vmatprep.subr.mxu0 0.0
    %2697 = vmatpush1.msra.mxu0 0.0
    %2698 = vmatprep.subr.mxu0 0.0
    %2699 = vmatpush1.msra.mxu0 0.0
    %2700 = vmatprep.subr.mxu0 0.0
    %2701 = vmatpush1.msra.mxu0 0.0
    %2702 = vmatprep.subr.mxu0 0.0
    %2703 = vmatpush1.msra.mxu0 0.0
    %2704 = vmatprep.subr.mxu0 0.0
    %2705 = vmatpush1.msra.mxu0 0.0
    %2706 = vmatprep.subr.mxu0 0.0
    %2707 = vmatpush1.msra.mxu0 0.0
    %2708 = vmatprep.subr.mxu0 0.0
    %2709 = vmatpush1.msra.mxu0 0.0
    %2710 = vmatprep.subr.mxu0 0.0
    %2711 = vmatpush1.msra.mxu0 0.0
    %2712 = vmatprep.subr.mxu0 0.0
    %2713 = vmatpush1.msra.mxu0 0.0
    %2714 = vmatprep.subr.mxu0 0.0
    %2715 = vmatpush1.msra.mxu0 0.0
    %2716 = vmatprep.subr.mxu0 0.0
    %2717 = vmatpush1.msra.mxu0 0.0
    %2718 = vmatprep.subr.mxu0 0.0
    %2719 = vmatpush1.msra.mxu0 0.0
    %2720 = vmatprep.subr.mxu0 0.0
    %2721 = vmatpush1.msra.mxu0 0.0
    %2722 = vmatprep.subr.mxu0 0.0
    %2723 = vmatpush1.msra.mxu0 0.0
    %2724 = vmatprep.subr.mxu0 0.0
    %2725 = vmatpush1.msra.mxu0 0.0
    %2726 = vmatprep.subr.mxu0 0.0
    %2727 = vmatpush1.msra.mxu0 0.0
    %2728 = vmatprep.subr.mxu0 0.0
    %2729 = vmatpush1.msra.mxu0 0.0
    %2730 = vmatprep.subr.mxu0 0.0
    %2731 = vmatpush1.msra.mxu0 0.0
    %2732 = vmatprep.subr.mxu0 0.0
    %2733 = vmatpush1.msra.mxu0 0.0
    %2734 = vmatprep.mubr.f32.mxu0 0.0
    %2735 = vmatmul.mubr.f32.gmra.mrb[0].mxu0 %v2668
    %v2736 = vpop.f32.mrb[0].mxu0
    %v2737 = vadd.f32 0.0, %v2736
    %v2738 = vpop.f32.mrb[0].mxu0
    %v2739 = vadd.f32 0.0, %v2738
    %2740 = vdwg.mxu0
    %v2743 = vrot.slane %v2737, 2
    %v2744 = vrot.slane %v2739, 2
    %v2747 = vadd.f32 %v301, %v2743
    %v2748 = vadd.f32 %v303, %v2744
    %v2749 = vxor.u32 %v2747, 2147483648
    %v2750 = vxor.u32 %v2748, 2147483648
    %v2751 = vmul.f32 %v2749, 1.442695
    %v2752 = vpow.pop %v2751
    %v2753 = vmul.f32 %v2750, 1.442695
    %v2754 = vpow.pop %v2753
    %v2755 = vadd.f32 %v2752, 1.0
    %v2756 = vadd.f32 %v2754, 1.0
    %v2757 = vrcp.pop %v2755
    %v2758 = vmul.f32 1.0, %v2757
    %v2759 = vrcp.pop %v2756
    %v2760 = vmul.f32 1.0, %v2759
    %v2761 = vtanh.pop %v2748
    %v2763 = vrot.slane %v2647, 6
    %v2765 = vmul.f32 %v2758, %v2763
    %v2766 = vmul.f32 %v2758, %v2761
    %2768 = vrot.lane.b32.xlu0 %v2766, 64
    %v2769 = vpop.permute.xlu0 %2768
    %v2771 = vadd.f32 %v2765, %v2769
    %v2772 = vtanh.pop %v2771
    %v2773 = vmul.f32 %v2760, %v2772
    %v2775 = vcombine.high %v2773, %v2773
    %v2777 = vunpack.c.l.s4 1983009808
    %v2778 = vunpack.c.0.s8 %v2777
    %v2779 = vlaneseq
    %v2780 = vshrl.u32 %v2779, 7
    %v2781 = vsub.s32 %v2778, %v2780
    %v2782 = vrot.slane %v2775, %v2781
    %v2783 = vcombine.high %v2782, %v2782
    %2785 = vst.msk [vmem:[#allocation8 + $0x12] sm:$0x3] %vm698, %v2783
    %2786 = vrot.lane.b32.xlu0 %v2783, 64
    %v2787 = vpop.permute.xlu0 %2786
    %2789 = vst.msk [vmem:[#allocation8 + $0xc] sm:$0x3] %vm703, %v2787
    %v2790 = vrot.slane %v2773, 6
    %2791 = vrot.lane.b32.xlu0 %v2790, 64
    %v2792 = vpop.permute.xlu0 %2791
    %v2793 = vsel %vm347, %v2792, 0
    %2795 = vmatprep.subr.mxu0 %v328
    %2796 = vmatpush1.msra.mxu0 %v327
    %2797 = vmatprep.subr.mxu0 %v330
    %2798 = vmatpush1.msra.mxu0 %v329
    %2799 = vmatprep.subr.mxu0 %v332
    %2800 = vmatpush1.msra.mxu0 %v331
    %2801 = vmatprep.subr.mxu0 %v334
    %2802 = vmatpush1.msra.mxu0 %v333
    %2803 = vmatprep.subr.mxu0 %v336
    %2804 = vmatpush1.msra.mxu0 %v335
    %2805 = vmatprep.subr.mxu0 %v338
    %2806 = vmatpush1.msra.mxu0 %v337
    %2807 = vmatprep.subr.mxu0 %v340
    %2808 = vmatpush1.msra.mxu0 %v339
    %2809 = vmatprep.subr.mxu0 %v342
    %2810 = vmatpush1.msra.mxu0 %v341
    %2811 = vmatprep.subr.mxu0 0.0
    %2812 = vmatpush1.msra.mxu0 0.0
    %2813 = vmatprep.subr.mxu0 0.0
    %2814 = vmatpush1.msra.mxu0 0.0
    %2815 = vmatprep.subr.mxu0 0.0
    %2816 = vmatpush1.msra.mxu0 0.0
    %2817 = vmatprep.subr.mxu0 0.0
    %2818 = vmatpush1.msra.mxu0 0.0
    %2819 = vmatprep.subr.mxu0 0.0
    %2820 = vmatpush1.msra.mxu0 0.0
    %2821 = vmatprep.subr.mxu0 0.0
    %2822 = vmatpush1.msra.mxu0 0.0
    %2823 = vmatprep.subr.mxu0 0.0
    %2824 = vmatpush1.msra.mxu0 0.0
    %2825 = vmatprep.subr.mxu0 0.0
    %2826 = vmatpush1.msra.mxu0 0.0
    %2827 = vmatprep.subr.mxu0 0.0
    %2828 = vmatpush1.msra.mxu0 0.0
    %2829 = vmatprep.subr.mxu0 0.0
    %2830 = vmatpush1.msra.mxu0 0.0
    %2831 = vmatprep.subr.mxu0 0.0
    %2832 = vmatpush1.msra.mxu0 0.0
    %2833 = vmatprep.subr.mxu0 0.0
    %2834 = vmatpush1.msra.mxu0 0.0
    %2835 = vmatprep.subr.mxu0 0.0
    %2836 = vmatpush1.msra.mxu0 0.0
    %2837 = vmatprep.subr.mxu0 0.0
    %2838 = vmatpush1.msra.mxu0 0.0
    %2839 = vmatprep.subr.mxu0 0.0
    %2840 = vmatpush1.msra.mxu0 0.0
    %2841 = vmatprep.subr.mxu0 0.0
    %2842 = vmatpush1.msra.mxu0 0.0
    %2843 = vmatprep.subr.mxu0 0.0
    %2844 = vmatpush1.msra.mxu0 0.0
    %2845 = vmatprep.subr.mxu0 0.0
    %2846 = vmatpush1.msra.mxu0 0.0
    %2847 = vmatprep.subr.mxu0 0.0
    %2848 = vmatpush1.msra.mxu0 0.0
    %2849 = vmatprep.subr.mxu0 0.0
    %2850 = vmatpush1.msra.mxu0 0.0
    %2851 = vmatprep.subr.mxu0 0.0
    %2852 = vmatpush1.msra.mxu0 0.0
    %2853 = vmatprep.subr.mxu0 0.0
    %2854 = vmatpush1.msra.mxu0 0.0
    %2855 = vmatprep.subr.mxu0 0.0
    %2856 = vmatpush1.msra.mxu0 0.0
    %2857 = vmatprep.subr.mxu0 0.0
    %2858 = vmatpush1.msra.mxu0 0.0
    %2859 = vmatprep.mubr.f32.mxu0 0.0
    %2860 = vmatmul.mubr.f32.gmra.mrb[0].mxu0 %v2793
    %v2861 = vpop.f32.mrb[0].mxu0
    %v2862 = vadd.f32 0.0, %v2861
    %v2863 = vpop.f32.mrb[0].mxu0
    %v2864 = vadd.f32 0.0, %v2863
    %2865 = vdwg.mxu0
    %v2866 = vadd.f32 %v307, %v2862
    %v2867 = vadd.f32 %v309, %v2864
    %v2868 = vxor.u32 %v2866, 2147483648
    %v2869 = vxor.u32 %v2867, 2147483648
    %v2870 = vmul.f32 %v2868, 1.442695
    %v2871 = vpow.pop %v2870
    %v2872 = vmul.f32 %v2869, 1.442695
    %v2873 = vpow.pop %v2872
    %v2874 = vadd.f32 %v2871, 1.0
    %v2875 = vadd.f32 %v2873, 1.0
    %v2876 = vrcp.pop %v2874
    %v2877 = vmul.f32 1.0, %v2876
    %v2878 = vrcp.pop %v2875
    %v2879 = vmul.f32 1.0, %v2878
    %v2880 = vtanh.pop %v2867
    %v2882 = vrot.slane %v2771, 6
    %v2884 = vmul.f32 %v2877, %v2882
    %v2885 = vmul.f32 %v2877, %v2880
    %2887 = vrot.lane.b32.xlu0 %v2885, 64
    %v2888 = vpop.permute.xlu0 %2887
    %v2890 = vadd.f32 %v2884, %v2888
    %v2891 = vtanh.pop %v2890
    %v2892 = vmul.f32 %v2879, %v2891
    %v2895 = vunpack.c.l.s4 1983009808
    %v2896 = vunpack.c.0.s8 %v2895
    %v2897 = vlaneseq
    %v2898 = vshrl.u32 %v2897, 7
    %v2899 = vsub.s32 %v2896, %v2898
    %v2900 = vrot.slane %v2892, %v2899
    %2901 = vrot.lane.b32.xlu0 %v2900, 64
    %v2902 = vpop.permute.xlu0 %2901
    %2904 = vst.msk [vmem:[#allocation8 + $0x14] sm:$0x3] %vm461, %v2902
    %2905 = vst.msk [vmem:[#allocation8 + $0xa] sm:$0x3] %vm463, %v2892
    %2906 = vrot.lane.b32.xlu0 %v2892, 64
    %v2907 = vpop.permute.xlu0 %2906
    %v2908 = vsel %vm347, %v2907, 0
    %2910 = vmatprep.subr.mxu0 %v328
    %2911 = vmatpush1.msra.mxu0 %v327
    %2912 = vmatprep.subr.mxu0 %v330
    %2913 = vmatpush1.msra.mxu0 %v329
    %2914 = vmatprep.subr.mxu0 %v332
    %2915 = vmatpush1.msra.mxu0 %v331
    %2916 = vmatprep.subr.mxu0 %v334
    %2917 = vmatpush1.msra.mxu0 %v333
    %2918 = vmatprep.subr.mxu0 %v336
    %2919 = vmatpush1.msra.mxu0 %v335
    %2920 = vmatprep.subr.mxu0 %v338
    %2921 = vmatpush1.msra.mxu0 %v337
    %2922 = vmatprep.subr.mxu0 %v340
    %2923 = vmatpush1.msra.mxu0 %v339
    %2924 = vmatprep.subr.mxu0 %v342
    %2925 = vmatpush1.msra.mxu0 %v341
    %2926 = vmatprep.subr.mxu0 0.0
    %2927 = vmatpush1.msra.mxu0 0.0
    %2928 = vmatprep.subr.mxu0 0.0
    %2929 = vmatpush1.msra.mxu0 0.0
    %2930 = vmatprep.subr.mxu0 0.0
    %2931 = vmatpush1.msra.mxu0 0.0
    %2932 = vmatprep.subr.mxu0 0.0
    %2933 = vmatpush1.msra.mxu0 0.0
    %2934 = vmatprep.subr.mxu0 0.0
    %2935 = vmatpush1.msra.mxu0 0.0
    %2936 = vmatprep.subr.mxu0 0.0
    %2937 = vmatpush1.msra.mxu0 0.0
    %2938 = vmatprep.subr.mxu0 0.0
    %2939 = vmatpush1.msra.mxu0 0.0
    %2940 = vmatprep.subr.mxu0 0.0
    %2941 = vmatpush1.msra.mxu0 0.0
    %2942 = vmatprep.subr.mxu0 0.0
    %2943 = vmatpush1.msra.mxu0 0.0
    %2944 = vmatprep.subr.mxu0 0.0
    %2945 = vmatpush1.msra.mxu0 0.0
    %2946 = vmatprep.subr.mxu0 0.0
    %2947 = vmatpush1.msra.mxu0 0.0
    %2948 = vmatprep.subr.mxu0 0.0
    %2949 = vmatpush1.msra.mxu0 0.0
    %2950 = vmatprep.subr.mxu0 0.0
    %2951 = vmatpush1.msra.mxu0 0.0
    %2952 = vmatprep.subr.mxu0 0.0
    %2953 = vmatpush1.msra.mxu0 0.0
    %2954 = vmatprep.subr.mxu0 0.0
    %2955 = vmatpush1.msra.mxu0 0.0
    %2956 = vmatprep.subr.mxu0 0.0
    %2957 = vmatpush1.msra.mxu0 0.0
    %2958 = vmatprep.subr.mxu0 0.0
    %2959 = vmatpush1.msra.mxu0 0.0
    %2960 = vmatprep.subr.mxu0 0.0
    %2961 = vmatpush1.msra.mxu0 0.0
    %2962 = vmatprep.subr.mxu0 0.0
    %2963 = vmatpush1.msra.mxu0 0.0
    %2964 = vmatprep.subr.mxu0 0.0
    %2965 = vmatpush1.msra.mxu0 0.0
    %2966 = vmatprep.subr.mxu0 0.0
    %2967 = vmatpush1.msra.mxu0 0.0
    %2968 = vmatprep.subr.mxu0 0.0
    %2969 = vmatpush1.msra.mxu0 0.0
    %2970 = vmatprep.subr.mxu0 0.0
    %2971 = vmatpush1.msra.mxu0 0.0
    %2972 = vmatprep.subr.mxu0 0.0
    %2973 = vmatpush1.msra.mxu0 0.0
    %2974 = vmatprep.mubr.f32.mxu0 0.0
    %2975 = vmatmul.mubr.f32.gmra.mrb[0].mxu0 %v2908
    %v2976 = vpop.f32.mrb[0].mxu0
    %v2977 = vadd.f32 0.0, %v2976
    %v2978 = vpop.f32.mrb[0].mxu0
    %v2979 = vadd.f32 0.0, %v2978
    %2980 = vdwg.mxu0
    %v2983 = vrot.slane %v2977, 6
    %v2984 = vrot.slane %v2979, 6
    %v2987 = vadd.f32 %v307, %v2983
    %v2988 = vadd.f32 %v309, %v2984
    %v2989 = vxor.u32 %v2987, 2147483648
    %v2990 = vxor.u32 %v2988, 2147483648
    %v2991 = vmul.f32 %v2989, 1.442695
    %v2992 = vpow.pop %v2991
    %v2993 = vmul.f32 %v2990, 1.442695
    %v2994 = vpow.pop %v2993
    %v2995 = vadd.f32 %v2992, 1.0
    %v2996 = vadd.f32 %v2994, 1.0
    %v2997 = vrcp.pop %v2995
    %v2998 = vmul.f32 1.0, %v2997
    %v2999 = vrcp.pop %v2996
    %v3000 = vmul.f32 1.0, %v2999
    %v3001 = vtanh.pop %v2988
    %v3003 = vrot.slane %v2890, 6
    %v3005 = vmul.f32 %v2998, %v3003
    %v3006 = vmul.f32 %v2998, %v3001
    %3008 = vrot.lane.b32.xlu0 %v3006, 64
    %v3009 = vpop.permute.xlu0 %3008
    %v3011 = vadd.f32 %v3005, %v3009
    %v3012 = vtanh.pop %v3011
    %v3013 = vmul.f32 %v3000, %v3012
    %v3016 = vunpack.c.l.s4 1983009808
    %v3017 = vunpack.c.0.s8 %v3016
    %v3018 = vlaneseq
    %v3019 = vshrl.u32 %v3018, 7
    %v3020 = vsub.s32 %v3017, %v3019
    %v3021 = vrot.slane %v3013, %v3020
    %v3022 = vcombine.high %v3021, %v3021
    %3024 = vst.msk [vmem:[#allocation8 + $0x14] sm:$0x3] %vm698, %v3022
    %3025 = vrot.lane.b32.xlu0 %v3022, 64
    %v3026 = vpop.permute.xlu0 %3025
    %3028 = vst.msk [vmem:[#allocation8 + $0xa] sm:$0x3] %vm703, %v3026
    %v3029 = vrot.slane %v3013, 2
    %3030 = vrot.lane.b32.xlu0 %v3029, 64
    %v3031 = vpop.permute.xlu0 %3030
    %v3032 = vsel %vm347, %v3031, 0
    %3034 = vmatprep.subr.mxu0 %v328
    %3035 = vmatpush1.msra.mxu0 %v327
    %3036 = vmatprep.subr.mxu0 %v330
    %3037 = vmatpush1.msra.mxu0 %v329
    %3038 = vmatprep.subr.mxu0 %v332
    %3039 = vmatpush1.msra.mxu0 %v331
    %3040 = vmatprep.subr.mxu0 %v334
    %3041 = vmatpush1.msra.mxu0 %v333
    %3042 = vmatprep.subr.mxu0 %v336
    %3043 = vmatpush1.msra.mxu0 %v335
    %3044 = vmatprep.subr.mxu0 %v338
    %3045 = vmatpush1.msra.mxu0 %v337
    %3046 = vmatprep.subr.mxu0 %v340
    %3047 = vmatpush1.msra.mxu0 %v339
    %3048 = vmatprep.subr.mxu0 %v342
    %3049 = vmatpush1.msra.mxu0 %v341
    %3050 = vmatprep.subr.mxu0 0.0
    %3051 = vmatpush1.msra.mxu0 0.0
    %3052 = vmatprep.subr.mxu0 0.0
    %3053 = vmatpush1.msra.mxu0 0.0
    %3054 = vmatprep.subr.mxu0 0.0
    %3055 = vmatpush1.msra.mxu0 0.0
    %3056 = vmatprep.subr.mxu0 0.0
    %3057 = vmatpush1.msra.mxu0 0.0
    %3058 = vmatprep.subr.mxu0 0.0
    %3059 = vmatpush1.msra.mxu0 0.0
    %3060 = vmatprep.subr.mxu0 0.0
    %3061 = vmatpush1.msra.mxu0 0.0
    %3062 = vmatprep.subr.mxu0 0.0
    %3063 = vmatpush1.msra.mxu0 0.0
    %3064 = vmatprep.subr.mxu0 0.0
    %3065 = vmatpush1.msra.mxu0 0.0
    %3066 = vmatprep.subr.mxu0 0.0
    %3067 = vmatpush1.msra.mxu0 0.0
    %3068 = vmatprep.subr.mxu0 0.0
    %3069 = vmatpush1.msra.mxu0 0.0
    %3070 = vmatprep.subr.mxu0 0.0
    %3071 = vmatpush1.msra.mxu0 0.0
    %3072 = vmatprep.subr.mxu0 0.0
    %3073 = vmatpush1.msra.mxu0 0.0
    %3074 = vmatprep.subr.mxu0 0.0
    %3075 = vmatpush1.msra.mxu0 0.0
    %3076 = vmatprep.subr.mxu0 0.0
    %3077 = vmatpush1.msra.mxu0 0.0
    %3078 = vmatprep.subr.mxu0 0.0
    %3079 = vmatpush1.msra.mxu0 0.0
    %3080 = vmatprep.subr.mxu0 0.0
    %3081 = vmatpush1.msra.mxu0 0.0
    %3082 = vmatprep.subr.mxu0 0.0
    %3083 = vmatpush1.msra.mxu0 0.0
    %3084 = vmatprep.subr.mxu0 0.0
    %3085 = vmatpush1.msra.mxu0 0.0
    %3086 = vmatprep.subr.mxu0 0.0
    %3087 = vmatpush1.msra.mxu0 0.0
    %3088 = vmatprep.subr.mxu0 0.0
    %3089 = vmatpush1.msra.mxu0 0.0
    %3090 = vmatprep.subr.mxu0 0.0
    %3091 = vmatpush1.msra.mxu0 0.0
    %3092 = vmatprep.subr.mxu0 0.0
    %3093 = vmatpush1.msra.mxu0 0.0
    %3094 = vmatprep.subr.mxu0 0.0
    %3095 = vmatpush1.msra.mxu0 0.0
    %3096 = vmatprep.subr.mxu0 0.0
    %3097 = vmatpush1.msra.mxu0 0.0
    %3098 = vmatprep.mubr.f32.mxu0 0.0
    %3099 = vmatmul.mubr.f32.gmra.mrb[0].mxu0 %v3032
    %v3100 = vpop.f32.mrb[0].mxu0
    %v3101 = vadd.f32 0.0, %v3100
    %v3102 = vpop.f32.mrb[0].mxu0
    %v3103 = vadd.f32 0.0, %v3102
    %3104 = vdwg.mxu0
    %v3107 = vrot.slane %v3101, 4
    %v3108 = vrot.slane %v3103, 4
    %v3111 = vadd.f32 %v307, %v3107
    %v3112 = vadd.f32 %v309, %v3108
    %v3113 = vxor.u32 %v3111, 2147483648
    %v3114 = vxor.u32 %v3112, 2147483648
    %v3115 = vmul.f32 %v3113, 1.442695
    %v3116 = vpow.pop %v3115
    %v3117 = vmul.f32 %v3114, 1.442695
    %v3118 = vpow.pop %v3117
    %v3119 = vadd.f32 %v3116, 1.0
    %v3120 = vadd.f32 %v3118, 1.0
    %v3121 = vrcp.pop %v3119
    %v3122 = vmul.f32 1.0, %v3121
    %v3123 = vrcp.pop %v3120
    %v3124 = vmul.f32 1.0, %v3123
    %v3125 = vtanh.pop %v3112
    %v3127 = vrot.slane %v3011, 6
    %v3129 = vmul.f32 %v3122, %v3127
    %v3130 = vmul.f32 %v3122, %v3125
    %3132 = vrot.lane.b32.xlu0 %v3130, 64
    %v3133 = vpop.permute.xlu0 %3132
    %v3135 = vadd.f32 %v3129, %v3133
    %v3136 = vtanh.pop %v3135
    %v3137 = vmul.f32 %v3124, %v3136
    %v3139 = vcombine.high %v3137, %v3137
    %v3141 = vunpack.c.l.s4 1983009808
    %v3142 = vunpack.c.0.s8 %v3141
    %v3143 = vlaneseq
    %v3144 = vshrl.u32 %v3143, 7
    %v3145 = vsub.s32 %v3142, %v3144
    %v3146 = vrot.slane %v3139, %v3145
    %3147 = vrot.lane.b32.xlu0 %v3146, 64
    %v3148 = vpop.permute.xlu0 %3147
    %3150 = vst.msk [vmem:[#allocation8 + $0x16] sm:$0x3] %vm461, %v3148
    %3152 = vst.msk [vmem:[#allocation8 + $0x8] sm:$0x3] %vm463, %v3146
    %v3153 = vrot.slane %v3137, 4
    %3154 = vrot.lane.b32.xlu0 %v3153, 64
    %v3155 = vpop.permute.xlu0 %3154
    %v3156 = vsel %vm347, %v3155, 0
    %3158 = vmatprep.subr.mxu0 %v328
    %3159 = vmatpush1.msra.mxu0 %v327
    %3160 = vmatprep.subr.mxu0 %v330
    %3161 = vmatpush1.msra.mxu0 %v329
    %3162 = vmatprep.subr.mxu0 %v332
    %3163 = vmatpush1.msra.mxu0 %v331
    %3164 = vmatprep.subr.mxu0 %v334
    %3165 = vmatpush1.msra.mxu0 %v333
    %3166 = vmatprep.subr.mxu0 %v336
    %3167 = vmatpush1.msra.mxu0 %v335
    %3168 = vmatprep.subr.mxu0 %v338
    %3169 = vmatpush1.msra.mxu0 %v337
    %3170 = vmatprep.subr.mxu0 %v340
    %3171 = vmatpush1.msra.mxu0 %v339
    %3172 = vmatprep.subr.mxu0 %v342
    %3173 = vmatpush1.msra.mxu0 %v341
    %3174 = vmatprep.subr.mxu0 0.0
    %3175 = vmatpush1.msra.mxu0 0.0
    %3176 = vmatprep.subr.mxu0 0.0
    %3177 = vmatpush1.msra.mxu0 0.0
    %3178 = vmatprep.subr.mxu0 0.0
    %3179 = vmatpush1.msra.mxu0 0.0
    %3180 = vmatprep.subr.mxu0 0.0
    %3181 = vmatpush1.msra.mxu0 0.0
    %3182 = vmatprep.subr.mxu0 0.0
    %3183 = vmatpush1.msra.mxu0 0.0
    %3184 = vmatprep.subr.mxu0 0.0
    %3185 = vmatpush1.msra.mxu0 0.0
    %3186 = vmatprep.subr.mxu0 0.0
    %3187 = vmatpush1.msra.mxu0 0.0
    %3188 = vmatprep.subr.mxu0 0.0
    %3189 = vmatpush1.msra.mxu0 0.0
    %3190 = vmatprep.subr.mxu0 0.0
    %3191 = vmatpush1.msra.mxu0 0.0
    %3192 = vmatprep.subr.mxu0 0.0
    %3193 = vmatpush1.msra.mxu0 0.0
    %3194 = vmatprep.subr.mxu0 0.0
    %3195 = vmatpush1.msra.mxu0 0.0
    %3196 = vmatprep.subr.mxu0 0.0
    %3197 = vmatpush1.msra.mxu0 0.0
    %3198 = vmatprep.subr.mxu0 0.0
    %3199 = vmatpush1.msra.mxu0 0.0
    %3200 = vmatprep.subr.mxu0 0.0
    %3201 = vmatpush1.msra.mxu0 0.0
    %3202 = vmatprep.subr.mxu0 0.0
    %3203 = vmatpush1.msra.mxu0 0.0
    %3204 = vmatprep.subr.mxu0 0.0
    %3205 = vmatpush1.msra.mxu0 0.0
    %3206 = vmatprep.subr.mxu0 0.0
    %3207 = vmatpush1.msra.mxu0 0.0
    %3208 = vmatprep.subr.mxu0 0.0
    %3209 = vmatpush1.msra.mxu0 0.0
    %3210 = vmatprep.subr.mxu0 0.0
    %3211 = vmatpush1.msra.mxu0 0.0
    %3212 = vmatprep.subr.mxu0 0.0
    %3213 = vmatpush1.msra.mxu0 0.0
    %3214 = vmatprep.subr.mxu0 0.0
    %3215 = vmatpush1.msra.mxu0 0.0
    %3216 = vmatprep.subr.mxu0 0.0
    %3217 = vmatpush1.msra.mxu0 0.0
    %3218 = vmatprep.subr.mxu0 0.0
    %3219 = vmatpush1.msra.mxu0 0.0
    %3220 = vmatprep.subr.mxu0 0.0
    %3221 = vmatpush1.msra.mxu0 0.0
    %3222 = vmatprep.mubr.f32.mxu0 0.0
    %3223 = vmatmul.mubr.f32.gmra.mrb[0].mxu0 %v3156
    %v3224 = vpop.f32.mrb[0].mxu0
    %v3225 = vadd.f32 0.0, %v3224
    %v3226 = vpop.f32.mrb[0].mxu0
    %v3227 = vadd.f32 0.0, %v3226
    %3228 = vdwg.mxu0
    %v3231 = vrot.slane %v3225, 2
    %v3232 = vrot.slane %v3227, 2
    %v3235 = vadd.f32 %v307, %v3231
    %v3236 = vadd.f32 %v309, %v3232
    %v3237 = vxor.u32 %v3235, 2147483648
    %v3238 = vxor.u32 %v3236, 2147483648
    %v3239 = vmul.f32 %v3237, 1.442695
    %v3240 = vpow.pop %v3239
    %v3241 = vmul.f32 %v3238, 1.442695
    %v3242 = vpow.pop %v3241
    %v3243 = vadd.f32 %v3240, 1.0
    %v3244 = vadd.f32 %v3242, 1.0
    %v3245 = vrcp.pop %v3243
    %v3246 = vmul.f32 1.0, %v3245
    %v3247 = vrcp.pop %v3244
    %v3248 = vmul.f32 1.0, %v3247
    %v3249 = vtanh.pop %v3236
    %v3251 = vrot.slane %v3135, 6
    %v3253 = vmul.f32 %v3246, %v3251
    %v3254 = vmul.f32 %v3246, %v3249
    %3256 = vrot.lane.b32.xlu0 %v3254, 64
    %v3257 = vpop.permute.xlu0 %3256
    %v3259 = vadd.f32 %v3253, %v3257
    %v3260 = vtanh.pop %v3259
    %v3261 = vmul.f32 %v3248, %v3260
    %v3263 = vcombine.high %v3261, %v3261
    %v3265 = vunpack.c.l.s4 1983009808
    %v3266 = vunpack.c.0.s8 %v3265
    %v3267 = vlaneseq
    %v3268 = vshrl.u32 %v3267, 7
    %v3269 = vsub.s32 %v3266, %v3268
    %v3270 = vrot.slane %v3263, %v3269
    %v3271 = vcombine.high %v3270, %v3270
    %3273 = vst.msk [vmem:[#allocation8 + $0x16] sm:$0x3] %vm698, %v3271
    %3274 = vrot.lane.b32.xlu0 %v3271, 64
    %v3275 = vpop.permute.xlu0 %3274
    %3277 = vst.msk [vmem:[#allocation8 + $0x8] sm:$0x3] %vm703, %v3275
    // Predicated region
    $region62: #{tpu_custom_call.1} parent=1 // pred_check
      _
    $region63: #{tpu_custom_call.1} parent=1 // pred_check_branch
      %3279 = sbr.rel (0) target = $region65
    $region64: #{tpu_custom_call.1} parent=1 // pred_region
      %s3281 = ssub.s32 384, 384
      %3282 = vsyncadd [#allocation4], %s3281
      %s3284 = sshll.u32 [#allocation8], 4
      %s3285 = int_to_ptr.vmem [resolvable:$true] %s3284
      %3287 = dma.vmem_to_hbm [thread:$0]  %s3285, 384, %s12, [#allocation4]
    $region65: #{tpu_custom_call.1} parent=1 // pred_fallthru
      _
    // Predicated region
    $region66: #{tpu_custom_call.1} parent=1 // pred_check
      _
    $region67: #{tpu_custom_call.1} parent=1 // pred_check_branch
      %3289 = sbr.rel (0) target = $region69
    $region68: #{tpu_custom_call.1} parent=1 // pred_region
      %3290 = dma.done [#allocation4], 384
    $region69: #{tpu_custom_call.1} parent=1 // pred_fallthru
      _
    %3291 = vsyncpa [#allocation3], 1
    %3292 = vsyncpa [#allocation6], 1
    %3293 = vsyncpa [#allocation4], 1

</llo_original>
